<compile_context>
chip_gen: v6e
topology: v6e:2x2x1
jax: 0.10.0
libtpu: 0.0.40
codegen_flags: <defaults>
</compile_context>

<pallas_src>
import functools
import math

import jax
import jax.numpy as jnp
import numpy as np
from jax import lax
from jax.experimental import pallas as pl
from jax.experimental.pallas import tpu as pltpu

MATMUL_DTYPE = jnp.bfloat16   # matmul operand dtype (fp32 accumulation everywhere)


# ----------------------------- in-kernel helpers -----------------------------

def _layernorm(x, gamma, beta, eps):
    # fp32 LayerNorm (matches the LayerNorm subclass which upcasts to fp32)
    mu = jnp.mean(x, axis=-1, keepdims=True)
    var = jnp.mean(jnp.square(x - mu), axis=-1, keepdims=True)
    return (x - mu) * lax.rsqrt(var + eps) * gamma + beta


# ----------------------------- fused Pallas kernel ----------------------------

def transformer_kernel(x_ref,
                       ln1g_ref, ln1b_ref, wqkv_ref, bqkv_ref, wo_ref, bo_ref,
                       ln2g_ref, ln2b_ref, wfc_ref, bfc_ref, wpj_ref, bpj_ref,
                       lnfg_ref, lnfb_ref, proj_ref,
                       out_ref,
                       x_sc,
                       *, n_head, eps):
    """Grid axis 0 = layer index.  One grid step == one ResidualAttentionBlock;
    the last step additionally does ln_final + text_projection on position 0."""
    layer = pl.program_id(0)
    mdt = MATMUL_DTYPE

    # Load the embedded input into the VMEM-resident residual stream once.
    @pl.when(layer == 0)
    def _():
        x_sc[...] = x_ref[...].astype(jnp.float32)

    x = x_sc[...]                                   # [L, B, W] fp32 residual stream
    L, B, W = x.shape
    H = n_head
    Dh = W // H
    N = L * B
    scale = 1.0 / math.sqrt(Dh)

    # Additive causal mask over the attended axis (== the input batch axis, exactly
    # as nn.MultiheadAttention sees it in the reference).  Built on the VPU with two
    # iotas — no HBM input.  Large finite negative instead of -inf; the diagonal is
    # unmasked so results are identical.
    row = lax.broadcasted_iota(jnp.int32, (B, B), 0)
    col = lax.broadcasted_iota(jnp.int32, (B, B), 1)
    mask = jnp.where(col > row, -1e30, 0.0).astype(jnp.float32)

    # ---------------- attention branch ----------------
    # Fused Q/K/V projection: ONE [N,W]x[W,3W] MXU matmul.
    h = _layernorm(x, ln1g_ref[0], ln1b_ref[0], eps).reshape(N, W).astype(mdt)
    qkv = (jnp.dot(h, wqkv_ref[0], preferred_element_type=jnp.float32)
           + bqkv_ref[0]).reshape(L, B, 3 * W)      # [..., q | k | v]

    # Merge (head, L) into ONE leading batch dim -> a single batched score / PV
    # einsum for all heads (no per-head matmul loop).  Per-head pieces are cheap
    # static lane slices of the in-register qkv value.
    def stack_heads(base):
        return jnp.concatenate(
            [qkv[:, :, base + hd * Dh: base + (hd + 1) * Dh] for hd in range(H)],
            axis=0).astype(mdt)                     # [H*L, B, Dh]

    q_s = stack_heads(0)
    k_s = stack_heads(W)
    v_s = stack_heads(2 * W)

    s = jnp.einsum('nid,njd->nij', q_s, k_s,
                   preferred_element_type=jnp.float32) * scale    # [H*L, B, B]
    s = s + mask[None, :, :]
    m = jnp.max(s, axis=-1, keepdims=True)
    p = jnp.exp(s - m)
    p = p * pl.reciprocal(jnp.sum(p, axis=-1, keepdims=True), approx=True)
    o_s = jnp.einsum('nij,njd->nid', p.astype(mdt), v_s,
                     preferred_element_type=jnp.float32)          # [H*L, B, Dh]

    # Re-concatenate heads along lanes (in registers), then ONE fused out-projection
    # on the concatenated heads ([N,W]x[W,W]).
    attn_in = jnp.concatenate(
        [o_s[hd * L:(hd + 1) * L] for hd in range(H)], axis=-1)   # [L, B, W]
    attn = (jnp.dot(attn_in.reshape(N, W).astype(mdt), wo_ref[0],
                    preferred_element_type=jnp.float32) + bo_ref[0])
    x = x + attn.reshape(L, B, W)

    # ---------------- MLP branch ----------------
    h2 = _layernorm(x, ln2g_ref[0], ln2b_ref[0], eps).reshape(N, W).astype(mdt)
    f = jnp.dot(h2, wfc_ref[0], preferred_element_type=jnp.float32) + bfc_ref[0]
    f = f * jax.nn.sigmoid(1.702 * f)               # QuickGELU, fp32
    y = jnp.dot(f.astype(mdt), wpj_ref[0], preferred_element_type=jnp.float32) \
        + bpj_ref[0]
    x = x + y.reshape(L, B, W)
    x_sc[...] = x                                   # residual stream stays in VMEM

    # -------- final LayerNorm + text projection, folded into the last step --------
    @pl.when(layer == pl.num_programs(0) - 1)
    def _():
        # position-0 slice first (LN is per-token, so this is exactly equivalent)
        z = _layernorm(x[0], lnfg_ref[...], lnfb_ref[...], eps)   # [B, W]
        out_ref[...] = jnp.dot(z.astype(mdt), proj_ref[...],
                               preferred_element_type=jnp.float32
                               ).astype(out_ref.dtype)


# ----------------------------- parameter packing ------------------------------

def _pack_params(params):
    """Stack per-layer weights with a leading layer axis (bf16 matrices, fp32
    vectors) so a single pallas_call can stream them with index_map (l, 0, 0)."""
    wdt = MATMUL_DTYPE
    blocks = params['blocks']

    def stack(fn, dtype=jnp.float32):
        return jnp.stack([fn(b) for b in blocks], axis=0).astype(dtype)

    layer_weights = [
        stack(lambda b: b['ln1_g'][None, :]),            # [Ly, 1, W]
        stack(lambda b: b['ln1_b'][None, :]),
        stack(lambda b: b['in_w'].T, wdt),               # wqkv [Ly, W, 3W]
        stack(lambda b: b['in_b'][None, :]),             # bqkv [Ly, 1, 3W]
        stack(lambda b: b['out_w'].T, wdt),              # wo   [Ly, W, W]
        stack(lambda b: b['out_b'][None, :]),            # bo   [Ly, 1, W]
        stack(lambda b: b['ln2_g'][None, :]),
        stack(lambda b: b['ln2_b'][None, :]),
        stack(lambda b: b['fc_w'].T, wdt),               # [Ly, W, FF]
        stack(lambda b: b['fc_b'][None, :]),             # [Ly, 1, FF]
        stack(lambda b: b['pj_w'].T, wdt),               # [Ly, FF, W]
        stack(lambda b: b['pj_b'][None, :]),             # [Ly, 1, W]
    ]
    finals = [
        params['ln_final_g'][None, :],                   # [1, W] fp32
        params['ln_final_b'][None, :],
        params['text_projection'].astype(wdt),           # [W, E]
    ]
    return layer_weights, finals


# ----------------------------- forward (glue + kernel) ------------------------

def transformer_forward(input_ids, params, cfg):
    W, H = cfg['width'], cfg['heads']
    FF, E = cfg['feedforward_dim'], cfg['embed_dim']
    n_layers, eps = cfg['layers'], cfg['layer_norm_eps']
    B, L = input_ids.shape
    Dh = W // H

    # Embedding gather + positional add + [B,L,W]->[L,B,W] transpose stay in XLA glue.
    # TODO(synk): the data-dependent token-embedding gather has no clean BlockSpec
    # form at this size, so it is left to XLA outside the kernel.
    tok = jnp.take(params['token_embedding'], input_ids, axis=0)        # [B, L, W]
    x = (tok + params['positional_embedding'][:L]).astype(jnp.float32)
    x = jnp.transpose(x, (1, 0, 2))                                     # [L, B, W]

    layer_weights, finals = _pack_params(params)

    def per_layer(a):
        nd = a.ndim
        return pl.BlockSpec((1,) + tuple(a.shape[1:]),
                            lambda l: (l,) + (0,) * (nd - 1))

    def resident(a):
        nd = a.ndim
        return pl.BlockSpec(tuple(a.shape), lambda l: (0,) * nd)

    in_specs = ([resident(x)]
                + [per_layer(a) for a in layer_weights]
                + [resident(a) for a in finals])

    grid_spec = pltpu.PrefetchScalarGridSpec(
        num_scalar_prefetch=0,
        grid=(n_layers,),
        in_specs=in_specs,
        out_specs=pl.BlockSpec((B, E), lambda l: (0, 0)),
        scratch_shapes=[pltpu.VMEM((L, B, W), jnp.float32)],   # residual stream
    )

    # Advisory cost estimate for XLA's scheduler around the custom call.
    N = L * B
    flops_layer = (2 * N * W * (3 * W)               # fused qkv projection
                   + 2 * 2 * H * L * B * B * Dh      # scores + PV
                   + 2 * N * W * W                   # out projection
                   + 2 * 2 * N * W * FF)             # MLP
    flops = n_layers * flops_layer + 2 * B * W * E
    transcendentals = n_layers * (H * L * B * B + H * L * B + N * FF)
    bytes_accessed = int(x.size * 4 + B * E * 4
                         + sum(int(a.size) * a.dtype.itemsize
                               for a in layer_weights + finals))
    cost = pl.CostEstimate(flops=int(flops), transcendentals=int(transcendentals),
                           bytes_accessed=bytes_accessed)

    kern = functools.partial(transformer_kernel, n_head=H, eps=eps)
    return pl.pallas_call(
        kern,
        out_shape=jax.ShapeDtypeStruct((B, E), jnp.float32),
        grid_spec=grid_spec,
        compiler_params=pltpu.CompilerParams(dimension_semantics=("arbitrary",)),
        cost_estimate=cost,
    )(x, *layer_weights, *finals)


# ----------------------------- parameters (deterministic) --------------------

def xavier_uniform(key, shape):
    fan_out, fan_in = shape
    bound = math.sqrt(6.0 / (fan_in + fan_out))
    return jax.random.uniform(key, shape, jnp.float32, -bound, bound)


def init_params(key, cfg):
    W, FF = cfg['width'], cfg['feedforward_dim']
    blocks = []
    for _ in range(cfg['layers']):
        key, k1, k2, k3, k4 = jax.random.split(key, 5)
        blocks.append(dict(
            in_w=xavier_uniform(k1, (3 * W, W)),         # attn.in_proj_weight
            in_b=jnp.zeros((3 * W,), jnp.float32),       # attn.in_proj_bias
            out_w=xavier_uniform(k2, (W, W)),            # attn.out_proj.weight
            out_b=jnp.zeros((W,), jnp.float32),
            ln1_g=jnp.ones((W,), jnp.float32), ln1_b=jnp.zeros((W,), jnp.float32),
            fc_w=xavier_uniform(k3, (FF, W)), fc_b=jnp.zeros((FF,), jnp.float32),
            pj_w=xavier_uniform(k4, (W, FF)), pj_b=jnp.zeros((W,), jnp.float32),
            ln2_g=jnp.ones((W,), jnp.float32), ln2_b=jnp.zeros((W,), jnp.float32),
        ))
    key, kt, kp, kx = jax.random.split(key, 4)
    return dict(
        blocks=blocks,
        token_embedding=cfg['initializer_range'] * jax.random.normal(
            kt, (cfg['max_position_embeddings'], W), jnp.float32),
        positional_embedding=0.01 * jax.random.normal(
            kp, (cfg['context_length'], W), jnp.float32),
        text_projection=xavier_uniform(kx, (W, cfg['embed_dim'])),
        ln_final_g=jnp.ones((W,), jnp.float32),
        ln_final_b=jnp.zeros((W,), jnp.float32),
    )


# ----------------------------- pure-JAX reference -----------------------------

def reference_forward(input_ids, params, cfg):
    W, H = cfg['width'], cfg['heads']
    Dh = W // H
    eps = cfg['layer_norm_eps']

    def ln(x, g, b):
        mu = x.mean(-1, keepdims=True)
        var = ((x - mu) ** 2).mean(-1, keepdims=True)
        return (x - mu) / jnp.sqrt(var + eps) * g + b

    tok = params['token_embedding'][input_ids]
    pos = params['positional_embedding'][:input_ids.shape[1]]
    x = tok + pos                                                  # [B, L, W]
    B, L, _ = x.shape
    mask = jnp.where(jnp.arange(B)[None, :] > jnp.arange(B)[:, None], -jnp.inf, 0.0)
    for p in params['blocks']:
        h = ln(x, p['ln1_g'], p['ln1_b'])
        qkv = h @ p['in_w'].T + p['in_b']
        q, k, v = jnp.split(qkv, 3, axis=-1)
        q = q.reshape(B, L, H, Dh)
        k = k.reshape(B, L, H, Dh)
        v = v.reshape(B, L, H, Dh)
        s = jnp.einsum('ilhd,jlhd->lhij', q, k) / math.sqrt(Dh) + mask
        pr = jax.nn.softmax(s, axis=-1)
        o = jnp.einsum('lhij,jlhd->ilhd', pr, v).reshape(B, L, W)
        o = o @ p['out_w'].T + p['out_b']
        x = x + o
        h2 = ln(x, p['ln2_g'], p['ln2_b'])
        f = h2 @ p['fc_w'].T + p['fc_b']
        f = f * jax.nn.sigmoid(1.702 * f)
        x = x + (f @ p['pj_w'].T + p['pj_b'])
    x = ln(x, params['ln_final_g'], params['ln_final_b'])
    return (x @ params['text_projection'])[:, 0, :]


# ----------------------------- main -------------------------------------------

if __name__ == "__main__":
    cfg = dict(layers=2, heads=4, width=32, feedforward_dim=64,
               layer_norm_eps=1e-5, initializer_range=0.02,
               embed_dim=16, max_position_embeddings=64, context_length=8)

    key = jax.random.PRNGKey(0)
    key, pkey, ikey = jax.random.split(key, 3)
    params = init_params(pkey, cfg)

    B, L = 8, cfg['context_length']
    input_ids = jax.random.randint(ikey, (B, L), 0,
                                   cfg['max_position_embeddings'], dtype=jnp.int32)

    out = jax.block_until_ready(transformer_forward(input_ids, params, cfg))

    with jax.default_matmul_precision("highest"):
        ref = jax.block_until_ready(reference_forward(input_ids, params, cfg))

    assert out.shape == (B, cfg['embed_dim'])
    # Kernel uses bf16 matmul operands (fp32 accumulation / LN / softmax) vs an
    # all-fp32 reference, hence the bf16-appropriate tolerance.
    np.testing.assert_allclose(np.asarray(out), np.asarray(ref), rtol=1e-1, atol=1e-1)
    print("KERNEL_OK")
</pallas_src>

<mosaic_0001>
module attributes {stable_mosaic.version = 11 : i64} {
  func.func @transformer_kernel(%arg0: i32, %arg1: memref<8x8x32xf32, #tpu.memory_space<vmem>>, %arg2: memref<1x1x32xf32, #tpu.memory_space<vmem>>, %arg3: memref<1x1x32xf32, #tpu.memory_space<vmem>>, %arg4: memref<1x32x96xbf16, #tpu.memory_space<vmem>>, %arg5: memref<1x1x96xf32, #tpu.memory_space<vmem>>, %arg6: memref<1x32x32xbf16, #tpu.memory_space<vmem>>, %arg7: memref<1x1x32xf32, #tpu.memory_space<vmem>>, %arg8: memref<1x1x32xf32, #tpu.memory_space<vmem>>, %arg9: memref<1x1x32xf32, #tpu.memory_space<vmem>>, %arg10: memref<1x32x64xbf16, #tpu.memory_space<vmem>>, %arg11: memref<1x1x64xf32, #tpu.memory_space<vmem>>, %arg12: memref<1x64x32xbf16, #tpu.memory_space<vmem>>, %arg13: memref<1x1x32xf32, #tpu.memory_space<vmem>>, %arg14: memref<1x32xf32, #tpu.memory_space<vmem>>, %arg15: memref<1x32xf32, #tpu.memory_space<vmem>>, %arg16: memref<32x16xbf16, #tpu.memory_space<vmem>>, %arg17: memref<8x16xf32, #tpu.memory_space<vmem>>, %arg18: memref<8x8x32xf32, #tpu.memory_space<vmem>>) attributes {dimension_semantics = [#tpu.dimension_semantics<arbitrary>], iteration_bounds = array<i64: 2>, scalar_prefetch = 0 : i64, scratch_operands = 1 : i64, tpu.core_type = #tpu.core_type<tc>, window_params = [{pipeline_mode = #tpu.pipeline_mode<synchronous>, transform_indices = @transform_0, window_bounds = array<i64: 8, 8, 32>}, {transform_indices = @transform_1, window_bounds = array<i64: 1, 1, 32>}, {transform_indices = @transform_2, window_bounds = array<i64: 1, 1, 32>}, {transform_indices = @transform_3, window_bounds = array<i64: 1, 32, 96>}, {transform_indices = @transform_4, window_bounds = array<i64: 1, 1, 96>}, {transform_indices = @transform_5, window_bounds = array<i64: 1, 32, 32>}, {transform_indices = @transform_6, window_bounds = array<i64: 1, 1, 32>}, {transform_indices = @transform_7, window_bounds = array<i64: 1, 1, 32>}, {transform_indices = @transform_8, window_bounds = array<i64: 1, 1, 32>}, {transform_indices = @transform_9, window_bounds = array<i64: 1, 32, 64>}, {transform_indices = @transform_10, window_bounds = array<i64: 1, 1, 64>}, {transform_indices = @transform_11, window_bounds = array<i64: 1, 64, 32>}, {transform_indices = @transform_12, window_bounds = array<i64: 1, 1, 32>}, {pipeline_mode = #tpu.pipeline_mode<synchronous>, transform_indices = @transform_13, window_bounds = array<i64: 1, 32>}, {pipeline_mode = #tpu.pipeline_mode<synchronous>, transform_indices = @transform_14, window_bounds = array<i64: 1, 32>}, {pipeline_mode = #tpu.pipeline_mode<synchronous>, transform_indices = @transform_15, window_bounds = array<i64: 32, 16>}, {pipeline_mode = #tpu.pipeline_mode<synchronous>, transform_indices = @transform_16, window_bounds = array<i64: 8, 16>}]} {
    %c0_i32 = arith.constant 0 : i32
    %0 = arith.cmpi eq, %arg0, %c0_i32 : i32
    %1 = arith.extui %0 : i1 to i32
    %c0_i32_0 = arith.constant 0 : i32
    %2 = arith.cmpi ne, %1, %c0_i32_0 : i32
    scf.if %2 {
      %c0_65 = arith.constant 0 : index
      %c0_66 = arith.constant 0 : index
      %c0_67 = arith.constant 0 : index
      %159 = vector.load %arg1[%c0_65, %c0_66, %c0_67] : memref<8x8x32xf32, #tpu.memory_space<vmem>>, vector<8x8x32xf32>
      %c0_68 = arith.constant 0 : index
      %c0_69 = arith.constant 0 : index
      %c0_70 = arith.constant 0 : index
      %160 = vector.load %arg18[%c0_68, %c0_69, %c0_70] : memref<8x8x32xf32, #tpu.memory_space<vmem>>, vector<8x8x32xf32>
      tpu.vector_store %arg18[%c0_68, %c0_69, %c0_70], %159 {strides = array<i32>} : memref<8x8x32xf32, #tpu.memory_space<vmem>>, vector<8x8x32xf32>,
    } else {
    }
    %c0 = arith.constant 0 : index
    %c0_1 = arith.constant 0 : index
    %c0_2 = arith.constant 0 : index
    %3 = vector.load %arg18[%c0, %c0_1, %c0_2] : memref<8x8x32xf32, #tpu.memory_space<vmem>>, vector<8x8x32xf32>
    %4 = tpu.iota {dimensions = array<i32: 0>} : vector<8x8xi32>
    %5 = tpu.iota {dimensions = array<i32: 1>} : vector<8x8xi32>
    %6 = arith.cmpi sgt, %5, %4 : vector<8x8xi32>
    %cst = arith.constant -1.000000e+30 : f32
    %cst_3 = arith.constant 0.000000e+00 : f32
    %7 = vector.broadcast %cst : f32 to vector<8x8xf32>
    %8 = vector.broadcast %cst_3 : f32 to vector<8x8xf32>
    %9 = arith.select %6, %7, %8 : vector<8x8xi1>, vector<8x8xf32>
    %c0_4 = arith.constant 0 : index
    %c0_5 = arith.constant 0 : index
    %c0_6 = arith.constant 0 : index
    %10 = vector.load %arg2[%c0_4, %c0_5, %c0_6] : memref<1x1x32xf32, #tpu.memory_space<vmem>>, vector<1x1x32xf32>
    %11 = vector.shape_cast %10 : vector<1x1x32xf32> to vector<1x32xf32>
    %c0_7 = arith.constant 0 : index
    %c0_8 = arith.constant 0 : index
    %c0_9 = arith.constant 0 : index
    %12 = vector.load %arg3[%c0_7, %c0_8, %c0_9] : memref<1x1x32xf32, #tpu.memory_space<vmem>>, vector<1x1x32xf32>
    %13 = vector.shape_cast %12 : vector<1x1x32xf32> to vector<1x32xf32>
    %cst_10 = arith.constant dense<0.000000e+00> : vector<8x8xf32>
    %14 = vector.multi_reduction <add>, %3, %cst_10 [2] : vector<8x8x32xf32> to vector<8x8xf32>
    %15 = vector.shape_cast %14 : vector<8x8xf32> to vector<8x8x1xf32>
    %cst_11 = arith.constant 3.200000e+01 : f32
    %16 = vector.broadcast %cst_11 : f32 to vector<8x8x1xf32>
    %17 = arith.divf %15, %16 : vector<8x8x1xf32>
    %18 = vector.broadcast %17 : vector<8x8x1xf32> to vector<8x8x32xf32>
    %19 = arith.subf %3, %18 : vector<8x8x32xf32>
    %20 = arith.mulf %19, %19 : vector<8x8x32xf32>
    %cst_12 = arith.constant dense<0.000000e+00> : vector<8x8xf32>
    %21 = vector.multi_reduction <add>, %20, %cst_12 [2] : vector<8x8x32xf32> to vector<8x8xf32>
    %22 = vector.shape_cast %21 : vector<8x8xf32> to vector<8x8x1xf32>
    %cst_13 = arith.constant 3.200000e+01 : f32
    %23 = vector.broadcast %cst_13 : f32 to vector<8x8x1xf32>
    %24 = arith.divf %22, %23 : vector<8x8x1xf32>
    %25 = vector.broadcast %17 : vector<8x8x1xf32> to vector<8x8x32xf32>
    %26 = arith.subf %3, %25 : vector<8x8x32xf32>
    %cst_14 = arith.constant 9.99999974E-6 : f32
    %27 = vector.broadcast %cst_14 : f32 to vector<8x8x1xf32>
    %28 = arith.addf %24, %27 : vector<8x8x1xf32>
    %29 = math.rsqrt %28 : vector<8x8x1xf32>
    %30 = vector.broadcast %29 : vector<8x8x1xf32> to vector<8x8x32xf32>
    %31 = arith.mulf %26, %30 : vector<8x8x32xf32>
    %32 = vector.shape_cast %11 : vector<1x32xf32> to vector<1x1x32xf32>
    %33 = vector.broadcast %32 : vector<1x1x32xf32> to vector<8x8x32xf32>
    %34 = arith.mulf %31, %33 : vector<8x8x32xf32>
    %35 = vector.shape_cast %13 : vector<1x32xf32> to vector<1x1x32xf32>
    %36 = vector.broadcast %35 : vector<1x1x32xf32> to vector<8x8x32xf32>
    %37 = arith.addf %34, %36 : vector<8x8x32xf32>
    %38 = vector.shape_cast %37 : vector<8x8x32xf32> to vector<64x32xf32>
    %39 = arith.truncf %38 : vector<64x32xf32> to vector<64x32xbf16>
    %c0_15 = arith.constant 0 : index
    %c0_16 = arith.constant 0 : index
    %c0_17 = arith.constant 0 : index
    %40 = vector.load %arg4[%c0_15, %c0_16, %c0_17] : memref<1x32x96xbf16, #tpu.memory_space<vmem>>, vector<1x32x96xbf16>
    %41 = vector.shape_cast %40 : vector<1x32x96xbf16> to vector<32x96xbf16>
    %cst_18 = arith.constant dense<0.000000e+00> : vector<64x96xf32>
    %42 = tpu.matmul %39, %41, %cst_18 {dimension_numbers = #tpu.dot_dimension_numbers<[1], [0], [0], [1], [0, 0, 1, 1], [], []>} : vector<64x32xbf16>, vector<32x96xbf16>, vector<64x96xf32> -> vector<64x96xf32>
    %c0_19 = arith.constant 0 : index
    %c0_20 = arith.constant 0 : index
    %c0_21 = arith.constant 0 : index
    %43 = vector.load %arg5[%c0_19, %c0_20, %c0_21] : memref<1x1x96xf32, #tpu.memory_space<vmem>>, vector<1x1x96xf32>
    %44 = vector.shape_cast %43 : vector<1x1x96xf32> to vector<1x96xf32>
    %45 = vector.broadcast %44 : vector<1x96xf32> to vector<64x96xf32>
    %46 = arith.addf %42, %45 : vector<64x96xf32>
    %47 = vector.shape_cast %46 : vector<64x96xf32> to vector<8x8x96xf32>
    %48 = vector.extract_strided_slice %47 {offsets = [0, 0, 0], sizes = [8, 8, 8], strides = [1, 1, 1]} : vector<8x8x96xf32> to vector<8x8x8xf32>
    %49 = vector.extract_strided_slice %47 {offsets = [0, 0, 8], sizes = [8, 8, 8], strides = [1, 1, 1]} : vector<8x8x96xf32> to vector<8x8x8xf32>
    %50 = vector.extract_strided_slice %47 {offsets = [0, 0, 16], sizes = [8, 8, 8], strides = [1, 1, 1]} : vector<8x8x96xf32> to vector<8x8x8xf32>
    %51 = vector.extract_strided_slice %47 {offsets = [0, 0, 24], sizes = [8, 8, 8], strides = [1, 1, 1]} : vector<8x8x96xf32> to vector<8x8x8xf32>
    %52 = tpu.concatenate %48, %49, %50, %51 in 0 : vector<8x8x8xf32>, vector<8x8x8xf32>, vector<8x8x8xf32>, vector<8x8x8xf32> -> vector<32x8x8xf32>
    %53 = arith.truncf %52 : vector<32x8x8xf32> to vector<32x8x8xbf16>
    %54 = vector.extract_strided_slice %47 {offsets = [0, 0, 32], sizes = [8, 8, 8], strides = [1, 1, 1]} : vector<8x8x96xf32> to vector<8x8x8xf32>
    %55 = vector.extract_strided_slice %47 {offsets = [0, 0, 40], sizes = [8, 8, 8], strides = [1, 1, 1]} : vector<8x8x96xf32> to vector<8x8x8xf32>
    %56 = vector.extract_strided_slice %47 {offsets = [0, 0, 48], sizes = [8, 8, 8], strides = [1, 1, 1]} : vector<8x8x96xf32> to vector<8x8x8xf32>
    %57 = vector.extract_strided_slice %47 {offsets = [0, 0, 56], sizes = [8, 8, 8], strides = [1, 1, 1]} : vector<8x8x96xf32> to vector<8x8x8xf32>
    %58 = tpu.concatenate %54, %55, %56, %57 in 0 : vector<8x8x8xf32>, vector<8x8x8xf32>, vector<8x8x8xf32>, vector<8x8x8xf32> -> vector<32x8x8xf32>
    %59 = arith.truncf %58 : vector<32x8x8xf32> to vector<32x8x8xbf16>
    %60 = vector.extract_strided_slice %47 {offsets = [0, 0, 64], sizes = [8, 8, 8], strides = [1, 1, 1]} : vector<8x8x96xf32> to vector<8x8x8xf32>
    %61 = vector.extract_strided_slice %47 {offsets = [0, 0, 72], sizes = [8, 8, 8], strides = [1, 1, 1]} : vector<8x8x96xf32> to vector<8x8x8xf32>
    %62 = vector.extract_strided_slice %47 {offsets = [0, 0, 80], sizes = [8, 8, 8], strides = [1, 1, 1]} : vector<8x8x96xf32> to vector<8x8x8xf32>
    %63 = vector.extract_strided_slice %47 {offsets = [0, 0, 88], sizes = [8, 8, 8], strides = [1, 1, 1]} : vector<8x8x96xf32> to vector<8x8x8xf32>
    %64 = tpu.concatenate %60, %61, %62, %63 in 0 : vector<8x8x8xf32>, vector<8x8x8xf32>, vector<8x8x8xf32>, vector<8x8x8xf32> -> vector<32x8x8xf32>
    %65 = arith.truncf %64 : vector<32x8x8xf32> to vector<32x8x8xbf16>
    "tpu.trace_start"() <{level = 10 : i32, message = "nid,njd->nij"}> : () -> ()
    %cst_22 = arith.constant dense<0.000000e+00> : vector<32x8x8xf32>
    %66 = tpu.matmul %53, %59, %cst_22 {dimension_numbers = #tpu.dot_dimension_numbers<[2], [2], [1], [1], [0, 0, 0, 1, 1, 1], [0], [0]>} : vector<32x8x8xbf16>, vector<32x8x8xbf16>, vector<32x8x8xf32> -> vector<32x8x8xf32>
    "tpu.trace_stop"() : () -> ()
    %cst_23 = arith.constant 0.353553385 : f32
    %67 = vector.broadcast %cst_23 : f32 to vector<32x8x8xf32>
    %68 = arith.mulf %66, %67 : vector<32x8x8xf32>
    %69 = vector.shape_cast %9 : vector<8x8xf32> to vector<1x8x8xf32>
    %70 = vector.broadcast %69 : vector<1x8x8xf32> to vector<32x8x8xf32>
    %71 = arith.addf %68, %70 : vector<32x8x8xf32>
    %cst_24 = arith.constant dense<0xFF800000> : vector<32x8xf32>
    %72 = vector.multi_reduction <maximumf>, %71, %cst_24 [2] : vector<32x8x8xf32> to vector<32x8xf32>
    %73 = vector.shape_cast %72 : vector<32x8xf32> to vector<32x8x1xf32>
    %74 = vector.broadcast %73 : vector<32x8x1xf32> to vector<32x8x8xf32>
    %75 = arith.subf %71, %74 : vector<32x8x8xf32>
    %76 = math.exp %75 : vector<32x8x8xf32>
    %cst_25 = arith.constant dense<0.000000e+00> : vector<32x8xf32>
    %77 = vector.multi_reduction <add>, %76, %cst_25 [2] : vector<32x8x8xf32> to vector<32x8xf32>
    %78 = vector.shape_cast %77 : vector<32x8xf32> to vector<32x8x1xf32>
    %79 = tpu.reciprocal %78 {approx = true} : vector<32x8x1xf32> -> vector<32x8x1xf32>
    %80 = vector.broadcast %79 : vector<32x8x1xf32> to vector<32x8x8xf32>
    %81 = arith.mulf %76, %80 : vector<32x8x8xf32>
    %82 = arith.truncf %81 : vector<32x8x8xf32> to vector<32x8x8xbf16>
    "tpu.trace_start"() <{level = 10 : i32, message = "nij,njd->nid"}> : () -> ()
    %cst_26 = arith.constant dense<0.000000e+00> : vector<32x8x8xf32>
    %83 = tpu.matmul %82, %65, %cst_26 {dimension_numbers = #tpu.dot_dimension_numbers<[2], [1], [1], [2], [0, 0, 0, 1, 1, 2], [0], [0]>} : vector<32x8x8xbf16>, vector<32x8x8xbf16>, vector<32x8x8xf32> -> vector<32x8x8xf32>
    "tpu.trace_stop"() : () -> ()
    %84 = vector.extract_strided_slice %83 {offsets = [0, 0, 0], sizes = [8, 8, 8], strides = [1, 1, 1]} : vector<32x8x8xf32> to vector<8x8x8xf32>
    %85 = vector.extract_strided_slice %83 {offsets = [8, 0, 0], sizes = [8, 8, 8], strides = [1, 1, 1]} : vector<32x8x8xf32> to vector<8x8x8xf32>
    %86 = vector.extract_strided_slice %83 {offsets = [16, 0, 0], sizes = [8, 8, 8], strides = [1, 1, 1]} : vector<32x8x8xf32> to vector<8x8x8xf32>
    %87 = vector.extract_strided_slice %83 {offsets = [24, 0, 0], sizes = [8, 8, 8], strides = [1, 1, 1]} : vector<32x8x8xf32> to vector<8x8x8xf32>
    %88 = tpu.concatenate %84, %85, %86, %87 in 2 : vector<8x8x8xf32>, vector<8x8x8xf32>, vector<8x8x8xf32>, vector<8x8x8xf32> -> vector<8x8x32xf32>
    %89 = vector.shape_cast %88 : vector<8x8x32xf32> to vector<64x32xf32>
    %90 = arith.truncf %89 : vector<64x32xf32> to vector<64x32xbf16>
    %c0_27 = arith.constant 0 : index
    %c0_28 = arith.constant 0 : index
    %c0_29 = arith.constant 0 : index
    %91 = vector.load %arg6[%c0_27, %c0_28, %c0_29] : memref<1x32x32xbf16, #tpu.memory_space<vmem>>, vector<1x32x32xbf16>
    %92 = vector.shape_cast %91 : vector<1x32x32xbf16> to vector<32x32xbf16>
    %cst_30 = arith.constant dense<0.000000e+00> : vector<64x32xf32>
    %93 = tpu.matmul %90, %92, %cst_30 {dimension_numbers = #tpu.dot_dimension_numbers<[1], [0], [0], [1], [0, 0, 1, 1], [], []>} : vector<64x32xbf16>, vector<32x32xbf16>, vector<64x32xf32> -> vector<64x32xf32>
    %c0_31 = arith.constant 0 : index
    %c0_32 = arith.constant 0 : index
    %c0_33 = arith.constant 0 : index
    %94 = vector.load %arg7[%c0_31, %c0_32, %c0_33] : memref<1x1x32xf32, #tpu.memory_space<vmem>>, vector<1x1x32xf32>
    %95 = vector.shape_cast %94 : vector<1x1x32xf32> to vector<1x32xf32>
    %96 = vector.broadcast %95 : vector<1x32xf32> to vector<64x32xf32>
    %97 = arith.addf %93, %96 : vector<64x32xf32>
    %98 = vector.shape_cast %97 : vector<64x32xf32> to vector<8x8x32xf32>
    %99 = arith.addf %3, %98 : vector<8x8x32xf32>
    %c0_34 = arith.constant 0 : index
    %c0_35 = arith.constant 0 : index
    %c0_36 = arith.constant 0 : index
    %100 = vector.load %arg8[%c0_34, %c0_35, %c0_36] : memref<1x1x32xf32, #tpu.memory_space<vmem>>, vector<1x1x32xf32>
    %101 = vector.shape_cast %100 : vector<1x1x32xf32> to vector<1x32xf32>
    %c0_37 = arith.constant 0 : index
    %c0_38 = arith.constant 0 : index
    %c0_39 = arith.constant 0 : index
    %102 = vector.load %arg9[%c0_37, %c0_38, %c0_39] : memref<1x1x32xf32, #tpu.memory_space<vmem>>, vector<1x1x32xf32>
    %103 = vector.shape_cast %102 : vector<1x1x32xf32> to vector<1x32xf32>
    %cst_40 = arith.constant dense<0.000000e+00> : vector<8x8xf32>
    %104 = vector.multi_reduction <add>, %99, %cst_40 [2] : vector<8x8x32xf32> to vector<8x8xf32>
    %105 = vector.shape_cast %104 : vector<8x8xf32> to vector<8x8x1xf32>
    %cst_41 = arith.constant 3.200000e+01 : f32
    %106 = vector.broadcast %cst_41 : f32 to vector<8x8x1xf32>
    %107 = arith.divf %105, %106 : vector<8x8x1xf32>
    %108 = vector.broadcast %107 : vector<8x8x1xf32> to vector<8x8x32xf32>
    %109 = arith.subf %99, %108 : vector<8x8x32xf32>
    %110 = arith.mulf %109, %109 : vector<8x8x32xf32>
    %cst_42 = arith.constant dense<0.000000e+00> : vector<8x8xf32>
    %111 = vector.multi_reduction <add>, %110, %cst_42 [2] : vector<8x8x32xf32> to vector<8x8xf32>
    %112 = vector.shape_cast %111 : vector<8x8xf32> to vector<8x8x1xf32>
    %cst_43 = arith.constant 3.200000e+01 : f32
    %113 = vector.broadcast %cst_43 : f32 to vector<8x8x1xf32>
    %114 = arith.divf %112, %113 : vector<8x8x1xf32>
    %115 = vector.broadcast %107 : vector<8x8x1xf32> to vector<8x8x32xf32>
    %116 = arith.subf %99, %115 : vector<8x8x32xf32>
    %cst_44 = arith.constant 9.99999974E-6 : f32
    %117 = vector.broadcast %cst_44 : f32 to vector<8x8x1xf32>
    %118 = arith.addf %114, %117 : vector<8x8x1xf32>
    %119 = math.rsqrt %118 : vector<8x8x1xf32>
    %120 = vector.broadcast %119 : vector<8x8x1xf32> to vector<8x8x32xf32>
    %121 = arith.mulf %116, %120 : vector<8x8x32xf32>
    %122 = vector.shape_cast %101 : vector<1x32xf32> to vector<1x1x32xf32>
    %123 = vector.broadcast %122 : vector<1x1x32xf32> to vector<8x8x32xf32>
    %124 = arith.mulf %121, %123 : vector<8x8x32xf32>
    %125 = vector.shape_cast %103 : vector<1x32xf32> to vector<1x1x32xf32>
    %126 = vector.broadcast %125 : vector<1x1x32xf32> to vector<8x8x32xf32>
    %127 = arith.addf %124, %126 : vector<8x8x32xf32>
    %128 = vector.shape_cast %127 : vector<8x8x32xf32> to vector<64x32xf32>
    %129 = arith.truncf %128 : vector<64x32xf32> to vector<64x32xbf16>
    %c0_45 = arith.constant 0 : index
    %c0_46 = arith.constant 0 : index
    %c0_47 = arith.constant 0 : index
    %130 = vector.load %arg10[%c0_45, %c0_46, %c0_47] : memref<1x32x64xbf16, #tpu.memory_space<vmem>>, vector<1x32x64xbf16>
    %131 = vector.shape_cast %130 : vector<1x32x64xbf16> to vector<32x64xbf16>
    %cst_48 = arith.constant dense<0.000000e+00> : vector<64x64xf32>
    %132 = tpu.matmul %129, %131, %cst_48 {dimension_numbers = #tpu.dot_dimension_numbers<[1], [0], [0], [1], [0, 0, 1, 1], [], []>} : vector<64x32xbf16>, vector<32x64xbf16>, vector<64x64xf32> -> vector<64x64xf32>
    %c0_49 = arith.constant 0 : index
    %c0_50 = arith.constant 0 : index
    %c0_51 = arith.constant 0 : index
    %133 = vector.load %arg11[%c0_49, %c0_50, %c0_51] : memref<1x1x64xf32, #tpu.memory_space<vmem>>, vector<1x1x64xf32>
    %134 = vector.shape_cast %133 : vector<1x1x64xf32> to vector<1x64xf32>
    %135 = vector.broadcast %134 : vector<1x64xf32> to vector<64x64xf32>
    %136 = arith.addf %132, %135 : vector<64x64xf32>
    %cst_52 = arith.constant 1.702000e+00 : f32
    %137 = vector.broadcast %cst_52 : f32 to vector<64x64xf32>
    %138 = arith.mulf %137, %136 : vector<64x64xf32>
    %139 = arith.negf %138 : vector<64x64xf32>
    %140 = math.exp %139 : vector<64x64xf32>
    %cst_53 = arith.constant 1.000000e+00 : f32
    %141 = vector.broadcast %cst_53 : f32 to vector<64x64xf32>
    %142 = arith.addf %141, %140 : vector<64x64xf32>
    %143 = arith.divf %141, %142 : vector<64x64xf32>
    %144 = arith.mulf %136, %143 : vector<64x64xf32>
    %145 = arith.truncf %144 : vector<64x64xf32> to vector<64x64xbf16>
    %c0_54 = arith.constant 0 : index
    %c0_55 = arith.constant 0 : index
    %c0_56 = arith.constant 0 : index
    %146 = vector.load %arg12[%c0_54, %c0_55, %c0_56] : memref<1x64x32xbf16, #tpu.memory_space<vmem>>, vector<1x64x32xbf16>
    %147 = vector.shape_cast %146 : vector<1x64x32xbf16> to vector<64x32xbf16>
    %cst_57 = arith.constant dense<0.000000e+00> : vector<64x32xf32>
    %148 = tpu.matmul %145, %147, %cst_57 {dimension_numbers = #tpu.dot_dimension_numbers<[1], [0], [0], [1], [0, 0, 1, 1], [], []>} : vector<64x64xbf16>, vector<64x32xbf16>, vector<64x32xf32> -> vector<64x32xf32>
    %c0_58 = arith.constant 0 : index
    %c0_59 = arith.constant 0 : index
    %c0_60 = arith.constant 0 : index
    %149 = vector.load %arg13[%c0_58, %c0_59, %c0_60] : memref<1x1x32xf32, #tpu.memory_space<vmem>>, vector<1x1x32xf32>
    %150 = vector.shape_cast %149 : vector<1x1x32xf32> to vector<1x32xf32>
    %151 = vector.broadcast %150 : vector<1x32xf32> to vector<64x32xf32>
    %152 = arith.addf %148, %151 : vector<64x32xf32>
    %153 = vector.shape_cast %152 : vector<64x32xf32> to vector<8x8x32xf32>
    %154 = arith.addf %99, %153 : vector<8x8x32xf32>
    %c0_61 = arith.constant 0 : index
    %c0_62 = arith.constant 0 : index
    %c0_63 = arith.constant 0 : index
    %155 = vector.load %arg18[%c0_61, %c0_62, %c0_63] : memref<8x8x32xf32, #tpu.memory_space<vmem>>, vector<8x8x32xf32>
    tpu.vector_store %arg18[%c0_61, %c0_62, %c0_63], %154 {strides = array<i32>} : memref<8x8x32xf32, #tpu.memory_space<vmem>>, vector<8x8x32xf32>,
    %c1_i32 = arith.constant 1 : i32
    %156 = arith.cmpi eq, %arg0, %c1_i32 : i32
    %157 = arith.extui %156 : i1 to i32
    %c0_i32_64 = arith.constant 0 : i32
    %158 = arith.cmpi ne, %157, %c0_i32_64 : i32
    scf.if %158 {
      %159 = vector.extract_strided_slice %154 {offsets = [0, 0, 0], sizes = [1, 8, 32], strides = [1, 1, 1]} : vector<8x8x32xf32> to vector<1x8x32xf32>
      %160 = vector.shape_cast %159 : vector<1x8x32xf32> to vector<8x32xf32>
      %c0_65 = arith.constant 0 : index
      %c0_66 = arith.constant 0 : index
      %161 = vector.load %arg14[%c0_65, %c0_66] : memref<1x32xf32, #tpu.memory_space<vmem>>, vector<1x32xf32>
      %c0_67 = arith.constant 0 : index
      %c0_68 = arith.constant 0 : index
      %162 = vector.load %arg15[%c0_67, %c0_68] : memref<1x32xf32, #tpu.memory_space<vmem>>, vector<1x32xf32>
      %cst_69 = arith.constant dense<0.000000e+00> : vector<8xf32>
      %163 = vector.multi_reduction <add>, %160, %cst_69 [1] : vector<8x32xf32> to vector<8xf32>
      %164 = vector.shape_cast %163 : vector<8xf32> to vector<8x1xf32>
      %cst_70 = arith.constant 3.200000e+01 : f32
      %165 = vector.broadcast %cst_70 : f32 to vector<8x1xf32>
      %166 = arith.divf %164, %165 : vector<8x1xf32>
      %167 = vector.broadcast %166 : vector<8x1xf32> to vector<8x32xf32>
      %168 = arith.subf %160, %167 : vector<8x32xf32>
      %169 = arith.mulf %168, %168 : vector<8x32xf32>
      %cst_71 = arith.constant dense<0.000000e+00> : vector<8xf32>
      %170 = vector.multi_reduction <add>, %169, %cst_71 [1] : vector<8x32xf32> to vector<8xf32>
      %171 = vector.shape_cast %170 : vector<8xf32> to vector<8x1xf32>
      %cst_72 = arith.constant 3.200000e+01 : f32
      %172 = vector.broadcast %cst_72 : f32 to vector<8x1xf32>
      %173 = arith.divf %171, %172 : vector<8x1xf32>
      %174 = vector.broadcast %166 : vector<8x1xf32> to vector<8x32xf32>
      %175 = arith.subf %160, %174 : vector<8x32xf32>
      %cst_73 = arith.constant 9.99999974E-6 : f32
      %176 = vector.broadcast %cst_73 : f32 to vector<8x1xf32>
      %177 = arith.addf %173, %176 : vector<8x1xf32>
      %178 = math.rsqrt %177 : vector<8x1xf32>
      %179 = vector.broadcast %178 : vector<8x1xf32> to vector<8x32xf32>
      %180 = arith.mulf %175, %179 : vector<8x32xf32>
      %181 = vector.broadcast %161 : vector<1x32xf32> to vector<8x32xf32>
      %182 = arith.mulf %180, %181 : vector<8x32xf32>
      %183 = vector.broadcast %162 : vector<1x32xf32> to vector<8x32xf32>
      %184 = arith.addf %182, %183 : vector<8x32xf32>
      %185 = arith.truncf %184 : vector<8x32xf32> to vector<8x32xbf16>
      %c0_74 = arith.constant 0 : index
      %c0_75 = arith.constant 0 : index
      %186 = vector.load %arg16[%c0_74, %c0_75] : memref<32x16xbf16, #tpu.memory_space<vmem>>, vector<32x16xbf16>
      %cst_76 = arith.constant dense<0.000000e+00> : vector<8x16xf32>
      %187 = tpu.matmul %185, %186, %cst_76 {dimension_numbers = #tpu.dot_dimension_numbers<[1], [0], [0], [1], [0, 0, 1, 1], [], []>} : vector<8x32xbf16>, vector<32x16xbf16>, vector<8x16xf32> -> vector<8x16xf32>
      %c0_77 = arith.constant 0 : index
      %c0_78 = arith.constant 0 : index
      %188 = vector.load %arg17[%c0_77, %c0_78] : memref<8x16xf32, #tpu.memory_space<vmem>>, vector<8x16xf32>
      tpu.vector_store %arg17[%c0_77, %c0_78], %187 {strides = array<i32>} : memref<8x16xf32, #tpu.memory_space<vmem>>, vector<8x16xf32>,
    } else {
    }
    return
  }
  func.func @transform_0(%arg0: i32) -> (i32, i32, i32) {
    %c0_i32 = arith.constant 0 : i32
    %c0_i32_0 = arith.constant 0 : i32
    %c0_i32_1 = arith.constant 0 : i32
    %c0_i32_2 = arith.constant 0 : i32
    return %c0_i32, %c0_i32_0, %c0_i32_1 : i32, i32, i32
  }
  func.func @transform_1(%arg0: i32) -> (i32, i32, i32) {
    %c0_i32 = arith.constant 0 : i32
    %c0_i32_0 = arith.constant 0 : i32
    %c0_i32_1 = arith.constant 0 : i32
    return %arg0, %c0_i32, %c0_i32_0 : i32, i32, i32
  }
  func.func @transform_2(%arg0: i32) -> (i32, i32, i32) {
    %c0_i32 = arith.constant 0 : i32
    %c0_i32_0 = arith.constant 0 : i32
    %c0_i32_1 = arith.constant 0 : i32
    return %arg0, %c0_i32, %c0_i32_0 : i32, i32, i32
  }
  func.func @transform_3(%arg0: i32) -> (i32, i32, i32) {
    %c0_i32 = arith.constant 0 : i32
    %c0_i32_0 = arith.constant 0 : i32
    %c0_i32_1 = arith.constant 0 : i32
    return %arg0, %c0_i32, %c0_i32_0 : i32, i32, i32
  }
  func.func @transform_4(%arg0: i32) -> (i32, i32, i32) {
    %c0_i32 = arith.constant 0 : i32
    %c0_i32_0 = arith.constant 0 : i32
    %c0_i32_1 = arith.constant 0 : i32
    return %arg0, %c0_i32, %c0_i32_0 : i32, i32, i32
  }
  func.func @transform_5(%arg0: i32) -> (i32, i32, i32) {
    %c0_i32 = arith.constant 0 : i32
    %c0_i32_0 = arith.constant 0 : i32
    %c0_i32_1 = arith.constant 0 : i32
    return %arg0, %c0_i32, %c0_i32_0 : i32, i32, i32
  }
  func.func @transform_6(%arg0: i32) -> (i32, i32, i32) {
    %c0_i32 = arith.constant 0 : i32
    %c0_i32_0 = arith.constant 0 : i32
    %c0_i32_1 = arith.constant 0 : i32
    return %arg0, %c0_i32, %c0_i32_0 : i32, i32, i32
  }
  func.func @transform_7(%arg0: i32) -> (i32, i32, i32) {
    %c0_i32 = arith.constant 0 : i32
    %c0_i32_0 = arith.constant 0 : i32
    %c0_i32_1 = arith.constant 0 : i32
    return %arg0, %c0_i32, %c0_i32_0 : i32, i32, i32
  }
  func.func @transform_8(%arg0: i32) -> (i32, i32, i32) {
    %c0_i32 = arith.constant 0 : i32
    %c0_i32_0 = arith.constant 0 : i32
    %c0_i32_1 = arith.constant 0 : i32
    return %arg0, %c0_i32, %c0_i32_0 : i32, i32, i32
  }
  func.func @transform_9(%arg0: i32) -> (i32, i32, i32) {
    %c0_i32 = arith.constant 0 : i32
    %c0_i32_0 = arith.constant 0 : i32
    %c0_i32_1 = arith.constant 0 : i32
    return %arg0, %c0_i32, %c0_i32_0 : i32, i32, i32
  }
  func.func @transform_10(%arg0: i32) -> (i32, i32, i32) {
    %c0_i32 = arith.constant 0 : i32
    %c0_i32_0 = arith.constant 0 : i32
    %c0_i32_1 = arith.constant 0 : i32
    return %arg0, %c0_i32, %c0_i32_0 : i32, i32, i32
  }
  func.func @transform_11(%arg0: i32) -> (i32, i32, i32) {
    %c0_i32 = arith.constant 0 : i32
    %c0_i32_0 = arith.constant 0 : i32
    %c0_i32_1 = arith.constant 0 : i32
    return %arg0, %c0_i32, %c0_i32_0 : i32, i32, i32
  }
  func.func @transform_12(%arg0: i32) -> (i32, i32, i32) {
    %c0_i32 = arith.constant 0 : i32
    %c0_i32_0 = arith.constant 0 : i32
    %c0_i32_1 = arith.constant 0 : i32
    return %arg0, %c0_i32, %c0_i32_0 : i32, i32, i32
  }
  func.func @transform_13(%arg0: i32) -> (i32, i32) {
    %c0_i32 = arith.constant 0 : i32
    %c0_i32_0 = arith.constant 0 : i32
    %c0_i32_1 = arith.constant 0 : i32
    return %c0_i32, %c0_i32_0 : i32, i32
  }
  func.func @transform_14(%arg0: i32) -> (i32, i32) {
    %c0_i32 = arith.constant 0 : i32
    %c0_i32_0 = arith.constant 0 : i32
    %c0_i32_1 = arith.constant 0 : i32
    return %c0_i32, %c0_i32_0 : i32, i32
  }
  func.func @transform_15(%arg0: i32) -> (i32, i32) {
    %c0_i32 = arith.constant 0 : i32
    %c0_i32_0 = arith.constant 0 : i32
    %c0_i32_1 = arith.constant 0 : i32
    return %c0_i32, %c0_i32_0 : i32, i32
  }
  func.func @transform_16(%arg0: i32) -> (i32, i32) {
    %c0_i32 = arith.constant 0 : i32
    %c0_i32_0 = arith.constant 0 : i32
    %c0_i32_1 = arith.constant 0 : i32
    return %c0_i32, %c0_i32_0 : i32, i32
  }
}

</mosaic_0001>

<llo_original>
// kernel: tpu_custom_call.1
$region0: #{tpu_custom_call.1}
  #allocation0 [shape = 'u32[]', space=smem, size = 0x4, offset = 0x4, fixed_abs, tag = 'smem constant byte address 0x4 - core index']
  #allocation1 [shape = 'u32[144,128]{1,0:T(1,128)}', space=vmem, size = 0x12000, scoped, tag = 'internal scratch']
  #allocation2 [shape = 'f32[8,8,32]{2,1,0:T(8,128)}', space=vmem, size = 0x8000, scoped, tag = 'scratch operand']
  %s0 = inlined_call_operand.vmem [shape: f32[8,8,32], index: 0, kind: input, shape index: {}]
  %s1 = inlined_call_operand.hbm [shape: f32[2,1,32], index: 1, kind: input, shape index: {}]
  %s2 = inlined_call_operand.hbm [shape: f32[2,1,32], index: 2, kind: input, shape index: {}]
  %s3 = inlined_call_operand.vmem [shape: bf16[2,32,96], index: 3, kind: input, shape index: {}]
  %s4 = inlined_call_operand.hbm [shape: f32[2,1,96], index: 4, kind: input, shape index: {}]
  %s5 = inlined_call_operand.vmem [shape: bf16[2,32,32], index: 5, kind: input, shape index: {}]
  %s6 = inlined_call_operand.hbm [shape: f32[2,1,32], index: 6, kind: input, shape index: {}]
  %s7 = inlined_call_operand.hbm [shape: f32[2,1,32], index: 7, kind: input, shape index: {}]
  %s8 = inlined_call_operand.hbm [shape: f32[2,1,32], index: 8, kind: input, shape index: {}]
  %s9 = inlined_call_operand.hbm [shape: bf16[2,32,64], index: 9, kind: input, shape index: {}]
  %s10 = inlined_call_operand.vmem [shape: f32[2,1,64], index: 10, kind: input, shape index: {}]
  %s11 = inlined_call_operand.vmem [shape: bf16[2,64,32], index: 11, kind: input, shape index: {}]
  %s12 = inlined_call_operand.vmem [shape: f32[2,1,32], index: 12, kind: input, shape index: {}]
  %s13 = inlined_call_operand.vmem [shape: f32[1,32], index: 13, kind: input, shape index: {}]
  %s14 = inlined_call_operand.vmem [shape: f32[1,32], index: 14, kind: input, shape index: {}]
  %s15 = inlined_call_operand.vmem [shape: bf16[32,16], index: 15, kind: input, shape index: {}]
  %s16 = inlined_call_operand.hbm [shape: f32[8,16], index: 16, kind: output, shape index: {}]
  %s17 = sld [smem:[#allocation0]]
  $region133: #{tpu_custom_call.1} parent=0
    _
  %s19 = ssub.s32 1, %s17
  %s20 = scalar_select 0, %s19, %s17
  $region1: #{tpu_custom_call.1} parent=0
    #allocation3 [shape = 'u8[1024]{0}', space=vmem, size = 0x400, scoped, tag = 'input window, operand 1']
    #allocation4 [shape = 's32[2]{0}', space=sflag, size = 0x8, scoped, tag = 'scoped memory for tpu_custom_call.1']
    #allocation5 [shape = 's32[2]{0}', space=sflag, size = 0x8, scoped, tag = 'scoped memory for tpu_custom_call.1']
    #allocation6 [shape = 'u8[1024]{0}', space=vmem, size = 0x400, scoped, tag = 'input window, operand 2']
    #allocation7 [shape = 's32[2]{0}', space=sflag, size = 0x8, scoped, tag = 'scoped memory for tpu_custom_call.1']
    #allocation8 [shape = 'u8[1024]{0}', space=vmem, size = 0x400, scoped, tag = 'input window, operand 4']
    #allocation9 [shape = 'u8[1024]{0}', space=vmem, size = 0x400, scoped, tag = 'input window, operand 6']
    #allocation10 [shape = 's32[2]{0}', space=sflag, size = 0x8, scoped, tag = 'scoped memory for tpu_custom_call.1']
    #allocation11 [shape = 'u8[1024]{0}', space=vmem, size = 0x400, scoped, tag = 'input window, operand 7']
    #allocation12 [shape = 'u8[1024]{0}', space=vmem, size = 0x400, scoped, tag = 'input window, operand 8']
    #allocation13 [shape = 's32[2]{0}', space=sflag, size = 0x8, scoped, tag = 'scoped memory for tpu_custom_call.1']
    #allocation14 [shape = 'u8[16384]{0}', space=vmem, size = 0x4000, scoped, tag = 'input window, operand 9']
    #allocation15 [shape = 'u8[4096]{0}', space=vmem, size = 0x1000, scoped, tag = 'output window, operand 0, single buffered']
    %21 = vsyncpa [#allocation4], 0
    %s22 = scalar_lea.sflag [#allocation4], 1
    %23 = vsyncpa %s22, 0
    %24 = vsyncpa [#allocation7], 0
    %s25 = scalar_lea.sflag [#allocation7], 1
    %26 = vsyncpa %s25, 0
    %27 = vsyncpa [#allocation10], 0
    %s28 = scalar_lea.sflag [#allocation10], 1
    %29 = vsyncpa %s28, 0
    %30 = vsyncpa [#allocation13], 0
    %s31 = scalar_lea.sflag [#allocation13], 1
    %32 = vsyncpa %s31, 0
    %33 = vsyncpa [#allocation5], 0
    loop: start=0, step=1, limit=4
    $region2: #{tpu_custom_call.1} parent=1 // loop_pre_header
      _
    $region3: #{tpu_custom_call.1} parent=1 // loop_header
      %s35 = sphi 0, %s39
      %p36 = scmp.ge.s32.totalorder %s35, 4
      %s43 = sphi 0, %s43
      %s45 = sphi 0, %s43
      %s46 = sphi 0, %s45
      %s60 = sphi 0, %s46
      %s66 = sphi 0, %s68
      %s69 = sphi 0, %s66
      %s70 = sphi 0, %s69
      %s86 = sphi 0, %s70
      %s92 = sphi 0, %s94
      %s95 = sphi 0, %s92
      %s96 = sphi 0, %s95
      %s112 = sphi 0, %s96
      %s118 = sphi 0, %s120
      %s121 = sphi 0, %s118
      %s122 = sphi 0, %s121
      %s138 = sphi 0, %s122
      %s144 = sphi 0, %s146
      %s147 = sphi 0, %s144
      %s148 = sphi 0, %s147
      %s164 = sphi 0, %s148
      %s170 = sphi 0, %s172
      %s173 = sphi 0, %s170
      %s174 = sphi 0, %s173
      %s190 = sphi 0, %s174
      %s196 = sphi 0, %s198
      %s199 = sphi 0, %s196
      %s200 = sphi 0, %s199
      %s216 = sphi 0, %s200
      %s222 = sphi 0, %s224
      %s225 = sphi 0, %s222
      %s226 = sphi 0, %s225
      %s242 = sphi 0, %s226
      %s248 = sphi 0, %s250
      %s251 = sphi 0, %s248
      %s252 = sphi 0, %s251
      %s268 = sphi 0, %s252
      %s274 = sphi 0, %s276
      %s277 = sphi 0, %s274
      %s278 = sphi 0, %s277
      %s294 = sphi 0, %s278
      %s300 = sphi 0, %s302
      %s303 = sphi 0, %s300
      %s304 = sphi 0, %s303
      %s320 = sphi 0, %s304
      %s326 = sphi 0, %s328
      %s329 = sphi 0, %s326
      %s330 = sphi 0, %s329
      %s346 = sphi 0, %s330
      %s352 = sphi 0, %s354
      %s355 = sphi 0, %s352
      %s356 = sphi 0, %s355
      %s372 = sphi 0, %s356
      %s376 = sphi 0, %s376
      %s378 = sphi 0, %s376
      %s379 = sphi 0, %s378
      %s393 = sphi 0, %s379
      %s397 = sphi 0, %s397
      %s399 = sphi 0, %s397
      %s400 = sphi 0, %s399
      %s414 = sphi 0, %s400
      %s418 = sphi 0, %s418
      %s420 = sphi 0, %s418
      %s421 = sphi 0, %s420
      %s435 = sphi 0, %s421
      %s439 = sphi 0, %s439
      %s441 = sphi 0, %s439
      %s442 = sphi 0, %s441
      %s456 = sphi 0, %s442
    $region4: #{tpu_custom_call.1} parent=1 // loop_header_branch
      %38 = sbr.rel (%p36) target = $region8
    $region5: #{tpu_custom_call.1} parent=1 // loop_body
      %s40 = ssub.s32 %s35, 1
      %s41 = ssub.s32 %s35, 2
      %s42 = sadd.s32 %s35, 1
      %s44 = sadd.s32 %s43, 1
      %p47 = scmp.eq.s32.totalorder %s35, 1
      %p48 = scmp.ne.s32.totalorder %s43, %s45
      %p49 = scmp.eq.s32.totalorder %s35, 0
      %p50 = por %p48, %p49
      %p51 = scmp.ne.s32.totalorder %s43, %s45
      %p52 = scmp.eq.s32.totalorder %s40, 1
      %p53 = por %p51, %p52
      %p54 = scmp.ne.s32.totalorder %s45, %s46
      %p55 = scmp.eq.s32.totalorder %s40, 0
      %p56 = por %p54, %p55
      %p57 = scmp.ne.s32.totalorder %s45, %s46
      %p58 = scmp.eq.s32.totalorder %s41, 1
      %p59 = por %p57, %p58
      %p61 = scmp.ne.s32.totalorder %s46, %s60
      %p62 = scmp.eq.s32.totalorder %s41, 0
      %p63 = por %p61, %p62
      %s64 = ssub.s32 %s35, %s42
      %p65 = scmp.eq.s32.totalorder %s64, 0
      %s67 = sadd.s32 %s66, 1
      %s68 = scalar_select %p65, %s66, %s67
      %p71 = pneg %p65
      %p72 = scmp.eq.s32.totalorder %s35, 1
      %p73 = por %p71, %p72
      %p74 = scmp.ne.s32.totalorder %s66, %s69
      %p75 = scmp.eq.s32.totalorder %s35, 0
      %p76 = por %p74, %p75
      %p77 = scmp.ne.s32.totalorder %s66, %s69
      %p78 = scmp.eq.s32.totalorder %s40, 1
      %p79 = por %p77, %p78
      %p80 = scmp.ne.s32.totalorder %s69, %s70
      %p81 = scmp.eq.s32.totalorder %s40, 0
      %p82 = por %p80, %p81
      %p83 = scmp.ne.s32.totalorder %s69, %s70
      %p84 = scmp.eq.s32.totalorder %s41, 1
      %p85 = por %p83, %p84
      %p87 = scmp.ne.s32.totalorder %s70, %s86
      %p88 = scmp.eq.s32.totalorder %s41, 0
      %p89 = por %p87, %p88
      %s90 = ssub.s32 %s35, %s42
      %p91 = scmp.eq.s32.totalorder %s90, 0
      %s93 = sadd.s32 %s92, 1
      %s94 = scalar_select %p91, %s92, %s93
      %p97 = pneg %p91
      %p98 = scmp.eq.s32.totalorder %s35, 1
      %p99 = por %p97, %p98
      %p100 = scmp.ne.s32.totalorder %s92, %s95
      %p101 = scmp.eq.s32.totalorder %s35, 0
      %p102 = por %p100, %p101
      %p103 = scmp.ne.s32.totalorder %s92, %s95
      %p104 = scmp.eq.s32.totalorder %s40, 1
      %p105 = por %p103, %p104
      %p106 = scmp.ne.s32.totalorder %s95, %s96
      %p107 = scmp.eq.s32.totalorder %s40, 0
      %p108 = por %p106, %p107
      %p109 = scmp.ne.s32.totalorder %s95, %s96
      %p110 = scmp.eq.s32.totalorder %s41, 1
      %p111 = por %p109, %p110
      %p113 = scmp.ne.s32.totalorder %s96, %s112
      %p114 = scmp.eq.s32.totalorder %s41, 0
      %p115 = por %p113, %p114
      %s116 = ssub.s32 %s35, %s42
      %p117 = scmp.eq.s32.totalorder %s116, 0
      %s119 = sadd.s32 %s118, 1
      %s120 = scalar_select %p117, %s118, %s119
      %p123 = pneg %p117
      %p124 = scmp.eq.s32.totalorder %s35, 1
      %p125 = por %p123, %p124
      %p126 = scmp.ne.s32.totalorder %s118, %s121
      %p127 = scmp.eq.s32.totalorder %s35, 0
      %p128 = por %p126, %p127
      %p129 = scmp.ne.s32.totalorder %s118, %s121
      %p130 = scmp.eq.s32.totalorder %s40, 1
      %p131 = por %p129, %p130
      %p132 = scmp.ne.s32.totalorder %s121, %s122
      %p133 = scmp.eq.s32.totalorder %s40, 0
      %p134 = por %p132, %p133
      %p135 = scmp.ne.s32.totalorder %s121, %s122
      %p136 = scmp.eq.s32.totalorder %s41, 1
      %p137 = por %p135, %p136
      %p139 = scmp.ne.s32.totalorder %s122, %s138
      %p140 = scmp.eq.s32.totalorder %s41, 0
      %p141 = por %p139, %p140
      %s142 = ssub.s32 %s35, %s42
      %p143 = scmp.eq.s32.totalorder %s142, 0
      %s145 = sadd.s32 %s144, 1
      %s146 = scalar_select %p143, %s144, %s145
      %p149 = pneg %p143
      %p150 = scmp.eq.s32.totalorder %s35, 1
      %p151 = por %p149, %p150
      %p152 = scmp.ne.s32.totalorder %s144, %s147
      %p153 = scmp.eq.s32.totalorder %s35, 0
      %p154 = por %p152, %p153
      %p155 = scmp.ne.s32.totalorder %s144, %s147
      %p156 = scmp.eq.s32.totalorder %s40, 1
      %p157 = por %p155, %p156
      %p158 = scmp.ne.s32.totalorder %s147, %s148
      %p159 = scmp.eq.s32.totalorder %s40, 0
      %p160 = por %p158, %p159
      %p161 = scmp.ne.s32.totalorder %s147, %s148
      %p162 = scmp.eq.s32.totalorder %s41, 1
      %p163 = por %p161, %p162
      %p165 = scmp.ne.s32.totalorder %s148, %s164
      %p166 = scmp.eq.s32.totalorder %s41, 0
      %p167 = por %p165, %p166
      %s168 = ssub.s32 %s35, %s42
      %p169 = scmp.eq.s32.totalorder %s168, 0
      %s171 = sadd.s32 %s170, 1
      %s172 = scalar_select %p169, %s170, %s171
      %p175 = pneg %p169
      %p176 = scmp.eq.s32.totalorder %s35, 1
      %p177 = por %p175, %p176
      %p178 = scmp.ne.s32.totalorder %s170, %s173
      %p179 = scmp.eq.s32.totalorder %s35, 0
      %p180 = por %p178, %p179
      %p181 = scmp.ne.s32.totalorder %s170, %s173
      %p182 = scmp.eq.s32.totalorder %s40, 1
      %p183 = por %p181, %p182
      %p184 = scmp.ne.s32.totalorder %s173, %s174
      %p185 = scmp.eq.s32.totalorder %s40, 0
      %p186 = por %p184, %p185
      %p187 = scmp.ne.s32.totalorder %s173, %s174
      %p188 = scmp.eq.s32.totalorder %s41, 1
      %p189 = por %p187, %p188
      %p191 = scmp.ne.s32.totalorder %s174, %s190
      %p192 = scmp.eq.s32.totalorder %s41, 0
      %p193 = por %p191, %p192
      %s194 = ssub.s32 %s35, %s42
      %p195 = scmp.eq.s32.totalorder %s194, 0
      %s197 = sadd.s32 %s196, 1
      %s198 = scalar_select %p195, %s196, %s197
      %p201 = pneg %p195
      %p202 = scmp.eq.s32.totalorder %s35, 1
      %p203 = por %p201, %p202
      %p204 = scmp.ne.s32.totalorder %s196, %s199
      %p205 = scmp.eq.s32.totalorder %s35, 0
      %p206 = por %p204, %p205
      %p207 = scmp.ne.s32.totalorder %s196, %s199
      %p208 = scmp.eq.s32.totalorder %s40, 1
      %p209 = por %p207, %p208
      %p210 = scmp.ne.s32.totalorder %s199, %s200
      %p211 = scmp.eq.s32.totalorder %s40, 0
      %p212 = por %p210, %p211
      %p213 = scmp.ne.s32.totalorder %s199, %s200
      %p214 = scmp.eq.s32.totalorder %s41, 1
      %p215 = por %p213, %p214
      %p217 = scmp.ne.s32.totalorder %s200, %s216
      %p218 = scmp.eq.s32.totalorder %s41, 0
      %p219 = por %p217, %p218
      %s220 = ssub.s32 %s35, %s42
      %p221 = scmp.eq.s32.totalorder %s220, 0
      %s223 = sadd.s32 %s222, 1
      %s224 = scalar_select %p221, %s222, %s223
      %p227 = pneg %p221
      %p228 = scmp.eq.s32.totalorder %s35, 1
      %p229 = por %p227, %p228
      %p230 = scmp.ne.s32.totalorder %s222, %s225
      %p231 = scmp.eq.s32.totalorder %s35, 0
      %p232 = por %p230, %p231
      %p233 = scmp.ne.s32.totalorder %s222, %s225
      %p234 = scmp.eq.s32.totalorder %s40, 1
      %p235 = por %p233, %p234
      %p236 = scmp.ne.s32.totalorder %s225, %s226
      %p237 = scmp.eq.s32.totalorder %s40, 0
      %p238 = por %p236, %p237
      %p239 = scmp.ne.s32.totalorder %s225, %s226
      %p240 = scmp.eq.s32.totalorder %s41, 1
      %p241 = por %p239, %p240
      %p243 = scmp.ne.s32.totalorder %s226, %s242
      %p244 = scmp.eq.s32.totalorder %s41, 0
      %p245 = por %p243, %p244
      %s246 = ssub.s32 %s35, %s42
      %p247 = scmp.eq.s32.totalorder %s246, 0
      %s249 = sadd.s32 %s248, 1
      %s250 = scalar_select %p247, %s248, %s249
      %p253 = pneg %p247
      %p254 = scmp.eq.s32.totalorder %s35, 1
      %p255 = por %p253, %p254
      %p256 = scmp.ne.s32.totalorder %s248, %s251
      %p257 = scmp.eq.s32.totalorder %s35, 0
      %p258 = por %p256, %p257
      %p259 = scmp.ne.s32.totalorder %s248, %s251
      %p260 = scmp.eq.s32.totalorder %s40, 1
      %p261 = por %p259, %p260
      %p262 = scmp.ne.s32.totalorder %s251, %s252
      %p263 = scmp.eq.s32.totalorder %s40, 0
      %p264 = por %p262, %p263
      %p265 = scmp.ne.s32.totalorder %s251, %s252
      %p266 = scmp.eq.s32.totalorder %s41, 1
      %p267 = por %p265, %p266
      %p269 = scmp.ne.s32.totalorder %s252, %s268
      %p270 = scmp.eq.s32.totalorder %s41, 0
      %p271 = por %p269, %p270
      %s272 = ssub.s32 %s35, %s42
      %p273 = scmp.eq.s32.totalorder %s272, 0
      %s275 = sadd.s32 %s274, 1
      %s276 = scalar_select %p273, %s274, %s275
      %p279 = pneg %p273
      %p280 = scmp.eq.s32.totalorder %s35, 1
      %p281 = por %p279, %p280
      %p282 = scmp.ne.s32.totalorder %s274, %s277
      %p283 = scmp.eq.s32.totalorder %s35, 0
      %p284 = por %p282, %p283
      %p285 = scmp.ne.s32.totalorder %s274, %s277
      %p286 = scmp.eq.s32.totalorder %s40, 1
      %p287 = por %p285, %p286
      %p288 = scmp.ne.s32.totalorder %s277, %s278
      %p289 = scmp.eq.s32.totalorder %s40, 0
      %p290 = por %p288, %p289
      %p291 = scmp.ne.s32.totalorder %s277, %s278
      %p292 = scmp.eq.s32.totalorder %s41, 1
      %p293 = por %p291, %p292
      %p295 = scmp.ne.s32.totalorder %s278, %s294
      %p296 = scmp.eq.s32.totalorder %s41, 0
      %p297 = por %p295, %p296
      %s298 = ssub.s32 %s35, %s42
      %p299 = scmp.eq.s32.totalorder %s298, 0
      %s301 = sadd.s32 %s300, 1
      %s302 = scalar_select %p299, %s300, %s301
      %p305 = pneg %p299
      %p306 = scmp.eq.s32.totalorder %s35, 1
      %p307 = por %p305, %p306
      %p308 = scmp.ne.s32.totalorder %s300, %s303
      %p309 = scmp.eq.s32.totalorder %s35, 0
      %p310 = por %p308, %p309
      %p311 = scmp.ne.s32.totalorder %s300, %s303
      %p312 = scmp.eq.s32.totalorder %s40, 1
      %p313 = por %p311, %p312
      %p314 = scmp.ne.s32.totalorder %s303, %s304
      %p315 = scmp.eq.s32.totalorder %s40, 0
      %p316 = por %p314, %p315
      %p317 = scmp.ne.s32.totalorder %s303, %s304
      %p318 = scmp.eq.s32.totalorder %s41, 1
      %p319 = por %p317, %p318
      %p321 = scmp.ne.s32.totalorder %s304, %s320
      %p322 = scmp.eq.s32.totalorder %s41, 0
      %p323 = por %p321, %p322
      %s324 = ssub.s32 %s35, %s42
      %p325 = scmp.eq.s32.totalorder %s324, 0
      %s327 = sadd.s32 %s326, 1
      %s328 = scalar_select %p325, %s326, %s327
      %p331 = pneg %p325
      %p332 = scmp.eq.s32.totalorder %s35, 1
      %p333 = por %p331, %p332
      %p334 = scmp.ne.s32.totalorder %s326, %s329
      %p335 = scmp.eq.s32.totalorder %s35, 0
      %p336 = por %p334, %p335
      %p337 = scmp.ne.s32.totalorder %s326, %s329
      %p338 = scmp.eq.s32.totalorder %s40, 1
      %p339 = por %p337, %p338
      %p340 = scmp.ne.s32.totalorder %s329, %s330
      %p341 = scmp.eq.s32.totalorder %s40, 0
      %p342 = por %p340, %p341
      %p343 = scmp.ne.s32.totalorder %s329, %s330
      %p344 = scmp.eq.s32.totalorder %s41, 1
      %p345 = por %p343, %p344
      %p347 = scmp.ne.s32.totalorder %s330, %s346
      %p348 = scmp.eq.s32.totalorder %s41, 0
      %p349 = por %p347, %p348
      %s350 = ssub.s32 %s35, %s42
      %p351 = scmp.eq.s32.totalorder %s350, 0
      %s353 = sadd.s32 %s352, 1
      %s354 = scalar_select %p351, %s352, %s353
      %p357 = pneg %p351
      %p358 = scmp.eq.s32.totalorder %s35, 1
      %p359 = por %p357, %p358
      %p360 = scmp.ne.s32.totalorder %s352, %s355
      %p361 = scmp.eq.s32.totalorder %s35, 0
      %p362 = por %p360, %p361
      %p363 = scmp.ne.s32.totalorder %s352, %s355
      %p364 = scmp.eq.s32.totalorder %s40, 1
      %p365 = por %p363, %p364
      %p366 = scmp.ne.s32.totalorder %s355, %s356
      %p367 = scmp.eq.s32.totalorder %s40, 0
      %p368 = por %p366, %p367
      %p369 = scmp.ne.s32.totalorder %s355, %s356
      %p370 = scmp.eq.s32.totalorder %s41, 1
      %p371 = por %p369, %p370
      %p373 = scmp.ne.s32.totalorder %s356, %s372
      %p374 = scmp.eq.s32.totalorder %s41, 0
      %p375 = por %p373, %p374
      %s377 = sadd.s32 %s376, 1
      %p380 = scmp.eq.s32.totalorder %s35, 1
      %p381 = scmp.ne.s32.totalorder %s376, %s378
      %p382 = scmp.eq.s32.totalorder %s35, 0
      %p383 = por %p381, %p382
      %p384 = scmp.ne.s32.totalorder %s376, %s378
      %p385 = scmp.eq.s32.totalorder %s40, 1
      %p386 = por %p384, %p385
      %p387 = scmp.ne.s32.totalorder %s378, %s379
      %p388 = scmp.eq.s32.totalorder %s40, 0
      %p389 = por %p387, %p388
      %p390 = scmp.ne.s32.totalorder %s378, %s379
      %p391 = scmp.eq.s32.totalorder %s41, 1
      %p392 = por %p390, %p391
      %p394 = scmp.ne.s32.totalorder %s379, %s393
      %p395 = scmp.eq.s32.totalorder %s41, 0
      %p396 = por %p394, %p395
      %s398 = sadd.s32 %s397, 1
      %p401 = scmp.eq.s32.totalorder %s35, 1
      %p402 = scmp.ne.s32.totalorder %s397, %s399
      %p403 = scmp.eq.s32.totalorder %s35, 0
      %p404 = por %p402, %p403
      %p405 = scmp.ne.s32.totalorder %s397, %s399
      %p406 = scmp.eq.s32.totalorder %s40, 1
      %p407 = por %p405, %p406
      %p408 = scmp.ne.s32.totalorder %s399, %s400
      %p409 = scmp.eq.s32.totalorder %s40, 0
      %p410 = por %p408, %p409
      %p411 = scmp.ne.s32.totalorder %s399, %s400
      %p412 = scmp.eq.s32.totalorder %s41, 1
      %p413 = por %p411, %p412
      %p415 = scmp.ne.s32.totalorder %s400, %s414
      %p416 = scmp.eq.s32.totalorder %s41, 0
      %p417 = por %p415, %p416
      %s419 = sadd.s32 %s418, 1
      %p422 = scmp.eq.s32.totalorder %s35, 1
      %p423 = scmp.ne.s32.totalorder %s418, %s420
      %p424 = scmp.eq.s32.totalorder %s35, 0
      %p425 = por %p423, %p424
      %p426 = scmp.ne.s32.totalorder %s418, %s420
      %p427 = scmp.eq.s32.totalorder %s40, 1
      %p428 = por %p426, %p427
      %p429 = scmp.ne.s32.totalorder %s420, %s421
      %p430 = scmp.eq.s32.totalorder %s40, 0
      %p431 = por %p429, %p430
      %p432 = scmp.ne.s32.totalorder %s420, %s421
      %p433 = scmp.eq.s32.totalorder %s41, 1
      %p434 = por %p432, %p433
      %p436 = scmp.ne.s32.totalorder %s421, %s435
      %p437 = scmp.eq.s32.totalorder %s41, 0
      %p438 = por %p436, %p437
      %s440 = sadd.s32 %s439, 1
      %p443 = scmp.eq.s32.totalorder %s35, 1
      %p444 = scmp.ne.s32.totalorder %s439, %s441
      %p445 = scmp.eq.s32.totalorder %s35, 0
      %p446 = por %p444, %p445
      %p447 = scmp.ne.s32.totalorder %s439, %s441
      %p448 = scmp.eq.s32.totalorder %s40, 1
      %p449 = por %p447, %p448
      %p450 = scmp.ne.s32.totalorder %s441, %s442
      %p451 = scmp.eq.s32.totalorder %s40, 0
      %p452 = por %p450, %p451
      %p453 = scmp.ne.s32.totalorder %s441, %s442
      %p454 = scmp.eq.s32.totalorder %s41, 1
      %p455 = por %p453, %p454
      %p457 = scmp.ne.s32.totalorder %s442, %s456
      %p458 = scmp.eq.s32.totalorder %s41, 0
      %p459 = por %p457, %p458
      %p460 = scmp.le.s32.totalorder 1, %s35
      %p461 = scmp.lt.s32.totalorder %s35, 3
      %p462 = pnand %p460, %p461
      %p463 = pneg %p462
      // Predicated region
      $region9: #{tpu_custom_call.1} parent=5 // pred_check
        _
      $region10: #{tpu_custom_call.1} parent=5 // pred_check_branch
        %465 = sbr.rel (%p462) target = $region12
      $region11: #{tpu_custom_call.1} parent=5 // pred_region
        %s466 = ssub.s32 %s35, 1
        // Predicated region
        $region13: #{tpu_custom_call.1} parent=11 // pred_check
          %p467 = pneg %p56
        $region14: #{tpu_custom_call.1} parent=11 // pred_check_branch
          %469 = sbr.rel (%p467) target = $region16
        $region15: #{tpu_custom_call.1} parent=11 // pred_region
          _
        $region16: #{tpu_custom_call.1} parent=11 // pred_fallthru
          _
        // Predicated region
        $region17: #{tpu_custom_call.1} parent=11 // pred_check
          %p470 = pneg %p389
        $region18: #{tpu_custom_call.1} parent=11 // pred_check_branch
          %472 = sbr.rel (%p470) target = $region20
        $region19: #{tpu_custom_call.1} parent=11 // pred_region
          _
        $region20: #{tpu_custom_call.1} parent=11 // pred_fallthru
          _
        // Predicated region
        $region21: #{tpu_custom_call.1} parent=11 // pred_check
          %p473 = pneg %p410
        $region22: #{tpu_custom_call.1} parent=11 // pred_check_branch
          %475 = sbr.rel (%p473) target = $region24
        $region23: #{tpu_custom_call.1} parent=11 // pred_region
          _
        $region24: #{tpu_custom_call.1} parent=11 // pred_fallthru
          _
        // Predicated region
        $region25: #{tpu_custom_call.1} parent=11 // pred_check
          %p476 = pneg %p431
        $region26: #{tpu_custom_call.1} parent=11 // pred_check_branch
          %478 = sbr.rel (%p476) target = $region28
        $region27: #{tpu_custom_call.1} parent=11 // pred_region
          _
        $region28: #{tpu_custom_call.1} parent=11 // pred_fallthru
          _
      $region12: #{tpu_custom_call.1} parent=5 // pred_fallthru
        _
      %p479 = scmp.lt.s32.totalorder %s35, 2
      // Predicated region
      $region29: #{tpu_custom_call.1} parent=5 // pred_check
        %p480 = pneg %p479
      $region30: #{tpu_custom_call.1} parent=5 // pred_check_branch
        %482 = sbr.rel (%p480) target = $region32
      $region31: #{tpu_custom_call.1} parent=5 // pred_region
        // Predicated region
        $region33: #{tpu_custom_call.1} parent=31 // pred_check
          %p483 = pneg %p76
        $region34: #{tpu_custom_call.1} parent=31 // pred_check_branch
          %485 = sbr.rel (%p483) target = $region36
        $region35: #{tpu_custom_call.1} parent=31 // pred_region
          %s486 = sand.u32 %s66, 1
          %s487 = scalar_lea.sflag [#allocation4], %s486
          %s488 = sand.u32 %s66, 1
          %s489 = scalar_lea.vmem [#allocation3], %s488
          %s491 = ssub.s32 16, 16
          %492 = vsyncadd %s487, %s491
          %s493 = smul.addr %s35, 16
          %s494 = scalar_lea.hbm %s1, %s493
          %s496 = sshll.u32 %s489, 4
          %s497 = int_to_ptr.vmem [resolvable:$true] %s496
          %499 = dma.hbm_to_vmem [thread:$0]  %s494, 16, %s497, %s487
        $region36: #{tpu_custom_call.1} parent=31 // pred_fallthru
          _
        // Predicated region
        $region37: #{tpu_custom_call.1} parent=31 // pred_check
          %p500 = pneg %p102
        $region38: #{tpu_custom_call.1} parent=31 // pred_check_branch
          %502 = sbr.rel (%p500) target = $region40
        $region39: #{tpu_custom_call.1} parent=31 // pred_region
          %s503 = sand.u32 %s35, 1
          %s504 = scalar_lea.sflag [#allocation7], %s503
          %s505 = sand.u32 %s92, 1
          %s506 = scalar_lea.vmem [#allocation6], %s505
          %s508 = ssub.s32 16, 16
          %509 = vsyncadd %s504, %s508
          %s510 = smul.addr %s35, 16
          %s511 = scalar_lea.hbm %s2, %s510
          %s513 = sshll.u32 %s506, 4
          %s514 = int_to_ptr.vmem [resolvable:$true] %s513
          %516 = dma.hbm_to_vmem [thread:$0]  %s511, 16, %s514, %s504
        $region40: #{tpu_custom_call.1} parent=31 // pred_fallthru
          _
        // Predicated region
        $region41: #{tpu_custom_call.1} parent=31 // pred_check
          %p517 = pneg %p128
        $region42: #{tpu_custom_call.1} parent=31 // pred_check_branch
          %519 = sbr.rel (%p517) target = $region44
        $region43: #{tpu_custom_call.1} parent=31 // pred_region
          %p520 = scmp.lt.s32.totalorder %s35, 1
          %s521 = scalar_select %p520, %s35, 1
          %s522 = smul.addr %s521, 4
          %s523 = smul.addr %s522, 4
          %s524 = scalar_lea.vmem %s3, %s523
        $region44: #{tpu_custom_call.1} parent=31 // pred_fallthru
          _
        // Predicated region
        $region45: #{tpu_custom_call.1} parent=31 // pred_check
          %p525 = pneg %p154
        $region46: #{tpu_custom_call.1} parent=31 // pred_check_branch
          %527 = sbr.rel (%p525) target = $region48
        $region47: #{tpu_custom_call.1} parent=31 // pred_region
          %s528 = sand.u32 %s35, 1
          %s529 = scalar_lea.sflag [#allocation7], %s528
          %s530 = sand.u32 %s144, 1
          %s531 = scalar_lea.vmem [#allocation8], %s530
          %s533 = ssub.s32 16, 16
          %534 = vsyncadd %s529, %s533
          %s535 = smul.addr %s35, 16
          %s536 = scalar_lea.hbm %s4, %s535
          %s538 = sshll.u32 %s531, 4
          %s539 = int_to_ptr.vmem [resolvable:$true] %s538
          %541 = dma.hbm_to_vmem [thread:$0]  %s536, 16, %s539, %s529
        $region48: #{tpu_custom_call.1} parent=31 // pred_fallthru
          _
        // Predicated region
        $region49: #{tpu_custom_call.1} parent=31 // pred_check
          %p542 = pneg %p180
        $region50: #{tpu_custom_call.1} parent=31 // pred_check_branch
          %544 = sbr.rel (%p542) target = $region52
        $region51: #{tpu_custom_call.1} parent=31 // pred_region
          %p545 = scmp.lt.s32.totalorder %s35, 1
          %s546 = scalar_select %p545, %s35, 1
          %s547 = smul.addr %s546, 4
          %s548 = smul.addr %s547, 4
          %s549 = scalar_lea.vmem %s5, %s548
        $region52: #{tpu_custom_call.1} parent=31 // pred_fallthru
          _
        // Predicated region
        $region53: #{tpu_custom_call.1} parent=31 // pred_check
          %p550 = pneg %p206
        $region54: #{tpu_custom_call.1} parent=31 // pred_check_branch
          %552 = sbr.rel (%p550) target = $region56
        $region55: #{tpu_custom_call.1} parent=31 // pred_region
          %s553 = sand.u32 %s35, 1
          %s554 = scalar_lea.sflag [#allocation10], %s553
          %s555 = sand.u32 %s196, 1
          %s556 = scalar_lea.vmem [#allocation9], %s555
          %s558 = ssub.s32 16, 16
          %559 = vsyncadd %s554, %s558
          %s560 = smul.addr %s35, 16
          %s561 = scalar_lea.hbm %s6, %s560
          %s563 = sshll.u32 %s556, 4
          %s564 = int_to_ptr.vmem [resolvable:$true] %s563
          %566 = dma.hbm_to_vmem [thread:$0]  %s561, 16, %s564, %s554
        $region56: #{tpu_custom_call.1} parent=31 // pred_fallthru
          _
        // Predicated region
        $region57: #{tpu_custom_call.1} parent=31 // pred_check
          %p567 = pneg %p232
        $region58: #{tpu_custom_call.1} parent=31 // pred_check_branch
          %569 = sbr.rel (%p567) target = $region60
        $region59: #{tpu_custom_call.1} parent=31 // pred_region
          %s570 = sand.u32 %s35, 1
          %s571 = scalar_lea.sflag [#allocation10], %s570
          %s572 = sand.u32 %s222, 1
          %s573 = scalar_lea.vmem [#allocation11], %s572
          %s575 = ssub.s32 16, 16
          %576 = vsyncadd %s571, %s575
          %s577 = smul.addr %s35, 16
          %s578 = scalar_lea.hbm %s7, %s577
          %s580 = sshll.u32 %s573, 4
          %s581 = int_to_ptr.vmem [resolvable:$true] %s580
          %583 = dma.hbm_to_vmem [thread:$0]  %s578, 16, %s581, %s571
        $region60: #{tpu_custom_call.1} parent=31 // pred_fallthru
          _
        // Predicated region
        $region61: #{tpu_custom_call.1} parent=31 // pred_check
          %p584 = pneg %p258
        $region62: #{tpu_custom_call.1} parent=31 // pred_check_branch
          %586 = sbr.rel (%p584) target = $region64
        $region63: #{tpu_custom_call.1} parent=31 // pred_region
          %s587 = sand.u32 %s35, 1
          %s588 = scalar_lea.sflag [#allocation13], %s587
          %s589 = sand.u32 %s248, 1
          %s590 = scalar_lea.vmem [#allocation12], %s589
          %s592 = ssub.s32 16, 16
          %593 = vsyncadd %s588, %s592
          %s594 = smul.addr %s35, 16
          %s595 = scalar_lea.hbm %s8, %s594
          %s597 = sshll.u32 %s590, 4
          %s598 = int_to_ptr.vmem [resolvable:$true] %s597
          %600 = dma.hbm_to_vmem [thread:$0]  %s595, 16, %s598, %s588
        $region64: #{tpu_custom_call.1} parent=31 // pred_fallthru
          _
        // Predicated region
        $region65: #{tpu_custom_call.1} parent=31 // pred_check
          %p601 = pneg %p284
        $region66: #{tpu_custom_call.1} parent=31 // pred_check_branch
          %603 = sbr.rel (%p601) target = $region68
        $region67: #{tpu_custom_call.1} parent=31 // pred_region
          %s604 = sand.u32 %s35, 1
          %s605 = scalar_lea.sflag [#allocation13], %s604
          %s606 = sand.u32 %s274, 1
          %s607 = smul.addr %s606, 16
          %s608 = scalar_lea.vmem [#allocation14], %s607
          %s610 = ssub.s32 256, 256
          %611 = vsyncadd %s605, %s610
          %s612 = smul.addr %s35, 4
          %s613 = smul.addr %s612, 64
          %s614 = scalar_lea.hbm %s9, %s613
          %s615 = sshll.u32 %s608, 4
          %s616 = int_to_ptr.vmem [resolvable:$true] %s615
          %621 = dma.hbm_to_vmem [thread:$0]  %s614, 256, %s616, %s605, 64, 64, 4
        $region68: #{tpu_custom_call.1} parent=31 // pred_fallthru
          _
        // Predicated region
        $region69: #{tpu_custom_call.1} parent=31 // pred_check
          %p622 = pneg %p310
        $region70: #{tpu_custom_call.1} parent=31 // pred_check_branch
          %624 = sbr.rel (%p622) target = $region72
        $region71: #{tpu_custom_call.1} parent=31 // pred_region
          %p625 = scmp.lt.s32.totalorder %s35, 1
          %s626 = scalar_select %p625, %s35, 1
          %s627 = scalar_lea.vmem %s10, %s626
        $region72: #{tpu_custom_call.1} parent=31 // pred_fallthru
          _
        // Predicated region
        $region73: #{tpu_custom_call.1} parent=31 // pred_check
          %p628 = pneg %p336
        $region74: #{tpu_custom_call.1} parent=31 // pred_check_branch
          %630 = sbr.rel (%p628) target = $region76
        $region75: #{tpu_custom_call.1} parent=31 // pred_region
          %p631 = scmp.lt.s32.totalorder %s35, 1
          %s632 = scalar_select %p631, %s35, 1
          %s633 = smul.addr %s632, 8
          %s634 = smul.addr %s633, 4
          %s635 = scalar_lea.vmem %s11, %s634
        $region76: #{tpu_custom_call.1} parent=31 // pred_fallthru
          _
        // Predicated region
        $region77: #{tpu_custom_call.1} parent=31 // pred_check
          %p636 = pneg %p362
        $region78: #{tpu_custom_call.1} parent=31 // pred_check_branch
          %638 = sbr.rel (%p636) target = $region80
        $region79: #{tpu_custom_call.1} parent=31 // pred_region
          %p639 = scmp.lt.s32.totalorder %s35, 1
          %s640 = scalar_select %p639, %s35, 1
          %s641 = scalar_lea.vmem %s12, %s640
        $region80: #{tpu_custom_call.1} parent=31 // pred_fallthru
          _
      $region32: #{tpu_custom_call.1} parent=5 // pred_fallthru
        _
      %p642 = scmp.le.s32.totalorder 1, %s35
      %p643 = scmp.lt.s32.totalorder %s35, 3
      %p644 = pnand %p642, %p643
      %p645 = pneg %p644
      // Predicated region
      $region81: #{tpu_custom_call.1} parent=5 // pred_check
        _
      $region82: #{tpu_custom_call.1} parent=5 // pred_check_branch
        %647 = sbr.rel (%p644) target = $region84
      $region83: #{tpu_custom_call.1} parent=5 // pred_region
        %s648 = ssub.s32 %s35, 1
        %s649 = sand.u32 %s69, 1
        %s650 = scalar_lea.sflag [#allocation4], %s649
        %s651 = sand.u32 %s69, 1
        %s652 = scalar_lea.vmem [#allocation3], %s651
        // Predicated region
        $region85: #{tpu_custom_call.1} parent=83 // pred_check
          %p653 = pneg %p82
        $region86: #{tpu_custom_call.1} parent=83 // pred_check_branch
          %655 = sbr.rel (%p653) target = $region88
        $region87: #{tpu_custom_call.1} parent=83 // pred_region
          %656 = dma.done %s650, 16
        $region88: #{tpu_custom_call.1} parent=83 // pred_fallthru
          _
        %s657 = sand.u32 %s40, 1
        %s658 = scalar_lea.sflag [#allocation7], %s657
        %s659 = sand.u32 %s95, 1
        %s660 = scalar_lea.vmem [#allocation6], %s659
        // Predicated region
        $region89: #{tpu_custom_call.1} parent=83 // pred_check
          %p661 = pneg %p108
        $region90: #{tpu_custom_call.1} parent=83 // pred_check_branch
          %663 = sbr.rel (%p661) target = $region92
        $region91: #{tpu_custom_call.1} parent=83 // pred_region
          %664 = dma.done %s658, 16
        $region92: #{tpu_custom_call.1} parent=83 // pred_fallthru
          _
        %s665 = sand.u32 %s40, 1
        %s666 = scalar_lea.sflag [#allocation7], %s665
        %s667 = sand.u32 %s147, 1
        %s668 = scalar_lea.vmem [#allocation8], %s667
        // Predicated region
        $region93: #{tpu_custom_call.1} parent=83 // pred_check
          %p669 = pneg %p160
        $region94: #{tpu_custom_call.1} parent=83 // pred_check_branch
          %671 = sbr.rel (%p669) target = $region96
        $region95: #{tpu_custom_call.1} parent=83 // pred_region
          %672 = dma.done %s666, 16
        $region96: #{tpu_custom_call.1} parent=83 // pred_fallthru
          _
        %s673 = sand.u32 %s40, 1
        %s674 = scalar_lea.sflag [#allocation10], %s673
        %s675 = sand.u32 %s199, 1
        %s676 = scalar_lea.vmem [#allocation9], %s675
        // Predicated region
        $region97: #{tpu_custom_call.1} parent=83 // pred_check
          %p677 = pneg %p212
        $region98: #{tpu_custom_call.1} parent=83 // pred_check_branch
          %679 = sbr.rel (%p677) target = $region100
        $region99: #{tpu_custom_call.1} parent=83 // pred_region
          %680 = dma.done %s674, 16
        $region100: #{tpu_custom_call.1} parent=83 // pred_fallthru
          _
        %s681 = sand.u32 %s40, 1
        %s682 = scalar_lea.sflag [#allocation10], %s681
        %s683 = sand.u32 %s225, 1
        %s684 = scalar_lea.vmem [#allocation11], %s683
        // Predicated region
        $region101: #{tpu_custom_call.1} parent=83 // pred_check
          %p685 = pneg %p238
        $region102: #{tpu_custom_call.1} parent=83 // pred_check_branch
          %687 = sbr.rel (%p685) target = $region104
        $region103: #{tpu_custom_call.1} parent=83 // pred_region
          %688 = dma.done %s682, 16
        $region104: #{tpu_custom_call.1} parent=83 // pred_fallthru
          _
        %s689 = sand.u32 %s40, 1
        %s690 = scalar_lea.sflag [#allocation13], %s689
        %s691 = sand.u32 %s251, 1
        %s692 = scalar_lea.vmem [#allocation12], %s691
        // Predicated region
        $region105: #{tpu_custom_call.1} parent=83 // pred_check
          %p693 = pneg %p264
        $region106: #{tpu_custom_call.1} parent=83 // pred_check_branch
          %695 = sbr.rel (%p693) target = $region108
        $region107: #{tpu_custom_call.1} parent=83 // pred_region
          %696 = dma.done %s690, 16
        $region108: #{tpu_custom_call.1} parent=83 // pred_fallthru
          _
        %s697 = sand.u32 %s40, 1
        %s698 = scalar_lea.sflag [#allocation13], %s697
        %s699 = sand.u32 %s277, 1
        %s700 = smul.addr %s699, 16
        %s701 = scalar_lea.vmem [#allocation14], %s700
        // Predicated region
        $region109: #{tpu_custom_call.1} parent=83 // pred_check
          %p702 = pneg %p290
        $region110: #{tpu_custom_call.1} parent=83 // pred_check_branch
          %704 = sbr.rel (%p702) target = $region112
        $region111: #{tpu_custom_call.1} parent=83 // pred_region
          %705 = dma.done %s698, 256
        $region112: #{tpu_custom_call.1} parent=83 // pred_fallthru
          _
        %p706 = pneg %p56
        %p707 = pneg %p53
        %s708 = sand.u32 %s69, 1
        %s709 = scalar_lea.sflag [#allocation4], %s708
        %s710 = sand.u32 %s69, 1
        %s711 = scalar_lea.vmem [#allocation3], %s710
        %p712 = pneg %p82
        %p713 = pneg %p79
        %s714 = sand.u32 %s40, 1
        %s715 = scalar_lea.sflag [#allocation7], %s714
        %s716 = sand.u32 %s95, 1
        %s717 = scalar_lea.vmem [#allocation6], %s716
        %p718 = pneg %p108
        %p719 = pneg %p105
        %p720 = scmp.lt.s32.totalorder %s40, 1
        %s721 = scalar_select %p720, %s40, 1
        %s722 = smul.addr %s721, 4
        %s723 = smul.addr %s722, 4
        %s724 = scalar_lea.vmem %s3, %s723
        %p725 = pneg %p134
        %p726 = pneg %p131
        %s727 = sand.u32 %s40, 1
        %s728 = scalar_lea.sflag [#allocation7], %s727
        %s729 = sand.u32 %s147, 1
        %s730 = scalar_lea.vmem [#allocation8], %s729
        %p731 = pneg %p160
        %p732 = pneg %p157
        %p733 = scmp.lt.s32.totalorder %s40, 1
        %s734 = scalar_select %p733, %s40, 1
        %s735 = smul.addr %s734, 4
        %s736 = smul.addr %s735, 4
        %s737 = scalar_lea.vmem %s5, %s736
        %p738 = pneg %p186
        %p739 = pneg %p183
        %s740 = sand.u32 %s40, 1
        %s741 = scalar_lea.sflag [#allocation10], %s740
        %s742 = sand.u32 %s199, 1
        %s743 = scalar_lea.vmem [#allocation9], %s742
        %p744 = pneg %p212
        %p745 = pneg %p209
        %s746 = sand.u32 %s40, 1
        %s747 = scalar_lea.sflag [#allocation10], %s746
        %s748 = sand.u32 %s225, 1
        %s749 = scalar_lea.vmem [#allocation11], %s748
        %p750 = pneg %p238
        %p751 = pneg %p235
        %s752 = sand.u32 %s40, 1
        %s753 = scalar_lea.sflag [#allocation13], %s752
        %s754 = sand.u32 %s251, 1
        %s755 = scalar_lea.vmem [#allocation12], %s754
        %p756 = pneg %p264
        %p757 = pneg %p261
        %s758 = sand.u32 %s40, 1
        %s759 = scalar_lea.sflag [#allocation13], %s758
        %s760 = sand.u32 %s277, 1
        %s761 = smul.addr %s760, 16
        %s762 = scalar_lea.vmem [#allocation14], %s761
        %p763 = pneg %p290
        %p764 = pneg %p287
        %p765 = scmp.lt.s32.totalorder %s40, 1
        %s766 = scalar_select %p765, %s40, 1
        %s767 = scalar_lea.vmem %s10, %s766
        %p768 = pneg %p316
        %p769 = pneg %p313
        %p770 = scmp.lt.s32.totalorder %s40, 1
        %s771 = scalar_select %p770, %s40, 1
        %s772 = smul.addr %s771, 8
        %s773 = smul.addr %s772, 4
        %s774 = scalar_lea.vmem %s11, %s773
        %p775 = pneg %p342
        %p776 = pneg %p339
        %p777 = scmp.lt.s32.totalorder %s40, 1
        %s778 = scalar_select %p777, %s40, 1
        %s779 = scalar_lea.vmem %s12, %s778
        %p780 = pneg %p368
        %p781 = pneg %p365
        %p782 = pneg %p389
        %p783 = pneg %p386
        %p784 = pneg %p410
        %p785 = pneg %p407
        %p786 = pneg %p431
        %p787 = pneg %p428
        %p788 = pneg %p452
        %p789 = pneg %p449
        %p790 = scmp.lt.s32.totalorder %s40, 1
        %s791 = scalar_select %p790, %s40, 1
        %s792 = smul.addr %s791, 4
        %s793 = smul.addr %s792, 4
        %s794 = scalar_lea.vmem %s3, %s793
        %p795 = scmp.lt.s32.totalorder %s40, 1
        %s796 = scalar_select %p795, %s40, 1
        %s797 = smul.addr %s796, 4
        %s798 = smul.addr %s797, 4
        %s799 = scalar_lea.vmem %s5, %s798
        %p800 = scmp.lt.s32.totalorder %s40, 1
        %s801 = scalar_select %p800, %s40, 1
        %s802 = scalar_lea.vmem %s10, %s801
        %p803 = scmp.lt.s32.totalorder %s40, 1
        %s804 = scalar_select %p803, %s40, 1
        %s805 = smul.addr %s804, 8
        %s806 = smul.addr %s805, 4
        %s807 = scalar_lea.vmem %s11, %s806
        %p808 = scmp.lt.s32.totalorder %s40, 1
        %s809 = scalar_select %p808, %s40, 1
        %s810 = scalar_lea.vmem %s12, %s809
        %p812 = scmp.eq.s32.totalorder %s40, 0
        // Predicated region
        $region113: #{tpu_custom_call.1} parent=83 // pred_check
          %p813 = pneg %p812
        $region114: #{tpu_custom_call.1} parent=83 // pred_check_branch
          %815 = sbr.rel (%p813) target = $region116
        $region115: #{tpu_custom_call.1} parent=83 // pred_region
          %v816 = vld [vmem:[%s0] sm:$0xff]
          %v817 = vld [vmem:[%s0 + $0x8] sm:$0xff]
          %v818 = vld [vmem:[%s0 + $0x10] sm:$0xff]
          %v819 = vld [vmem:[%s0 + $0x18] sm:$0xff]
          %v820 = vld [vmem:[%s0 + $0x20] sm:$0xff]
          %v821 = vld [vmem:[%s0 + $0x28] sm:$0xff]
          %v822 = vld [vmem:[%s0 + $0x30] sm:$0xff]
          %v823 = vld [vmem:[%s0 + $0x38] sm:$0xff]
          %vm824 = vcmask 261120
          %825 = vst.msk [vmem:[#allocation2] sm:$0xff] %vm824, %v816
          %826 = vst.msk [vmem:[#allocation2 + $0x8] sm:$0xff] %vm824, %v817
          %827 = vst.msk [vmem:[#allocation2 + $0x10] sm:$0xff] %vm824, %v818
          %828 = vst.msk [vmem:[#allocation2 + $0x18] sm:$0xff] %vm824, %v819
          %829 = vst.msk [vmem:[#allocation2 + $0x20] sm:$0xff] %vm824, %v820
          %830 = vst.msk [vmem:[#allocation2 + $0x28] sm:$0xff] %vm824, %v821
          %831 = vst.msk [vmem:[#allocation2 + $0x30] sm:$0xff] %vm824, %v822
          %832 = vst.msk [vmem:[#allocation2 + $0x38] sm:$0xff] %vm824, %v823
        $region116: #{tpu_custom_call.1} parent=83 // pred_fallthru
          _
        %v833 = vld [vmem:[#allocation2] sm:$0xff]
        %v834 = vld [vmem:[#allocation2 + $0x8] sm:$0xff]
        %v835 = vld [vmem:[#allocation2 + $0x10] sm:$0xff]
        %v836 = vld [vmem:[#allocation2 + $0x18] sm:$0xff]
        %v837 = vld [vmem:[#allocation2 + $0x20] sm:$0xff]
        %v838 = vld [vmem:[#allocation2 + $0x28] sm:$0xff]
        %v839 = vld [vmem:[#allocation2 + $0x30] sm:$0xff]
        %v840 = vld [vmem:[#allocation2 + $0x38] sm:$0xff]
        %v841 = vlaneseq
        %v842 = vshrl.u32 %v841, 7
        %v843 = vlaneseq
        %v844 = vand.u32 %v843, 127
        %vm845 = vcmp.gt.s32.totalorder %v844, %v842
        %v846 = vsel %vm845, -1e+30, 0.0
        %v847 = vld [vmem:[%s652] sm:$0x1]
        %v848 = vld [vmem:[%s660] sm:$0x1]
        %vm849 = vcmask 261120
        %v850 = vsel %vm849, %v833, 0.0
        %851 = vadd.xlane.f32.xlu0 %v850
        %v852 = vpop.xlane.xlu0 %851
        %v853 = vsel %vm849, %v834, 0.0
        %854 = vadd.xlane.f32.xlu0 %v853
        %v855 = vpop.xlane.xlu0 %854
        %v856 = vsel %vm849, %v835, 0.0
        %857 = vadd.xlane.f32.xlu0 %v856
        %v858 = vpop.xlane.xlu0 %857
        %v859 = vsel %vm849, %v836, 0.0
        %860 = vadd.xlane.f32.xlu0 %v859
        %v861 = vpop.xlane.xlu0 %860
        %v862 = vsel %vm849, %v837, 0.0
        %863 = vadd.xlane.f32.xlu0 %v862
        %v864 = vpop.xlane.xlu0 %863
        %v865 = vsel %vm849, %v838, 0.0
        %866 = vadd.xlane.f32.xlu0 %v865
        %v867 = vpop.xlane.xlu0 %866
        %v868 = vsel %vm849, %v839, 0.0
        %869 = vadd.xlane.f32.xlu0 %v868
        %v870 = vpop.xlane.xlu0 %869
        %v871 = vsel %vm849, %v840, 0.0
        %872 = vadd.xlane.f32.xlu0 %v871
        %v873 = vpop.xlane.xlu0 %872
        %v874 = vrcp.pop 32.0
        %v875 = vmul.f32 %v852, %v874
        %v876 = vmul.f32 %v855, %v874
        %v877 = vmul.f32 %v858, %v874
        %v878 = vmul.f32 %v861, %v874
        %v879 = vmul.f32 %v864, %v874
        %v880 = vmul.f32 %v867, %v874
        %v881 = vmul.f32 %v870, %v874
        %v882 = vmul.f32 %v873, %v874
        %v883 = vsub.f32 %v833, %v875
        %v884 = vsub.f32 %v834, %v876
        %v885 = vsub.f32 %v835, %v877
        %v886 = vsub.f32 %v836, %v878
        %v887 = vsub.f32 %v837, %v879
        %v888 = vsub.f32 %v838, %v880
        %v889 = vsub.f32 %v839, %v881
        %v890 = vsub.f32 %v840, %v882
        %v891 = vmul.f32 %v883, %v883
        %v892 = vmul.f32 %v884, %v884
        %v893 = vmul.f32 %v885, %v885
        %v894 = vmul.f32 %v886, %v886
        %v895 = vmul.f32 %v887, %v887
        %v896 = vmul.f32 %v888, %v888
        %v897 = vmul.f32 %v889, %v889
        %v898 = vmul.f32 %v890, %v890
        %v899 = vsel %vm849, %v891, 0.0
        %900 = vadd.xlane.f32.xlu0 %v899
        %v901 = vpop.xlane.xlu0 %900
        %v902 = vsel %vm849, %v892, 0.0
        %903 = vadd.xlane.f32.xlu0 %v902
        %v904 = vpop.xlane.xlu0 %903
        %v905 = vsel %vm849, %v893, 0.0
        %906 = vadd.xlane.f32.xlu0 %v905
        %v907 = vpop.xlane.xlu0 %906
        %v908 = vsel %vm849, %v894, 0.0
        %909 = vadd.xlane.f32.xlu0 %v908
        %v910 = vpop.xlane.xlu0 %909
        %v911 = vsel %vm849, %v895, 0.0
        %912 = vadd.xlane.f32.xlu0 %v911
        %v913 = vpop.xlane.xlu0 %912
        %v914 = vsel %vm849, %v896, 0.0
        %915 = vadd.xlane.f32.xlu0 %v914
        %v916 = vpop.xlane.xlu0 %915
        %v917 = vsel %vm849, %v897, 0.0
        %918 = vadd.xlane.f32.xlu0 %v917
        %v919 = vpop.xlane.xlu0 %918
        %v920 = vsel %vm849, %v898, 0.0
        %921 = vadd.xlane.f32.xlu0 %v920
        %v922 = vpop.xlane.xlu0 %921
        %v923 = vmul.f32 %v901, %v874
        %v924 = vmul.f32 %v904, %v874
        %v925 = vmul.f32 %v907, %v874
        %v926 = vmul.f32 %v910, %v874
        %v927 = vmul.f32 %v913, %v874
        %v928 = vmul.f32 %v916, %v874
        %v929 = vmul.f32 %v919, %v874
        %v930 = vmul.f32 %v922, %v874
        %v931 = vadd.f32 %v923, 1e-05
        %v932 = vadd.f32 %v924, 1e-05
        %v933 = vadd.f32 %v925, 1e-05
        %v934 = vadd.f32 %v926, 1e-05
        %v935 = vadd.f32 %v927, 1e-05
        %v936 = vadd.f32 %v928, 1e-05
        %v937 = vadd.f32 %v929, 1e-05
        %v938 = vadd.f32 %v930, 1e-05
        %v939 = vrsqrt.pop %v931
        %v940 = vrsqrt.pop %v932
        %v941 = vrsqrt.pop %v933
        %v942 = vrsqrt.pop %v934
        %v943 = vrsqrt.pop %v935
        %v944 = vrsqrt.pop %v936
        %v945 = vrsqrt.pop %v937
        %v946 = vrsqrt.pop %v938
        %v947 = vmul.f32 %v883, %v939
        %v948 = vmul.f32 %v884, %v940
        %v949 = vmul.f32 %v885, %v941
        %v950 = vmul.f32 %v886, %v942
        %v951 = vmul.f32 %v887, %v943
        %v952 = vmul.f32 %v888, %v944
        %v953 = vmul.f32 %v889, %v945
        %v954 = vmul.f32 %v890, %v946
        %v956 = vlaneseq
        %v957 = vshrl.u32 %v956, 7
        %v958 = vsub.s32 0, %v957
        %v959 = vrot.slane %v847, %v958
        %v961 = vmul.f32 %v947, %v959
        %v962 = vmul.f32 %v948, %v959
        %v963 = vmul.f32 %v949, %v959
        %v964 = vmul.f32 %v950, %v959
        %v965 = vmul.f32 %v951, %v959
        %v966 = vmul.f32 %v952, %v959
        %v967 = vmul.f32 %v953, %v959
        %v968 = vmul.f32 %v954, %v959
        %v970 = vlaneseq
        %v971 = vshrl.u32 %v970, 7
        %v972 = vsub.s32 0, %v971
        %v973 = vrot.slane %v848, %v972
        %v975 = vadd.f32 %v961, %v973
        %v976 = vadd.f32 %v962, %v973
        %v977 = vadd.f32 %v963, %v973
        %v978 = vadd.f32 %v964, %v973
        %v979 = vadd.f32 %v965, %v973
        %v980 = vadd.f32 %v966, %v973
        %v981 = vadd.f32 %v967, %v973
        %v982 = vadd.f32 %v968, %v973
        %v983 = vpack.c.bf16 %v976, %v975
        %v984 = vpack.c.bf16 %v978, %v977
        %v985 = vpack.c.bf16 %v980, %v979
        %v986 = vpack.c.bf16 %v982, %v981
        %v987 = vld [vmem:[%s794] sm:$0xf]
        %v988 = vld [vmem:[%s794 + $0x4] sm:$0xf]
        %v989 = vld [vmem:[%s794 + $0x8] sm:$0xf]
        %v990 = vld [vmem:[%s794 + $0xc] sm:$0xf]
        %v991 = vld [vmem:[%s668] sm:$0x1]
        %v993 = vlaneseq
        %v994 = vshrl.u32 %v993, 7
        %v995 = vsub.s32 0, %v994
        %v996 = vrot.slane %v991, %v995
        %v1002 = vunpack.c.l.b16 %v987
        %v1003 = vunpack.c.l.b16 %v988
        %v1004 = vunpack.c.l.b16 %v989
        %v1005 = vunpack.c.l.b16 %v990
        %v1006 = vpack.c.b16 %v1003, %v1002
        %v1007 = vpack.c.b16 %v1005, %v1004
        %v1011 = vsel %vm849, %v983, 0
        %v1014 = vsel %vm849, %v984, 0
        %v1017 = vsel %vm849, %v985, 0
        %v1020 = vsel %vm849, %v986, 0
        %1022 = vmatprep.subr.bf16.mxu0 0
        %1023 = vmatpush1.bf16.msra.mxu0 0
        %1024 = vmatprep.subr.bf16.mxu0 0
        %1025 = vmatpush1.bf16.msra.mxu0 0
        %1026 = vmatprep.subr.bf16.mxu0 0
        %1027 = vmatpush1.bf16.msra.mxu0 0
        %1028 = vmatprep.subr.bf16.mxu0 0
        %1029 = vmatpush1.bf16.msra.mxu0 0
        %1030 = vmatprep.subr.bf16.mxu0 0
        %1031 = vmatpush1.bf16.msra.mxu0 0
        %1032 = vmatprep.subr.bf16.mxu0 0
        %1033 = vmatpush1.bf16.msra.mxu0 0
        %1034 = vmatprep.subr.bf16.mxu0 0
        %1035 = vmatpush1.bf16.msra.mxu0 %v1007
        %1036 = vmatprep.subr.bf16.mxu0 0
        %1037 = vmatpush1.bf16.msra.mxu0 %v1006
        %1038 = vmatprep.subr.bf16.mxu0 0
        %1039 = vmatpush2.bf16.msra.mxu0 0
        %1040 = vmatprep.subr.bf16.mxu0 0
        %1041 = vmatpush2.bf16.msra.mxu0 0
        %1042 = vmatprep.subr.bf16.mxu0 0
        %1043 = vmatpush2.bf16.msra.mxu0 0
        %1044 = vmatprep.subr.bf16.mxu0 0
        %1045 = vmatpush2.bf16.msra.mxu0 0
        %1046 = vmatprep.subr.bf16.mxu0 0
        %1047 = vmatpush2.bf16.msra.mxu0 0
        %1048 = vmatprep.subr.bf16.mxu0 0
        %1049 = vmatpush2.bf16.msra.mxu0 0
        %1050 = vmatprep.subr.bf16.mxu0 0
        %1051 = vmatpush2.bf16.msra.mxu0 0
        %1052 = vmatprep.subr.bf16.mxu0 0
        %1053 = vmatpush2.bf16.msra.mxu0 0
        %1054 = vmatprep.mubr.bf16.mxu0 0
        %1055 = vmatmul.mubr.bf16.gmra.mxu0 %v1011
        %v1056 = vpop.f32.mrf.mxu0
        %v1057 = vadd.f32 %v996, %v1056
        %v1058 = vpop.f32.mrf.mxu0
        %v1059 = vpop.f32.mrf.mxu0
        %v1060 = vadd.f32 %v996, %v1059
        %v1061 = vpop.f32.mrf.mxu0
        %1062 = vmatprep.mubr.bf16.mxu0 0
        %1063 = vmatmul.mubr.bf16.gmra.mxu0 %v1014
        %v1064 = vpop.f32.mrf.mxu0
        %v1065 = vadd.f32 %v996, %v1064
        %v1066 = vpop.f32.mrf.mxu0
        %v1067 = vpop.f32.mrf.mxu0
        %v1068 = vadd.f32 %v996, %v1067
        %v1069 = vpop.f32.mrf.mxu0
        %1070 = vmatprep.mubr.bf16.mxu0 0
        %1071 = vmatmul.mubr.bf16.gmra.mxu0 %v1017
        %v1072 = vpop.f32.mrf.mxu0
        %v1073 = vadd.f32 %v996, %v1072
        %v1074 = vpop.f32.mrf.mxu0
        %v1075 = vpop.f32.mrf.mxu0
        %v1076 = vadd.f32 %v996, %v1075
        %v1077 = vpop.f32.mrf.mxu0
        %1078 = vmatprep.mubr.bf16.mxu0 0
        %1079 = vmatmul.mubr.bf16.gmra.mxu0 %v1020
        %v1080 = vpop.f32.mrf.mxu0
        %v1081 = vadd.f32 %v996, %v1080
        %v1082 = vpop.f32.mrf.mxu0
        %v1083 = vpop.f32.mrf.mxu0
        %v1084 = vadd.f32 %v996, %v1083
        %v1085 = vpop.f32.mrf.mxu0
        %1086 = vdwg.mxu0
        %1095 = vrot.lane.b32.xlu0 %v1057, 120
        %v1096 = vpop.permute.xlu0 %1095
        %1097 = vrot.lane.b32.xlu0 %v1060, 120
        %v1098 = vpop.permute.xlu0 %1097
        %1099 = vrot.lane.b32.xlu0 %v1065, 120
        %v1100 = vpop.permute.xlu0 %1099
        %1101 = vrot.lane.b32.xlu0 %v1068, 120
        %v1102 = vpop.permute.xlu0 %1101
        %1103 = vrot.lane.b32.xlu0 %v1073, 120
        %v1104 = vpop.permute.xlu0 %1103
        %1105 = vrot.lane.b32.xlu0 %v1076, 120
        %v1106 = vpop.permute.xlu0 %1105
        %1107 = vrot.lane.b32.xlu0 %v1081, 120
        %v1108 = vpop.permute.xlu0 %1107
        %1109 = vrot.lane.b32.xlu0 %v1084, 120
        %v1110 = vpop.permute.xlu0 %1109
        %1119 = vrot.lane.b32.xlu0 %v1057, 112
        %v1120 = vpop.permute.xlu0 %1119
        %1121 = vrot.lane.b32.xlu0 %v1060, 112
        %v1122 = vpop.permute.xlu0 %1121
        %1123 = vrot.lane.b32.xlu0 %v1065, 112
        %v1124 = vpop.permute.xlu0 %1123
        %1125 = vrot.lane.b32.xlu0 %v1068, 112
        %v1126 = vpop.permute.xlu0 %1125
        %1127 = vrot.lane.b32.xlu0 %v1073, 112
        %v1128 = vpop.permute.xlu0 %1127
        %1129 = vrot.lane.b32.xlu0 %v1076, 112
        %v1130 = vpop.permute.xlu0 %1129
        %1131 = vrot.lane.b32.xlu0 %v1081, 112
        %v1132 = vpop.permute.xlu0 %1131
        %1133 = vrot.lane.b32.xlu0 %v1084, 112
        %v1134 = vpop.permute.xlu0 %1133
        %1143 = vrot.lane.b32.xlu0 %v1057, 104
        %v1144 = vpop.permute.xlu0 %1143
        %1145 = vrot.lane.b32.xlu0 %v1060, 104
        %v1146 = vpop.permute.xlu0 %1145
        %1147 = vrot.lane.b32.xlu0 %v1065, 104
        %v1148 = vpop.permute.xlu0 %1147
        %1149 = vrot.lane.b32.xlu0 %v1068, 104
        %v1150 = vpop.permute.xlu0 %1149
        %1151 = vrot.lane.b32.xlu0 %v1073, 104
        %v1152 = vpop.permute.xlu0 %1151
        %1153 = vrot.lane.b32.xlu0 %v1076, 104
        %v1154 = vpop.permute.xlu0 %1153
        %1155 = vrot.lane.b32.xlu0 %v1081, 104
        %v1156 = vpop.permute.xlu0 %1155
        %1157 = vrot.lane.b32.xlu0 %v1084, 104
        %v1158 = vpop.permute.xlu0 %1157
        %v1167 = vpack.c.bf16 %v1057, %v1057
        %v1168 = vpack.c.bf16 %v1060, %v1060
        %v1169 = vpack.c.bf16 %v1065, %v1065
        %v1170 = vpack.c.bf16 %v1068, %v1068
        %v1171 = vpack.c.bf16 %v1073, %v1073
        %v1172 = vpack.c.bf16 %v1076, %v1076
        %v1173 = vpack.c.bf16 %v1081, %v1081
        %v1174 = vpack.c.bf16 %v1084, %v1084
        %v1175 = vpack.c.bf16 %v1096, %v1096
        %v1176 = vpack.c.bf16 %v1098, %v1098
        %v1177 = vpack.c.bf16 %v1100, %v1100
        %v1178 = vpack.c.bf16 %v1102, %v1102
        %v1179 = vpack.c.bf16 %v1104, %v1104
        %v1180 = vpack.c.bf16 %v1106, %v1106
        %v1181 = vpack.c.bf16 %v1108, %v1108
        %v1182 = vpack.c.bf16 %v1110, %v1110
        %v1183 = vpack.c.bf16 %v1120, %v1120
        %v1184 = vpack.c.bf16 %v1122, %v1122
        %v1185 = vpack.c.bf16 %v1124, %v1124
        %v1186 = vpack.c.bf16 %v1126, %v1126
        %v1187 = vpack.c.bf16 %v1128, %v1128
        %v1188 = vpack.c.bf16 %v1130, %v1130
        %v1189 = vpack.c.bf16 %v1132, %v1132
        %v1190 = vpack.c.bf16 %v1134, %v1134
        %v1191 = vpack.c.bf16 %v1144, %v1144
        %v1192 = vpack.c.bf16 %v1146, %v1146
        %v1193 = vpack.c.bf16 %v1148, %v1148
        %v1194 = vpack.c.bf16 %v1150, %v1150
        %v1195 = vpack.c.bf16 %v1152, %v1152
        %v1196 = vpack.c.bf16 %v1154, %v1154
        %v1197 = vpack.c.bf16 %v1156, %v1156
        %v1198 = vpack.c.bf16 %v1158, %v1158
        %1200 = vrot.lane.b32.xlu0 %v1167, 96
        %v1201 = vpop.permute.xlu0 %1200
        %vm1202 = vcmask 64512
        %v1204 = vsel %vm1202, %v1167, 0
        %v1207 = vsel %vm1202, %v1201, 0
        %1209 = vmatprep.subr.bf16.mxu0 0
        %1210 = vmatpush1.bf16.xpose.msra.mxu0 0
        %1211 = vmatprep.subr.bf16.mxu0 0
        %1212 = vmatpush1.bf16.xpose.msra.mxu0 0
        %1213 = vmatprep.subr.bf16.mxu0 0
        %1214 = vmatpush1.bf16.xpose.msra.mxu0 0
        %1215 = vmatprep.subr.bf16.mxu0 0
        %1216 = vmatpush1.bf16.xpose.msra.mxu0 0
        %1217 = vmatprep.subr.bf16.mxu0 0
        %1218 = vmatpush1.bf16.xpose.msra.mxu0 0
        %1219 = vmatprep.subr.bf16.mxu0 0
        %1220 = vmatpush1.bf16.xpose.msra.mxu0 0
        %1221 = vmatprep.subr.bf16.mxu0 0
        %1222 = vmatpush1.bf16.xpose.msra.mxu0 0
        %1223 = vmatprep.subr.bf16.mxu0 0
        %1224 = vmatpush1.bf16.xpose.msra.mxu0 %v1207
        %1225 = vmatprep.subr.bf16.mxu0 0
        %1226 = vmatpush2.bf16.xpose.msra.mxu0 0
        %1227 = vmatprep.subr.bf16.mxu0 0
        %1228 = vmatpush2.bf16.xpose.msra.mxu0 0
        %1229 = vmatprep.subr.bf16.mxu0 0
        %1230 = vmatpush2.bf16.xpose.msra.mxu0 0
        %1231 = vmatprep.subr.bf16.mxu0 0
        %1232 = vmatpush2.bf16.xpose.msra.mxu0 0
        %1233 = vmatprep.subr.bf16.mxu0 0
        %1234 = vmatpush2.bf16.xpose.msra.mxu0 0
        %1235 = vmatprep.subr.bf16.mxu0 0
        %1236 = vmatpush2.bf16.xpose.msra.mxu0 0
        %1237 = vmatprep.subr.bf16.mxu0 0
        %1238 = vmatpush2.bf16.xpose.msra.mxu0 0
        %1239 = vmatprep.subr.bf16.mxu0 0
        %1240 = vmatpush2.bf16.xpose.msra.mxu0 0
        %1241 = vmatprep.mubr.bf16.mxu0 0
        %1242 = vmatmul.mubr.bf16.gmra.mxu0 %v1204
        %v1243 = vpop.f32.mrf.mxu0
        %v1244 = vadd.f32 0.0, %v1243
        %v1245 = vpop.f32.mrf.mxu0
        %v1246 = vpop.f32.mrf.mxu0
        %v1247 = vpop.f32.mrf.mxu0
        %1248 = vdwg.mxu0
        %1250 = vrot.lane.b32.xlu0 %v1168, 96
        %v1251 = vpop.permute.xlu0 %1250
        %v1253 = vsel %vm1202, %v1168, 0
        %v1256 = vsel %vm1202, %v1251, 0
        %1258 = vmatprep.subr.bf16.mxu0 0
        %1259 = vmatpush1.bf16.xpose.msra.mxu0 0
        %1260 = vmatprep.subr.bf16.mxu0 0
        %1261 = vmatpush1.bf16.xpose.msra.mxu0 0
        %1262 = vmatprep.subr.bf16.mxu0 0
        %1263 = vmatpush1.bf16.xpose.msra.mxu0 0
        %1264 = vmatprep.subr.bf16.mxu0 0
        %1265 = vmatpush1.bf16.xpose.msra.mxu0 0
        %1266 = vmatprep.subr.bf16.mxu0 0
        %1267 = vmatpush1.bf16.xpose.msra.mxu0 0
        %1268 = vmatprep.subr.bf16.mxu0 0
        %1269 = vmatpush1.bf16.xpose.msra.mxu0 0
        %1270 = vmatprep.subr.bf16.mxu0 0
        %1271 = vmatpush1.bf16.xpose.msra.mxu0 0
        %1272 = vmatprep.subr.bf16.mxu0 0
        %1273 = vmatpush1.bf16.xpose.msra.mxu0 %v1256
        %1274 = vmatprep.subr.bf16.mxu0 0
        %1275 = vmatpush2.bf16.xpose.msra.mxu0 0
        %1276 = vmatprep.subr.bf16.mxu0 0
        %1277 = vmatpush2.bf16.xpose.msra.mxu0 0
        %1278 = vmatprep.subr.bf16.mxu0 0
        %1279 = vmatpush2.bf16.xpose.msra.mxu0 0
        %1280 = vmatprep.subr.bf16.mxu0 0
        %1281 = vmatpush2.bf16.xpose.msra.mxu0 0
        %1282 = vmatprep.subr.bf16.mxu0 0
        %1283 = vmatpush2.bf16.xpose.msra.mxu0 0
        %1284 = vmatprep.subr.bf16.mxu0 0
        %1285 = vmatpush2.bf16.xpose.msra.mxu0 0
        %1286 = vmatprep.subr.bf16.mxu0 0
        %1287 = vmatpush2.bf16.xpose.msra.mxu0 0
        %1288 = vmatprep.subr.bf16.mxu0 0
        %1289 = vmatpush2.bf16.xpose.msra.mxu0 0
        %1290 = vmatprep.mubr.bf16.mxu0 0
        %1291 = vmatmul.mubr.bf16.gmra.mxu0 %v1253
        %v1292 = vpop.f32.mrf.mxu0
        %v1293 = vadd.f32 0.0, %v1292
        %v1294 = vpop.f32.mrf.mxu0
        %v1295 = vpop.f32.mrf.mxu0
        %v1296 = vpop.f32.mrf.mxu0
        %1297 = vdwg.mxu0
        %1299 = vrot.lane.b32.xlu0 %v1169, 96
        %v1300 = vpop.permute.xlu0 %1299
        %v1302 = vsel %vm1202, %v1169, 0
        %v1305 = vsel %vm1202, %v1300, 0
        %1307 = vmatprep.subr.bf16.mxu0 0
        %1308 = vmatpush1.bf16.xpose.msra.mxu0 0
        %1309 = vmatprep.subr.bf16.mxu0 0
        %1310 = vmatpush1.bf16.xpose.msra.mxu0 0
        %1311 = vmatprep.subr.bf16.mxu0 0
        %1312 = vmatpush1.bf16.xpose.msra.mxu0 0
        %1313 = vmatprep.subr.bf16.mxu0 0
        %1314 = vmatpush1.bf16.xpose.msra.mxu0 0
        %1315 = vmatprep.subr.bf16.mxu0 0
        %1316 = vmatpush1.bf16.xpose.msra.mxu0 0
        %1317 = vmatprep.subr.bf16.mxu0 0
        %1318 = vmatpush1.bf16.xpose.msra.mxu0 0
        %1319 = vmatprep.subr.bf16.mxu0 0
        %1320 = vmatpush1.bf16.xpose.msra.mxu0 0
        %1321 = vmatprep.subr.bf16.mxu0 0
        %1322 = vmatpush1.bf16.xpose.msra.mxu0 %v1305
        %1323 = vmatprep.subr.bf16.mxu0 0
        %1324 = vmatpush2.bf16.xpose.msra.mxu0 0
        %1325 = vmatprep.subr.bf16.mxu0 0
        %1326 = vmatpush2.bf16.xpose.msra.mxu0 0
        %1327 = vmatprep.subr.bf16.mxu0 0
        %1328 = vmatpush2.bf16.xpose.msra.mxu0 0
        %1329 = vmatprep.subr.bf16.mxu0 0
        %1330 = vmatpush2.bf16.xpose.msra.mxu0 0
        %1331 = vmatprep.subr.bf16.mxu0 0
        %1332 = vmatpush2.bf16.xpose.msra.mxu0 0
        %1333 = vmatprep.subr.bf16.mxu0 0
        %1334 = vmatpush2.bf16.xpose.msra.mxu0 0
        %1335 = vmatprep.subr.bf16.mxu0 0
        %1336 = vmatpush2.bf16.xpose.msra.mxu0 0
        %1337 = vmatprep.subr.bf16.mxu0 0
        %1338 = vmatpush2.bf16.xpose.msra.mxu0 0
        %1339 = vmatprep.mubr.bf16.mxu0 0
        %1340 = vmatmul.mubr.bf16.gmra.mxu0 %v1302
        %v1341 = vpop.f32.mrf.mxu0
        %v1342 = vadd.f32 0.0, %v1341
        %v1343 = vpop.f32.mrf.mxu0
        %v1344 = vpop.f32.mrf.mxu0
        %v1345 = vpop.f32.mrf.mxu0
        %1346 = vdwg.mxu0
        %1348 = vrot.lane.b32.xlu0 %v1170, 96
        %v1349 = vpop.permute.xlu0 %1348
        %v1351 = vsel %vm1202, %v1170, 0
        %v1354 = vsel %vm1202, %v1349, 0
        %1356 = vmatprep.subr.bf16.mxu0 0
        %1357 = vmatpush1.bf16.xpose.msra.mxu0 0
        %1358 = vmatprep.subr.bf16.mxu0 0
        %1359 = vmatpush1.bf16.xpose.msra.mxu0 0
        %1360 = vmatprep.subr.bf16.mxu0 0
        %1361 = vmatpush1.bf16.xpose.msra.mxu0 0
        %1362 = vmatprep.subr.bf16.mxu0 0
        %1363 = vmatpush1.bf16.xpose.msra.mxu0 0
        %1364 = vmatprep.subr.bf16.mxu0 0
        %1365 = vmatpush1.bf16.xpose.msra.mxu0 0
        %1366 = vmatprep.subr.bf16.mxu0 0
        %1367 = vmatpush1.bf16.xpose.msra.mxu0 0
        %1368 = vmatprep.subr.bf16.mxu0 0
        %1369 = vmatpush1.bf16.xpose.msra.mxu0 0
        %1370 = vmatprep.subr.bf16.mxu0 0
        %1371 = vmatpush1.bf16.xpose.msra.mxu0 %v1354
        %1372 = vmatprep.subr.bf16.mxu0 0
        %1373 = vmatpush2.bf16.xpose.msra.mxu0 0
        %1374 = vmatprep.subr.bf16.mxu0 0
        %1375 = vmatpush2.bf16.xpose.msra.mxu0 0
        %1376 = vmatprep.subr.bf16.mxu0 0
        %1377 = vmatpush2.bf16.xpose.msra.mxu0 0
        %1378 = vmatprep.subr.bf16.mxu0 0
        %1379 = vmatpush2.bf16.xpose.msra.mxu0 0
        %1380 = vmatprep.subr.bf16.mxu0 0
        %1381 = vmatpush2.bf16.xpose.msra.mxu0 0
        %1382 = vmatprep.subr.bf16.mxu0 0
        %1383 = vmatpush2.bf16.xpose.msra.mxu0 0
        %1384 = vmatprep.subr.bf16.mxu0 0
        %1385 = vmatpush2.bf16.xpose.msra.mxu0 0
        %1386 = vmatprep.subr.bf16.mxu0 0
        %1387 = vmatpush2.bf16.xpose.msra.mxu0 0
        %1388 = vmatprep.mubr.bf16.mxu0 0
        %1389 = vmatmul.mubr.bf16.gmra.mxu0 %v1351
        %v1390 = vpop.f32.mrf.mxu0
        %v1391 = vadd.f32 0.0, %v1390
        %v1392 = vpop.f32.mrf.mxu0
        %v1393 = vpop.f32.mrf.mxu0
        %v1394 = vpop.f32.mrf.mxu0
        %1395 = vdwg.mxu0
        %1397 = vrot.lane.b32.xlu0 %v1171, 96
        %v1398 = vpop.permute.xlu0 %1397
        %v1400 = vsel %vm1202, %v1171, 0
        %v1403 = vsel %vm1202, %v1398, 0
        %1405 = vmatprep.subr.bf16.mxu0 0
        %1406 = vmatpush1.bf16.xpose.msra.mxu0 0
        %1407 = vmatprep.subr.bf16.mxu0 0
        %1408 = vmatpush1.bf16.xpose.msra.mxu0 0
        %1409 = vmatprep.subr.bf16.mxu0 0
        %1410 = vmatpush1.bf16.xpose.msra.mxu0 0
        %1411 = vmatprep.subr.bf16.mxu0 0
        %1412 = vmatpush1.bf16.xpose.msra.mxu0 0
        %1413 = vmatprep.subr.bf16.mxu0 0
        %1414 = vmatpush1.bf16.xpose.msra.mxu0 0
        %1415 = vmatprep.subr.bf16.mxu0 0
        %1416 = vmatpush1.bf16.xpose.msra.mxu0 0
        %1417 = vmatprep.subr.bf16.mxu0 0
        %1418 = vmatpush1.bf16.xpose.msra.mxu0 0
        %1419 = vmatprep.subr.bf16.mxu0 0
        %1420 = vmatpush1.bf16.xpose.msra.mxu0 %v1403
        %1421 = vmatprep.subr.bf16.mxu0 0
        %1422 = vmatpush2.bf16.xpose.msra.mxu0 0
        %1423 = vmatprep.subr.bf16.mxu0 0
        %1424 = vmatpush2.bf16.xpose.msra.mxu0 0
        %1425 = vmatprep.subr.bf16.mxu0 0
        %1426 = vmatpush2.bf16.xpose.msra.mxu0 0
        %1427 = vmatprep.subr.bf16.mxu0 0
        %1428 = vmatpush2.bf16.xpose.msra.mxu0 0
        %1429 = vmatprep.subr.bf16.mxu0 0
        %1430 = vmatpush2.bf16.xpose.msra.mxu0 0
        %1431 = vmatprep.subr.bf16.mxu0 0
        %1432 = vmatpush2.bf16.xpose.msra.mxu0 0
        %1433 = vmatprep.subr.bf16.mxu0 0
        %1434 = vmatpush2.bf16.xpose.msra.mxu0 0
        %1435 = vmatprep.subr.bf16.mxu0 0
        %1436 = vmatpush2.bf16.xpose.msra.mxu0 0
        %1437 = vmatprep.mubr.bf16.mxu0 0
        %1438 = vmatmul.mubr.bf16.gmra.mxu0 %v1400
        %v1439 = vpop.f32.mrf.mxu0
        %v1440 = vadd.f32 0.0, %v1439
        %v1441 = vpop.f32.mrf.mxu0
        %v1442 = vpop.f32.mrf.mxu0
        %v1443 = vpop.f32.mrf.mxu0
        %1444 = vdwg.mxu0
        %1446 = vrot.lane.b32.xlu0 %v1172, 96
        %v1447 = vpop.permute.xlu0 %1446
        %v1449 = vsel %vm1202, %v1172, 0
        %v1452 = vsel %vm1202, %v1447, 0
        %1454 = vmatprep.subr.bf16.mxu0 0
        %1455 = vmatpush1.bf16.xpose.msra.mxu0 0
        %1456 = vmatprep.subr.bf16.mxu0 0
        %1457 = vmatpush1.bf16.xpose.msra.mxu0 0
        %1458 = vmatprep.subr.bf16.mxu0 0
        %1459 = vmatpush1.bf16.xpose.msra.mxu0 0
        %1460 = vmatprep.subr.bf16.mxu0 0
        %1461 = vmatpush1.bf16.xpose.msra.mxu0 0
        %1462 = vmatprep.subr.bf16.mxu0 0
        %1463 = vmatpush1.bf16.xpose.msra.mxu0 0
        %1464 = vmatprep.subr.bf16.mxu0 0
        %1465 = vmatpush1.bf16.xpose.msra.mxu0 0
        %1466 = vmatprep.subr.bf16.mxu0 0
        %1467 = vmatpush1.bf16.xpose.msra.mxu0 0
        %1468 = vmatprep.subr.bf16.mxu0 0
        %1469 = vmatpush1.bf16.xpose.msra.mxu0 %v1452
        %1470 = vmatprep.subr.bf16.mxu0 0
        %1471 = vmatpush2.bf16.xpose.msra.mxu0 0
        %1472 = vmatprep.subr.bf16.mxu0 0
        %1473 = vmatpush2.bf16.xpose.msra.mxu0 0
        %1474 = vmatprep.subr.bf16.mxu0 0
        %1475 = vmatpush2.bf16.xpose.msra.mxu0 0
        %1476 = vmatprep.subr.bf16.mxu0 0
        %1477 = vmatpush2.bf16.xpose.msra.mxu0 0
        %1478 = vmatprep.subr.bf16.mxu0 0
        %1479 = vmatpush2.bf16.xpose.msra.mxu0 0
        %1480 = vmatprep.subr.bf16.mxu0 0
        %1481 = vmatpush2.bf16.xpose.msra.mxu0 0
        %1482 = vmatprep.subr.bf16.mxu0 0
        %1483 = vmatpush2.bf16.xpose.msra.mxu0 0
        %1484 = vmatprep.subr.bf16.mxu0 0
        %1485 = vmatpush2.bf16.xpose.msra.mxu0 0
        %1486 = vmatprep.mubr.bf16.mxu0 0
        %1487 = vmatmul.mubr.bf16.gmra.mxu0 %v1449
        %v1488 = vpop.f32.mrf.mxu0
        %v1489 = vadd.f32 0.0, %v1488
        %v1490 = vpop.f32.mrf.mxu0
        %v1491 = vpop.f32.mrf.mxu0
        %v1492 = vpop.f32.mrf.mxu0
        %1493 = vdwg.mxu0
        %1495 = vrot.lane.b32.xlu0 %v1173, 96
        %v1496 = vpop.permute.xlu0 %1495
        %v1498 = vsel %vm1202, %v1173, 0
        %v1501 = vsel %vm1202, %v1496, 0
        %1503 = vmatprep.subr.bf16.mxu0 0
        %1504 = vmatpush1.bf16.xpose.msra.mxu0 0
        %1505 = vmatprep.subr.bf16.mxu0 0
        %1506 = vmatpush1.bf16.xpose.msra.mxu0 0
        %1507 = vmatprep.subr.bf16.mxu0 0
        %1508 = vmatpush1.bf16.xpose.msra.mxu0 0
        %1509 = vmatprep.subr.bf16.mxu0 0
        %1510 = vmatpush1.bf16.xpose.msra.mxu0 0
        %1511 = vmatprep.subr.bf16.mxu0 0
        %1512 = vmatpush1.bf16.xpose.msra.mxu0 0
        %1513 = vmatprep.subr.bf16.mxu0 0
        %1514 = vmatpush1.bf16.xpose.msra.mxu0 0
        %1515 = vmatprep.subr.bf16.mxu0 0
        %1516 = vmatpush1.bf16.xpose.msra.mxu0 0
        %1517 = vmatprep.subr.bf16.mxu0 0
        %1518 = vmatpush1.bf16.xpose.msra.mxu0 %v1501
        %1519 = vmatprep.subr.bf16.mxu0 0
        %1520 = vmatpush2.bf16.xpose.msra.mxu0 0
        %1521 = vmatprep.subr.bf16.mxu0 0
        %1522 = vmatpush2.bf16.xpose.msra.mxu0 0
        %1523 = vmatprep.subr.bf16.mxu0 0
        %1524 = vmatpush2.bf16.xpose.msra.mxu0 0
        %1525 = vmatprep.subr.bf16.mxu0 0
        %1526 = vmatpush2.bf16.xpose.msra.mxu0 0
        %1527 = vmatprep.subr.bf16.mxu0 0
        %1528 = vmatpush2.bf16.xpose.msra.mxu0 0
        %1529 = vmatprep.subr.bf16.mxu0 0
        %1530 = vmatpush2.bf16.xpose.msra.mxu0 0
        %1531 = vmatprep.subr.bf16.mxu0 0
        %1532 = vmatpush2.bf16.xpose.msra.mxu0 0
        %1533 = vmatprep.subr.bf16.mxu0 0
        %1534 = vmatpush2.bf16.xpose.msra.mxu0 0
        %1535 = vmatprep.mubr.bf16.mxu0 0
        %1536 = vmatmul.mubr.bf16.gmra.mxu0 %v1498
        %v1537 = vpop.f32.mrf.mxu0
        %v1538 = vadd.f32 0.0, %v1537
        %v1539 = vpop.f32.mrf.mxu0
        %v1540 = vpop.f32.mrf.mxu0
        %v1541 = vpop.f32.mrf.mxu0
        %1542 = vdwg.mxu0
        %1544 = vrot.lane.b32.xlu0 %v1174, 96
        %v1545 = vpop.permute.xlu0 %1544
        %v1547 = vsel %vm1202, %v1174, 0
        %v1550 = vsel %vm1202, %v1545, 0
        %1552 = vmatprep.subr.bf16.mxu0 0
        %1553 = vmatpush1.bf16.xpose.msra.mxu0 0
        %1554 = vmatprep.subr.bf16.mxu0 0
        %1555 = vmatpush1.bf16.xpose.msra.mxu0 0
        %1556 = vmatprep.subr.bf16.mxu0 0
        %1557 = vmatpush1.bf16.xpose.msra.mxu0 0
        %1558 = vmatprep.subr.bf16.mxu0 0
        %1559 = vmatpush1.bf16.xpose.msra.mxu0 0
        %1560 = vmatprep.subr.bf16.mxu0 0
        %1561 = vmatpush1.bf16.xpose.msra.mxu0 0
        %1562 = vmatprep.subr.bf16.mxu0 0
        %1563 = vmatpush1.bf16.xpose.msra.mxu0 0
        %1564 = vmatprep.subr.bf16.mxu0 0
        %1565 = vmatpush1.bf16.xpose.msra.mxu0 0
        %1566 = vmatprep.subr.bf16.mxu0 0
        %1567 = vmatpush1.bf16.xpose.msra.mxu0 %v1550
        %1568 = vmatprep.subr.bf16.mxu0 0
        %1569 = vmatpush2.bf16.xpose.msra.mxu0 0
        %1570 = vmatprep.subr.bf16.mxu0 0
        %1571 = vmatpush2.bf16.xpose.msra.mxu0 0
        %1572 = vmatprep.subr.bf16.mxu0 0
        %1573 = vmatpush2.bf16.xpose.msra.mxu0 0
        %1574 = vmatprep.subr.bf16.mxu0 0
        %1575 = vmatpush2.bf16.xpose.msra.mxu0 0
        %1576 = vmatprep.subr.bf16.mxu0 0
        %1577 = vmatpush2.bf16.xpose.msra.mxu0 0
        %1578 = vmatprep.subr.bf16.mxu0 0
        %1579 = vmatpush2.bf16.xpose.msra.mxu0 0
        %1580 = vmatprep.subr.bf16.mxu0 0
        %1581 = vmatpush2.bf16.xpose.msra.mxu0 0
        %1582 = vmatprep.subr.bf16.mxu0 0
        %1583 = vmatpush2.bf16.xpose.msra.mxu0 0
        %1584 = vmatprep.mubr.bf16.mxu0 0
        %1585 = vmatmul.mubr.bf16.gmra.mxu0 %v1547
        %v1586 = vpop.f32.mrf.mxu0
        %v1587 = vadd.f32 0.0, %v1586
        %v1588 = vpop.f32.mrf.mxu0
        %v1589 = vpop.f32.mrf.mxu0
        %v1590 = vpop.f32.mrf.mxu0
        %1591 = vdwg.mxu0
        %1593 = vrot.lane.b32.xlu0 %v1175, 96
        %v1594 = vpop.permute.xlu0 %1593
        %v1596 = vsel %vm1202, %v1175, 0
        %v1599 = vsel %vm1202, %v1594, 0
        %1601 = vmatprep.subr.bf16.mxu0 0
        %1602 = vmatpush1.bf16.xpose.msra.mxu0 0
        %1603 = vmatprep.subr.bf16.mxu0 0
        %1604 = vmatpush1.bf16.xpose.msra.mxu0 0
        %1605 = vmatprep.subr.bf16.mxu0 0
        %1606 = vmatpush1.bf16.xpose.msra.mxu0 0
        %1607 = vmatprep.subr.bf16.mxu0 0
        %1608 = vmatpush1.bf16.xpose.msra.mxu0 0
        %1609 = vmatprep.subr.bf16.mxu0 0
        %1610 = vmatpush1.bf16.xpose.msra.mxu0 0
        %1611 = vmatprep.subr.bf16.mxu0 0
        %1612 = vmatpush1.bf16.xpose.msra.mxu0 0
        %1613 = vmatprep.subr.bf16.mxu0 0
        %1614 = vmatpush1.bf16.xpose.msra.mxu0 0
        %1615 = vmatprep.subr.bf16.mxu0 0
        %1616 = vmatpush1.bf16.xpose.msra.mxu0 %v1599
        %1617 = vmatprep.subr.bf16.mxu0 0
        %1618 = vmatpush2.bf16.xpose.msra.mxu0 0
        %1619 = vmatprep.subr.bf16.mxu0 0
        %1620 = vmatpush2.bf16.xpose.msra.mxu0 0
        %1621 = vmatprep.subr.bf16.mxu0 0
        %1622 = vmatpush2.bf16.xpose.msra.mxu0 0
        %1623 = vmatprep.subr.bf16.mxu0 0
        %1624 = vmatpush2.bf16.xpose.msra.mxu0 0
        %1625 = vmatprep.subr.bf16.mxu0 0
        %1626 = vmatpush2.bf16.xpose.msra.mxu0 0
        %1627 = vmatprep.subr.bf16.mxu0 0
        %1628 = vmatpush2.bf16.xpose.msra.mxu0 0
        %1629 = vmatprep.subr.bf16.mxu0 0
        %1630 = vmatpush2.bf16.xpose.msra.mxu0 0
        %1631 = vmatprep.subr.bf16.mxu0 0
        %1632 = vmatpush2.bf16.xpose.msra.mxu0 0
        %1633 = vmatprep.mubr.bf16.mxu0 0
        %1634 = vmatmul.mubr.bf16.gmra.mxu0 %v1596
        %v1635 = vpop.f32.mrf.mxu0
        %v1636 = vadd.f32 0.0, %v1635
        %v1637 = vpop.f32.mrf.mxu0
        %v1638 = vpop.f32.mrf.mxu0
        %v1639 = vpop.f32.mrf.mxu0
        %1640 = vdwg.mxu0
        %1642 = vrot.lane.b32.xlu0 %v1176, 96
        %v1643 = vpop.permute.xlu0 %1642
        %v1645 = vsel %vm1202, %v1176, 0
        %v1648 = vsel %vm1202, %v1643, 0
        %1650 = vmatprep.subr.bf16.mxu0 0
        %1651 = vmatpush1.bf16.xpose.msra.mxu0 0
        %1652 = vmatprep.subr.bf16.mxu0 0
        %1653 = vmatpush1.bf16.xpose.msra.mxu0 0
        %1654 = vmatprep.subr.bf16.mxu0 0
        %1655 = vmatpush1.bf16.xpose.msra.mxu0 0
        %1656 = vmatprep.subr.bf16.mxu0 0
        %1657 = vmatpush1.bf16.xpose.msra.mxu0 0
        %1658 = vmatprep.subr.bf16.mxu0 0
        %1659 = vmatpush1.bf16.xpose.msra.mxu0 0
        %1660 = vmatprep.subr.bf16.mxu0 0
        %1661 = vmatpush1.bf16.xpose.msra.mxu0 0
        %1662 = vmatprep.subr.bf16.mxu0 0
        %1663 = vmatpush1.bf16.xpose.msra.mxu0 0
        %1664 = vmatprep.subr.bf16.mxu0 0
        %1665 = vmatpush1.bf16.xpose.msra.mxu0 %v1648
        %1666 = vmatprep.subr.bf16.mxu0 0
        %1667 = vmatpush2.bf16.xpose.msra.mxu0 0
        %1668 = vmatprep.subr.bf16.mxu0 0
        %1669 = vmatpush2.bf16.xpose.msra.mxu0 0
        %1670 = vmatprep.subr.bf16.mxu0 0
        %1671 = vmatpush2.bf16.xpose.msra.mxu0 0
        %1672 = vmatprep.subr.bf16.mxu0 0
        %1673 = vmatpush2.bf16.xpose.msra.mxu0 0
        %1674 = vmatprep.subr.bf16.mxu0 0
        %1675 = vmatpush2.bf16.xpose.msra.mxu0 0
        %1676 = vmatprep.subr.bf16.mxu0 0
        %1677 = vmatpush2.bf16.xpose.msra.mxu0 0
        %1678 = vmatprep.subr.bf16.mxu0 0
        %1679 = vmatpush2.bf16.xpose.msra.mxu0 0
        %1680 = vmatprep.subr.bf16.mxu0 0
        %1681 = vmatpush2.bf16.xpose.msra.mxu0 0
        %1682 = vmatprep.mubr.bf16.mxu0 0
        %1683 = vmatmul.mubr.bf16.gmra.mxu0 %v1645
        %v1684 = vpop.f32.mrf.mxu0
        %v1685 = vadd.f32 0.0, %v1684
        %v1686 = vpop.f32.mrf.mxu0
        %v1687 = vpop.f32.mrf.mxu0
        %v1688 = vpop.f32.mrf.mxu0
        %1689 = vdwg.mxu0
        %1691 = vrot.lane.b32.xlu0 %v1177, 96
        %v1692 = vpop.permute.xlu0 %1691
        %v1694 = vsel %vm1202, %v1177, 0
        %v1697 = vsel %vm1202, %v1692, 0
        %1699 = vmatprep.subr.bf16.mxu0 0
        %1700 = vmatpush1.bf16.xpose.msra.mxu0 0
        %1701 = vmatprep.subr.bf16.mxu0 0
        %1702 = vmatpush1.bf16.xpose.msra.mxu0 0
        %1703 = vmatprep.subr.bf16.mxu0 0
        %1704 = vmatpush1.bf16.xpose.msra.mxu0 0
        %1705 = vmatprep.subr.bf16.mxu0 0
        %1706 = vmatpush1.bf16.xpose.msra.mxu0 0
        %1707 = vmatprep.subr.bf16.mxu0 0
        %1708 = vmatpush1.bf16.xpose.msra.mxu0 0
        %1709 = vmatprep.subr.bf16.mxu0 0
        %1710 = vmatpush1.bf16.xpose.msra.mxu0 0
        %1711 = vmatprep.subr.bf16.mxu0 0
        %1712 = vmatpush1.bf16.xpose.msra.mxu0 0
        %1713 = vmatprep.subr.bf16.mxu0 0
        %1714 = vmatpush1.bf16.xpose.msra.mxu0 %v1697
        %1715 = vmatprep.subr.bf16.mxu0 0
        %1716 = vmatpush2.bf16.xpose.msra.mxu0 0
        %1717 = vmatprep.subr.bf16.mxu0 0
        %1718 = vmatpush2.bf16.xpose.msra.mxu0 0
        %1719 = vmatprep.subr.bf16.mxu0 0
        %1720 = vmatpush2.bf16.xpose.msra.mxu0 0
        %1721 = vmatprep.subr.bf16.mxu0 0
        %1722 = vmatpush2.bf16.xpose.msra.mxu0 0
        %1723 = vmatprep.subr.bf16.mxu0 0
        %1724 = vmatpush2.bf16.xpose.msra.mxu0 0
        %1725 = vmatprep.subr.bf16.mxu0 0
        %1726 = vmatpush2.bf16.xpose.msra.mxu0 0
        %1727 = vmatprep.subr.bf16.mxu0 0
        %1728 = vmatpush2.bf16.xpose.msra.mxu0 0
        %1729 = vmatprep.subr.bf16.mxu0 0
        %1730 = vmatpush2.bf16.xpose.msra.mxu0 0
        %1731 = vmatprep.mubr.bf16.mxu0 0
        %1732 = vmatmul.mubr.bf16.gmra.mxu0 %v1694
        %v1733 = vpop.f32.mrf.mxu0
        %v1734 = vadd.f32 0.0, %v1733
        %v1735 = vpop.f32.mrf.mxu0
        %v1736 = vpop.f32.mrf.mxu0
        %v1737 = vpop.f32.mrf.mxu0
        %1738 = vdwg.mxu0
        %1740 = vrot.lane.b32.xlu0 %v1178, 96
        %v1741 = vpop.permute.xlu0 %1740
        %v1743 = vsel %vm1202, %v1178, 0
        %v1746 = vsel %vm1202, %v1741, 0
        %1748 = vmatprep.subr.bf16.mxu0 0
        %1749 = vmatpush1.bf16.xpose.msra.mxu0 0
        %1750 = vmatprep.subr.bf16.mxu0 0
        %1751 = vmatpush1.bf16.xpose.msra.mxu0 0
        %1752 = vmatprep.subr.bf16.mxu0 0
        %1753 = vmatpush1.bf16.xpose.msra.mxu0 0
        %1754 = vmatprep.subr.bf16.mxu0 0
        %1755 = vmatpush1.bf16.xpose.msra.mxu0 0
        %1756 = vmatprep.subr.bf16.mxu0 0
        %1757 = vmatpush1.bf16.xpose.msra.mxu0 0
        %1758 = vmatprep.subr.bf16.mxu0 0
        %1759 = vmatpush1.bf16.xpose.msra.mxu0 0
        %1760 = vmatprep.subr.bf16.mxu0 0
        %1761 = vmatpush1.bf16.xpose.msra.mxu0 0
        %1762 = vmatprep.subr.bf16.mxu0 0
        %1763 = vmatpush1.bf16.xpose.msra.mxu0 %v1746
        %1764 = vmatprep.subr.bf16.mxu0 0
        %1765 = vmatpush2.bf16.xpose.msra.mxu0 0
        %1766 = vmatprep.subr.bf16.mxu0 0
        %1767 = vmatpush2.bf16.xpose.msra.mxu0 0
        %1768 = vmatprep.subr.bf16.mxu0 0
        %1769 = vmatpush2.bf16.xpose.msra.mxu0 0
        %1770 = vmatprep.subr.bf16.mxu0 0
        %1771 = vmatpush2.bf16.xpose.msra.mxu0 0
        %1772 = vmatprep.subr.bf16.mxu0 0
        %1773 = vmatpush2.bf16.xpose.msra.mxu0 0
        %1774 = vmatprep.subr.bf16.mxu0 0
        %1775 = vmatpush2.bf16.xpose.msra.mxu0 0
        %1776 = vmatprep.subr.bf16.mxu0 0
        %1777 = vmatpush2.bf16.xpose.msra.mxu0 0
        %1778 = vmatprep.subr.bf16.mxu0 0
        %1779 = vmatpush2.bf16.xpose.msra.mxu0 0
        %1780 = vmatprep.mubr.bf16.mxu0 0
        %1781 = vmatmul.mubr.bf16.gmra.mxu0 %v1743
        %v1782 = vpop.f32.mrf.mxu0
        %v1783 = vadd.f32 0.0, %v1782
        %v1784 = vpop.f32.mrf.mxu0
        %v1785 = vpop.f32.mrf.mxu0
        %v1786 = vpop.f32.mrf.mxu0
        %1787 = vdwg.mxu0
        %1789 = vrot.lane.b32.xlu0 %v1179, 96
        %v1790 = vpop.permute.xlu0 %1789
        %v1792 = vsel %vm1202, %v1179, 0
        %v1795 = vsel %vm1202, %v1790, 0
        %1797 = vmatprep.subr.bf16.mxu0 0
        %1798 = vmatpush1.bf16.xpose.msra.mxu0 0
        %1799 = vmatprep.subr.bf16.mxu0 0
        %1800 = vmatpush1.bf16.xpose.msra.mxu0 0
        %1801 = vmatprep.subr.bf16.mxu0 0
        %1802 = vmatpush1.bf16.xpose.msra.mxu0 0
        %1803 = vmatprep.subr.bf16.mxu0 0
        %1804 = vmatpush1.bf16.xpose.msra.mxu0 0
        %1805 = vmatprep.subr.bf16.mxu0 0
        %1806 = vmatpush1.bf16.xpose.msra.mxu0 0
        %1807 = vmatprep.subr.bf16.mxu0 0
        %1808 = vmatpush1.bf16.xpose.msra.mxu0 0
        %1809 = vmatprep.subr.bf16.mxu0 0
        %1810 = vmatpush1.bf16.xpose.msra.mxu0 0
        %1811 = vmatprep.subr.bf16.mxu0 0
        %1812 = vmatpush1.bf16.xpose.msra.mxu0 %v1795
        %1813 = vmatprep.subr.bf16.mxu0 0
        %1814 = vmatpush2.bf16.xpose.msra.mxu0 0
        %1815 = vmatprep.subr.bf16.mxu0 0
        %1816 = vmatpush2.bf16.xpose.msra.mxu0 0
        %1817 = vmatprep.subr.bf16.mxu0 0
        %1818 = vmatpush2.bf16.xpose.msra.mxu0 0
        %1819 = vmatprep.subr.bf16.mxu0 0
        %1820 = vmatpush2.bf16.xpose.msra.mxu0 0
        %1821 = vmatprep.subr.bf16.mxu0 0
        %1822 = vmatpush2.bf16.xpose.msra.mxu0 0
        %1823 = vmatprep.subr.bf16.mxu0 0
        %1824 = vmatpush2.bf16.xpose.msra.mxu0 0
        %1825 = vmatprep.subr.bf16.mxu0 0
        %1826 = vmatpush2.bf16.xpose.msra.mxu0 0
        %1827 = vmatprep.subr.bf16.mxu0 0
        %1828 = vmatpush2.bf16.xpose.msra.mxu0 0
        %1829 = vmatprep.mubr.bf16.mxu0 0
        %1830 = vmatmul.mubr.bf16.gmra.mxu0 %v1792
        %v1831 = vpop.f32.mrf.mxu0
        %v1832 = vadd.f32 0.0, %v1831
        %v1833 = vpop.f32.mrf.mxu0
        %v1834 = vpop.f32.mrf.mxu0
        %v1835 = vpop.f32.mrf.mxu0
        %1836 = vdwg.mxu0
        %1838 = vrot.lane.b32.xlu0 %v1180, 96
        %v1839 = vpop.permute.xlu0 %1838
        %v1841 = vsel %vm1202, %v1180, 0
        %v1844 = vsel %vm1202, %v1839, 0
        %1846 = vmatprep.subr.bf16.mxu0 0
        %1847 = vmatpush1.bf16.xpose.msra.mxu0 0
        %1848 = vmatprep.subr.bf16.mxu0 0
        %1849 = vmatpush1.bf16.xpose.msra.mxu0 0
        %1850 = vmatprep.subr.bf16.mxu0 0
        %1851 = vmatpush1.bf16.xpose.msra.mxu0 0
        %1852 = vmatprep.subr.bf16.mxu0 0
        %1853 = vmatpush1.bf16.xpose.msra.mxu0 0
        %1854 = vmatprep.subr.bf16.mxu0 0
        %1855 = vmatpush1.bf16.xpose.msra.mxu0 0
        %1856 = vmatprep.subr.bf16.mxu0 0
        %1857 = vmatpush1.bf16.xpose.msra.mxu0 0
        %1858 = vmatprep.subr.bf16.mxu0 0
        %1859 = vmatpush1.bf16.xpose.msra.mxu0 0
        %1860 = vmatprep.subr.bf16.mxu0 0
        %1861 = vmatpush1.bf16.xpose.msra.mxu0 %v1844
        %1862 = vmatprep.subr.bf16.mxu0 0
        %1863 = vmatpush2.bf16.xpose.msra.mxu0 0
        %1864 = vmatprep.subr.bf16.mxu0 0
        %1865 = vmatpush2.bf16.xpose.msra.mxu0 0
        %1866 = vmatprep.subr.bf16.mxu0 0
        %1867 = vmatpush2.bf16.xpose.msra.mxu0 0
        %1868 = vmatprep.subr.bf16.mxu0 0
        %1869 = vmatpush2.bf16.xpose.msra.mxu0 0
        %1870 = vmatprep.subr.bf16.mxu0 0
        %1871 = vmatpush2.bf16.xpose.msra.mxu0 0
        %1872 = vmatprep.subr.bf16.mxu0 0
        %1873 = vmatpush2.bf16.xpose.msra.mxu0 0
        %1874 = vmatprep.subr.bf16.mxu0 0
        %1875 = vmatpush2.bf16.xpose.msra.mxu0 0
        %1876 = vmatprep.subr.bf16.mxu0 0
        %1877 = vmatpush2.bf16.xpose.msra.mxu0 0
        %1878 = vmatprep.mubr.bf16.mxu0 0
        %1879 = vmatmul.mubr.bf16.gmra.mxu0 %v1841
        %v1880 = vpop.f32.mrf.mxu0
        %v1881 = vadd.f32 0.0, %v1880
        %v1882 = vpop.f32.mrf.mxu0
        %v1883 = vpop.f32.mrf.mxu0
        %v1884 = vpop.f32.mrf.mxu0
        %1885 = vdwg.mxu0
        %1887 = vrot.lane.b32.xlu0 %v1181, 96
        %v1888 = vpop.permute.xlu0 %1887
        %v1890 = vsel %vm1202, %v1181, 0
        %v1893 = vsel %vm1202, %v1888, 0
        %1895 = vmatprep.subr.bf16.mxu0 0
        %1896 = vmatpush1.bf16.xpose.msra.mxu0 0
        %1897 = vmatprep.subr.bf16.mxu0 0
        %1898 = vmatpush1.bf16.xpose.msra.mxu0 0
        %1899 = vmatprep.subr.bf16.mxu0 0
        %1900 = vmatpush1.bf16.xpose.msra.mxu0 0
        %1901 = vmatprep.subr.bf16.mxu0 0
        %1902 = vmatpush1.bf16.xpose.msra.mxu0 0
        %1903 = vmatprep.subr.bf16.mxu0 0
        %1904 = vmatpush1.bf16.xpose.msra.mxu0 0
        %1905 = vmatprep.subr.bf16.mxu0 0
        %1906 = vmatpush1.bf16.xpose.msra.mxu0 0
        %1907 = vmatprep.subr.bf16.mxu0 0
        %1908 = vmatpush1.bf16.xpose.msra.mxu0 0
        %1909 = vmatprep.subr.bf16.mxu0 0
        %1910 = vmatpush1.bf16.xpose.msra.mxu0 %v1893
        %1911 = vmatprep.subr.bf16.mxu0 0
        %1912 = vmatpush2.bf16.xpose.msra.mxu0 0
        %1913 = vmatprep.subr.bf16.mxu0 0
        %1914 = vmatpush2.bf16.xpose.msra.mxu0 0
        %1915 = vmatprep.subr.bf16.mxu0 0
        %1916 = vmatpush2.bf16.xpose.msra.mxu0 0
        %1917 = vmatprep.subr.bf16.mxu0 0
        %1918 = vmatpush2.bf16.xpose.msra.mxu0 0
        %1919 = vmatprep.subr.bf16.mxu0 0
        %1920 = vmatpush2.bf16.xpose.msra.mxu0 0
        %1921 = vmatprep.subr.bf16.mxu0 0
        %1922 = vmatpush2.bf16.xpose.msra.mxu0 0
        %1923 = vmatprep.subr.bf16.mxu0 0
        %1924 = vmatpush2.bf16.xpose.msra.mxu0 0
        %1925 = vmatprep.subr.bf16.mxu0 0
        %1926 = vmatpush2.bf16.xpose.msra.mxu0 0
        %1927 = vmatprep.mubr.bf16.mxu0 0
        %1928 = vmatmul.mubr.bf16.gmra.mxu0 %v1890
        %v1929 = vpop.f32.mrf.mxu0
        %v1930 = vadd.f32 0.0, %v1929
        %v1931 = vpop.f32.mrf.mxu0
        %v1932 = vpop.f32.mrf.mxu0
        %v1933 = vpop.f32.mrf.mxu0
        %1934 = vdwg.mxu0
        %1936 = vrot.lane.b32.xlu0 %v1182, 96
        %v1937 = vpop.permute.xlu0 %1936
        %v1939 = vsel %vm1202, %v1182, 0
        %v1942 = vsel %vm1202, %v1937, 0
        %1944 = vmatprep.subr.bf16.mxu0 0
        %1945 = vmatpush1.bf16.xpose.msra.mxu0 0
        %1946 = vmatprep.subr.bf16.mxu0 0
        %1947 = vmatpush1.bf16.xpose.msra.mxu0 0
        %1948 = vmatprep.subr.bf16.mxu0 0
        %1949 = vmatpush1.bf16.xpose.msra.mxu0 0
        %1950 = vmatprep.subr.bf16.mxu0 0
        %1951 = vmatpush1.bf16.xpose.msra.mxu0 0
        %1952 = vmatprep.subr.bf16.mxu0 0
        %1953 = vmatpush1.bf16.xpose.msra.mxu0 0
        %1954 = vmatprep.subr.bf16.mxu0 0
        %1955 = vmatpush1.bf16.xpose.msra.mxu0 0
        %1956 = vmatprep.subr.bf16.mxu0 0
        %1957 = vmatpush1.bf16.xpose.msra.mxu0 0
        %1958 = vmatprep.subr.bf16.mxu0 0
        %1959 = vmatpush1.bf16.xpose.msra.mxu0 %v1942
        %1960 = vmatprep.subr.bf16.mxu0 0
        %1961 = vmatpush2.bf16.xpose.msra.mxu0 0
        %1962 = vmatprep.subr.bf16.mxu0 0
        %1963 = vmatpush2.bf16.xpose.msra.mxu0 0
        %1964 = vmatprep.subr.bf16.mxu0 0
        %1965 = vmatpush2.bf16.xpose.msra.mxu0 0
        %1966 = vmatprep.subr.bf16.mxu0 0
        %1967 = vmatpush2.bf16.xpose.msra.mxu0 0
        %1968 = vmatprep.subr.bf16.mxu0 0
        %1969 = vmatpush2.bf16.xpose.msra.mxu0 0
        %1970 = vmatprep.subr.bf16.mxu0 0
        %1971 = vmatpush2.bf16.xpose.msra.mxu0 0
        %1972 = vmatprep.subr.bf16.mxu0 0
        %1973 = vmatpush2.bf16.xpose.msra.mxu0 0
        %1974 = vmatprep.subr.bf16.mxu0 0
        %1975 = vmatpush2.bf16.xpose.msra.mxu0 0
        %1976 = vmatprep.mubr.bf16.mxu0 0
        %1977 = vmatmul.mubr.bf16.gmra.mxu0 %v1939
        %v1978 = vpop.f32.mrf.mxu0
        %v1979 = vadd.f32 0.0, %v1978
        %v1980 = vpop.f32.mrf.mxu0
        %v1981 = vpop.f32.mrf.mxu0
        %v1982 = vpop.f32.mrf.mxu0
        %1983 = vdwg.mxu0
        %1985 = vrot.lane.b32.xlu0 %v1183, 96
        %v1986 = vpop.permute.xlu0 %1985
        %v1988 = vsel %vm1202, %v1183, 0
        %v1991 = vsel %vm1202, %v1986, 0
        %1993 = vmatprep.subr.bf16.mxu0 0
        %1994 = vmatpush1.bf16.xpose.msra.mxu0 0
        %1995 = vmatprep.subr.bf16.mxu0 0
        %1996 = vmatpush1.bf16.xpose.msra.mxu0 0
        %1997 = vmatprep.subr.bf16.mxu0 0
        %1998 = vmatpush1.bf16.xpose.msra.mxu0 0
        %1999 = vmatprep.subr.bf16.mxu0 0
        %2000 = vmatpush1.bf16.xpose.msra.mxu0 0
        %2001 = vmatprep.subr.bf16.mxu0 0
        %2002 = vmatpush1.bf16.xpose.msra.mxu0 0
        %2003 = vmatprep.subr.bf16.mxu0 0
        %2004 = vmatpush1.bf16.xpose.msra.mxu0 0
        %2005 = vmatprep.subr.bf16.mxu0 0
        %2006 = vmatpush1.bf16.xpose.msra.mxu0 0
        %2007 = vmatprep.subr.bf16.mxu0 0
        %2008 = vmatpush1.bf16.xpose.msra.mxu0 %v1991
        %2009 = vmatprep.subr.bf16.mxu0 0
        %2010 = vmatpush2.bf16.xpose.msra.mxu0 0
        %2011 = vmatprep.subr.bf16.mxu0 0
        %2012 = vmatpush2.bf16.xpose.msra.mxu0 0
        %2013 = vmatprep.subr.bf16.mxu0 0
        %2014 = vmatpush2.bf16.xpose.msra.mxu0 0
        %2015 = vmatprep.subr.bf16.mxu0 0
        %2016 = vmatpush2.bf16.xpose.msra.mxu0 0
        %2017 = vmatprep.subr.bf16.mxu0 0
        %2018 = vmatpush2.bf16.xpose.msra.mxu0 0
        %2019 = vmatprep.subr.bf16.mxu0 0
        %2020 = vmatpush2.bf16.xpose.msra.mxu0 0
        %2021 = vmatprep.subr.bf16.mxu0 0
        %2022 = vmatpush2.bf16.xpose.msra.mxu0 0
        %2023 = vmatprep.subr.bf16.mxu0 0
        %2024 = vmatpush2.bf16.xpose.msra.mxu0 0
        %2025 = vmatprep.mubr.bf16.mxu0 0
        %2026 = vmatmul.mubr.bf16.gmra.mxu0 %v1988
        %v2027 = vpop.f32.mrf.mxu0
        %v2028 = vadd.f32 0.0, %v2027
        %v2029 = vpop.f32.mrf.mxu0
        %v2030 = vpop.f32.mrf.mxu0
        %v2031 = vpop.f32.mrf.mxu0
        %2032 = vdwg.mxu0
        %2034 = vrot.lane.b32.xlu0 %v1184, 96
        %v2035 = vpop.permute.xlu0 %2034
        %v2037 = vsel %vm1202, %v1184, 0
        %v2040 = vsel %vm1202, %v2035, 0
        %2042 = vmatprep.subr.bf16.mxu0 0
        %2043 = vmatpush1.bf16.xpose.msra.mxu0 0
        %2044 = vmatprep.subr.bf16.mxu0 0
        %2045 = vmatpush1.bf16.xpose.msra.mxu0 0
        %2046 = vmatprep.subr.bf16.mxu0 0
        %2047 = vmatpush1.bf16.xpose.msra.mxu0 0
        %2048 = vmatprep.subr.bf16.mxu0 0
        %2049 = vmatpush1.bf16.xpose.msra.mxu0 0
        %2050 = vmatprep.subr.bf16.mxu0 0
        %2051 = vmatpush1.bf16.xpose.msra.mxu0 0
        %2052 = vmatprep.subr.bf16.mxu0 0
        %2053 = vmatpush1.bf16.xpose.msra.mxu0 0
        %2054 = vmatprep.subr.bf16.mxu0 0
        %2055 = vmatpush1.bf16.xpose.msra.mxu0 0
        %2056 = vmatprep.subr.bf16.mxu0 0
        %2057 = vmatpush1.bf16.xpose.msra.mxu0 %v2040
        %2058 = vmatprep.subr.bf16.mxu0 0
        %2059 = vmatpush2.bf16.xpose.msra.mxu0 0
        %2060 = vmatprep.subr.bf16.mxu0 0
        %2061 = vmatpush2.bf16.xpose.msra.mxu0 0
        %2062 = vmatprep.subr.bf16.mxu0 0
        %2063 = vmatpush2.bf16.xpose.msra.mxu0 0
        %2064 = vmatprep.subr.bf16.mxu0 0
        %2065 = vmatpush2.bf16.xpose.msra.mxu0 0
        %2066 = vmatprep.subr.bf16.mxu0 0
        %2067 = vmatpush2.bf16.xpose.msra.mxu0 0
        %2068 = vmatprep.subr.bf16.mxu0 0
        %2069 = vmatpush2.bf16.xpose.msra.mxu0 0
        %2070 = vmatprep.subr.bf16.mxu0 0
        %2071 = vmatpush2.bf16.xpose.msra.mxu0 0
        %2072 = vmatprep.subr.bf16.mxu0 0
        %2073 = vmatpush2.bf16.xpose.msra.mxu0 0
        %2074 = vmatprep.mubr.bf16.mxu0 0
        %2075 = vmatmul.mubr.bf16.gmra.mxu0 %v2037
        %v2076 = vpop.f32.mrf.mxu0
        %v2077 = vadd.f32 0.0, %v2076
        %v2078 = vpop.f32.mrf.mxu0
        %v2079 = vpop.f32.mrf.mxu0
        %v2080 = vpop.f32.mrf.mxu0
        %2081 = vdwg.mxu0
        %2083 = vrot.lane.b32.xlu0 %v1185, 96
        %v2084 = vpop.permute.xlu0 %2083
        %v2086 = vsel %vm1202, %v1185, 0
        %v2089 = vsel %vm1202, %v2084, 0
        %2091 = vmatprep.subr.bf16.mxu0 0
        %2092 = vmatpush1.bf16.xpose.msra.mxu0 0
        %2093 = vmatprep.subr.bf16.mxu0 0
        %2094 = vmatpush1.bf16.xpose.msra.mxu0 0
        %2095 = vmatprep.subr.bf16.mxu0 0
        %2096 = vmatpush1.bf16.xpose.msra.mxu0 0
        %2097 = vmatprep.subr.bf16.mxu0 0
        %2098 = vmatpush1.bf16.xpose.msra.mxu0 0
        %2099 = vmatprep.subr.bf16.mxu0 0
        %2100 = vmatpush1.bf16.xpose.msra.mxu0 0
        %2101 = vmatprep.subr.bf16.mxu0 0
        %2102 = vmatpush1.bf16.xpose.msra.mxu0 0
        %2103 = vmatprep.subr.bf16.mxu0 0
        %2104 = vmatpush1.bf16.xpose.msra.mxu0 0
        %2105 = vmatprep.subr.bf16.mxu0 0
        %2106 = vmatpush1.bf16.xpose.msra.mxu0 %v2089
        %2107 = vmatprep.subr.bf16.mxu0 0
        %2108 = vmatpush2.bf16.xpose.msra.mxu0 0
        %2109 = vmatprep.subr.bf16.mxu0 0
        %2110 = vmatpush2.bf16.xpose.msra.mxu0 0
        %2111 = vmatprep.subr.bf16.mxu0 0
        %2112 = vmatpush2.bf16.xpose.msra.mxu0 0
        %2113 = vmatprep.subr.bf16.mxu0 0
        %2114 = vmatpush2.bf16.xpose.msra.mxu0 0
        %2115 = vmatprep.subr.bf16.mxu0 0
        %2116 = vmatpush2.bf16.xpose.msra.mxu0 0
        %2117 = vmatprep.subr.bf16.mxu0 0
        %2118 = vmatpush2.bf16.xpose.msra.mxu0 0
        %2119 = vmatprep.subr.bf16.mxu0 0
        %2120 = vmatpush2.bf16.xpose.msra.mxu0 0
        %2121 = vmatprep.subr.bf16.mxu0 0
        %2122 = vmatpush2.bf16.xpose.msra.mxu0 0
        %2123 = vmatprep.mubr.bf16.mxu0 0
        %2124 = vmatmul.mubr.bf16.gmra.mxu0 %v2086
        %v2125 = vpop.f32.mrf.mxu0
        %v2126 = vadd.f32 0.0, %v2125
        %v2127 = vpop.f32.mrf.mxu0
        %v2128 = vpop.f32.mrf.mxu0
        %v2129 = vpop.f32.mrf.mxu0
        %2130 = vdwg.mxu0
        %2132 = vrot.lane.b32.xlu0 %v1186, 96
        %v2133 = vpop.permute.xlu0 %2132
        %v2135 = vsel %vm1202, %v1186, 0
        %v2138 = vsel %vm1202, %v2133, 0
        %2140 = vmatprep.subr.bf16.mxu0 0
        %2141 = vmatpush1.bf16.xpose.msra.mxu0 0
        %2142 = vmatprep.subr.bf16.mxu0 0
        %2143 = vmatpush1.bf16.xpose.msra.mxu0 0
        %2144 = vmatprep.subr.bf16.mxu0 0
        %2145 = vmatpush1.bf16.xpose.msra.mxu0 0
        %2146 = vmatprep.subr.bf16.mxu0 0
        %2147 = vmatpush1.bf16.xpose.msra.mxu0 0
        %2148 = vmatprep.subr.bf16.mxu0 0
        %2149 = vmatpush1.bf16.xpose.msra.mxu0 0
        %2150 = vmatprep.subr.bf16.mxu0 0
        %2151 = vmatpush1.bf16.xpose.msra.mxu0 0
        %2152 = vmatprep.subr.bf16.mxu0 0
        %2153 = vmatpush1.bf16.xpose.msra.mxu0 0
        %2154 = vmatprep.subr.bf16.mxu0 0
        %2155 = vmatpush1.bf16.xpose.msra.mxu0 %v2138
        %2156 = vmatprep.subr.bf16.mxu0 0
        %2157 = vmatpush2.bf16.xpose.msra.mxu0 0
        %2158 = vmatprep.subr.bf16.mxu0 0
        %2159 = vmatpush2.bf16.xpose.msra.mxu0 0
        %2160 = vmatprep.subr.bf16.mxu0 0
        %2161 = vmatpush2.bf16.xpose.msra.mxu0 0
        %2162 = vmatprep.subr.bf16.mxu0 0
        %2163 = vmatpush2.bf16.xpose.msra.mxu0 0
        %2164 = vmatprep.subr.bf16.mxu0 0
        %2165 = vmatpush2.bf16.xpose.msra.mxu0 0
        %2166 = vmatprep.subr.bf16.mxu0 0
        %2167 = vmatpush2.bf16.xpose.msra.mxu0 0
        %2168 = vmatprep.subr.bf16.mxu0 0
        %2169 = vmatpush2.bf16.xpose.msra.mxu0 0
        %2170 = vmatprep.subr.bf16.mxu0 0
        %2171 = vmatpush2.bf16.xpose.msra.mxu0 0
        %2172 = vmatprep.mubr.bf16.mxu0 0
        %2173 = vmatmul.mubr.bf16.gmra.mxu0 %v2135
        %v2174 = vpop.f32.mrf.mxu0
        %v2175 = vadd.f32 0.0, %v2174
        %v2176 = vpop.f32.mrf.mxu0
        %v2177 = vpop.f32.mrf.mxu0
        %v2178 = vpop.f32.mrf.mxu0
        %2179 = vdwg.mxu0
        %2181 = vrot.lane.b32.xlu0 %v1187, 96
        %v2182 = vpop.permute.xlu0 %2181
        %v2184 = vsel %vm1202, %v1187, 0
        %v2187 = vsel %vm1202, %v2182, 0
        %2189 = vmatprep.subr.bf16.mxu0 0
        %2190 = vmatpush1.bf16.xpose.msra.mxu0 0
        %2191 = vmatprep.subr.bf16.mxu0 0
        %2192 = vmatpush1.bf16.xpose.msra.mxu0 0
        %2193 = vmatprep.subr.bf16.mxu0 0
        %2194 = vmatpush1.bf16.xpose.msra.mxu0 0
        %2195 = vmatprep.subr.bf16.mxu0 0
        %2196 = vmatpush1.bf16.xpose.msra.mxu0 0
        %2197 = vmatprep.subr.bf16.mxu0 0
        %2198 = vmatpush1.bf16.xpose.msra.mxu0 0
        %2199 = vmatprep.subr.bf16.mxu0 0
        %2200 = vmatpush1.bf16.xpose.msra.mxu0 0
        %2201 = vmatprep.subr.bf16.mxu0 0
        %2202 = vmatpush1.bf16.xpose.msra.mxu0 0
        %2203 = vmatprep.subr.bf16.mxu0 0
        %2204 = vmatpush1.bf16.xpose.msra.mxu0 %v2187
        %2205 = vmatprep.subr.bf16.mxu0 0
        %2206 = vmatpush2.bf16.xpose.msra.mxu0 0
        %2207 = vmatprep.subr.bf16.mxu0 0
        %2208 = vmatpush2.bf16.xpose.msra.mxu0 0
        %2209 = vmatprep.subr.bf16.mxu0 0
        %2210 = vmatpush2.bf16.xpose.msra.mxu0 0
        %2211 = vmatprep.subr.bf16.mxu0 0
        %2212 = vmatpush2.bf16.xpose.msra.mxu0 0
        %2213 = vmatprep.subr.bf16.mxu0 0
        %2214 = vmatpush2.bf16.xpose.msra.mxu0 0
        %2215 = vmatprep.subr.bf16.mxu0 0
        %2216 = vmatpush2.bf16.xpose.msra.mxu0 0
        %2217 = vmatprep.subr.bf16.mxu0 0
        %2218 = vmatpush2.bf16.xpose.msra.mxu0 0
        %2219 = vmatprep.subr.bf16.mxu0 0
        %2220 = vmatpush2.bf16.xpose.msra.mxu0 0
        %2221 = vmatprep.mubr.bf16.mxu0 0
        %2222 = vmatmul.mubr.bf16.gmra.mxu0 %v2184
        %v2223 = vpop.f32.mrf.mxu0
        %v2224 = vadd.f32 0.0, %v2223
        %v2225 = vpop.f32.mrf.mxu0
        %v2226 = vpop.f32.mrf.mxu0
        %v2227 = vpop.f32.mrf.mxu0
        %2228 = vdwg.mxu0
        %2230 = vrot.lane.b32.xlu0 %v1188, 96
        %v2231 = vpop.permute.xlu0 %2230
        %v2233 = vsel %vm1202, %v1188, 0
        %v2236 = vsel %vm1202, %v2231, 0
        %2238 = vmatprep.subr.bf16.mxu0 0
        %2239 = vmatpush1.bf16.xpose.msra.mxu0 0
        %2240 = vmatprep.subr.bf16.mxu0 0
        %2241 = vmatpush1.bf16.xpose.msra.mxu0 0
        %2242 = vmatprep.subr.bf16.mxu0 0
        %2243 = vmatpush1.bf16.xpose.msra.mxu0 0
        %2244 = vmatprep.subr.bf16.mxu0 0
        %2245 = vmatpush1.bf16.xpose.msra.mxu0 0
        %2246 = vmatprep.subr.bf16.mxu0 0
        %2247 = vmatpush1.bf16.xpose.msra.mxu0 0
        %2248 = vmatprep.subr.bf16.mxu0 0
        %2249 = vmatpush1.bf16.xpose.msra.mxu0 0
        %2250 = vmatprep.subr.bf16.mxu0 0
        %2251 = vmatpush1.bf16.xpose.msra.mxu0 0
        %2252 = vmatprep.subr.bf16.mxu0 0
        %2253 = vmatpush1.bf16.xpose.msra.mxu0 %v2236
        %2254 = vmatprep.subr.bf16.mxu0 0
        %2255 = vmatpush2.bf16.xpose.msra.mxu0 0
        %2256 = vmatprep.subr.bf16.mxu0 0
        %2257 = vmatpush2.bf16.xpose.msra.mxu0 0
        %2258 = vmatprep.subr.bf16.mxu0 0
        %2259 = vmatpush2.bf16.xpose.msra.mxu0 0
        %2260 = vmatprep.subr.bf16.mxu0 0
        %2261 = vmatpush2.bf16.xpose.msra.mxu0 0
        %2262 = vmatprep.subr.bf16.mxu0 0
        %2263 = vmatpush2.bf16.xpose.msra.mxu0 0
        %2264 = vmatprep.subr.bf16.mxu0 0
        %2265 = vmatpush2.bf16.xpose.msra.mxu0 0
        %2266 = vmatprep.subr.bf16.mxu0 0
        %2267 = vmatpush2.bf16.xpose.msra.mxu0 0
        %2268 = vmatprep.subr.bf16.mxu0 0
        %2269 = vmatpush2.bf16.xpose.msra.mxu0 0
        %2270 = vmatprep.mubr.bf16.mxu0 0
        %2271 = vmatmul.mubr.bf16.gmra.mxu0 %v2233
        %v2272 = vpop.f32.mrf.mxu0
        %v2273 = vadd.f32 0.0, %v2272
        %v2274 = vpop.f32.mrf.mxu0
        %v2275 = vpop.f32.mrf.mxu0
        %v2276 = vpop.f32.mrf.mxu0
        %2277 = vdwg.mxu0
        %2279 = vrot.lane.b32.xlu0 %v1189, 96
        %v2280 = vpop.permute.xlu0 %2279
        %v2282 = vsel %vm1202, %v1189, 0
        %v2285 = vsel %vm1202, %v2280, 0
        %2287 = vmatprep.subr.bf16.mxu0 0
        %2288 = vmatpush1.bf16.xpose.msra.mxu0 0
        %2289 = vmatprep.subr.bf16.mxu0 0
        %2290 = vmatpush1.bf16.xpose.msra.mxu0 0
        %2291 = vmatprep.subr.bf16.mxu0 0
        %2292 = vmatpush1.bf16.xpose.msra.mxu0 0
        %2293 = vmatprep.subr.bf16.mxu0 0
        %2294 = vmatpush1.bf16.xpose.msra.mxu0 0
        %2295 = vmatprep.subr.bf16.mxu0 0
        %2296 = vmatpush1.bf16.xpose.msra.mxu0 0
        %2297 = vmatprep.subr.bf16.mxu0 0
        %2298 = vmatpush1.bf16.xpose.msra.mxu0 0
        %2299 = vmatprep.subr.bf16.mxu0 0
        %2300 = vmatpush1.bf16.xpose.msra.mxu0 0
        %2301 = vmatprep.subr.bf16.mxu0 0
        %2302 = vmatpush1.bf16.xpose.msra.mxu0 %v2285
        %2303 = vmatprep.subr.bf16.mxu0 0
        %2304 = vmatpush2.bf16.xpose.msra.mxu0 0
        %2305 = vmatprep.subr.bf16.mxu0 0
        %2306 = vmatpush2.bf16.xpose.msra.mxu0 0
        %2307 = vmatprep.subr.bf16.mxu0 0
        %2308 = vmatpush2.bf16.xpose.msra.mxu0 0
        %2309 = vmatprep.subr.bf16.mxu0 0
        %2310 = vmatpush2.bf16.xpose.msra.mxu0 0
        %2311 = vmatprep.subr.bf16.mxu0 0
        %2312 = vmatpush2.bf16.xpose.msra.mxu0 0
        %2313 = vmatprep.subr.bf16.mxu0 0
        %2314 = vmatpush2.bf16.xpose.msra.mxu0 0
        %2315 = vmatprep.subr.bf16.mxu0 0
        %2316 = vmatpush2.bf16.xpose.msra.mxu0 0
        %2317 = vmatprep.subr.bf16.mxu0 0
        %2318 = vmatpush2.bf16.xpose.msra.mxu0 0
        %2319 = vmatprep.mubr.bf16.mxu0 0
        %2320 = vmatmul.mubr.bf16.gmra.mxu0 %v2282
        %v2321 = vpop.f32.mrf.mxu0
        %v2322 = vadd.f32 0.0, %v2321
        %v2323 = vpop.f32.mrf.mxu0
        %v2324 = vpop.f32.mrf.mxu0
        %v2325 = vpop.f32.mrf.mxu0
        %2326 = vdwg.mxu0
        %2328 = vrot.lane.b32.xlu0 %v1190, 96
        %v2329 = vpop.permute.xlu0 %2328
        %v2331 = vsel %vm1202, %v1190, 0
        %v2334 = vsel %vm1202, %v2329, 0
        %2336 = vmatprep.subr.bf16.mxu0 0
        %2337 = vmatpush1.bf16.xpose.msra.mxu0 0
        %2338 = vmatprep.subr.bf16.mxu0 0
        %2339 = vmatpush1.bf16.xpose.msra.mxu0 0
        %2340 = vmatprep.subr.bf16.mxu0 0
        %2341 = vmatpush1.bf16.xpose.msra.mxu0 0
        %2342 = vmatprep.subr.bf16.mxu0 0
        %2343 = vmatpush1.bf16.xpose.msra.mxu0 0
        %2344 = vmatprep.subr.bf16.mxu0 0
        %2345 = vmatpush1.bf16.xpose.msra.mxu0 0
        %2346 = vmatprep.subr.bf16.mxu0 0
        %2347 = vmatpush1.bf16.xpose.msra.mxu0 0
        %2348 = vmatprep.subr.bf16.mxu0 0
        %2349 = vmatpush1.bf16.xpose.msra.mxu0 0
        %2350 = vmatprep.subr.bf16.mxu0 0
        %2351 = vmatpush1.bf16.xpose.msra.mxu0 %v2334
        %2352 = vmatprep.subr.bf16.mxu0 0
        %2353 = vmatpush2.bf16.xpose.msra.mxu0 0
        %2354 = vmatprep.subr.bf16.mxu0 0
        %2355 = vmatpush2.bf16.xpose.msra.mxu0 0
        %2356 = vmatprep.subr.bf16.mxu0 0
        %2357 = vmatpush2.bf16.xpose.msra.mxu0 0
        %2358 = vmatprep.subr.bf16.mxu0 0
        %2359 = vmatpush2.bf16.xpose.msra.mxu0 0
        %2360 = vmatprep.subr.bf16.mxu0 0
        %2361 = vmatpush2.bf16.xpose.msra.mxu0 0
        %2362 = vmatprep.subr.bf16.mxu0 0
        %2363 = vmatpush2.bf16.xpose.msra.mxu0 0
        %2364 = vmatprep.subr.bf16.mxu0 0
        %2365 = vmatpush2.bf16.xpose.msra.mxu0 0
        %2366 = vmatprep.subr.bf16.mxu0 0
        %2367 = vmatpush2.bf16.xpose.msra.mxu0 0
        %2368 = vmatprep.mubr.bf16.mxu0 0
        %2369 = vmatmul.mubr.bf16.gmra.mxu0 %v2331
        %v2370 = vpop.f32.mrf.mxu0
        %v2371 = vadd.f32 0.0, %v2370
        %v2372 = vpop.f32.mrf.mxu0
        %v2373 = vpop.f32.mrf.mxu0
        %v2374 = vpop.f32.mrf.mxu0
        %2375 = vdwg.mxu0
        %2377 = vrot.lane.b32.xlu0 %v1191, 96
        %v2378 = vpop.permute.xlu0 %2377
        %v2380 = vsel %vm1202, %v1191, 0
        %v2383 = vsel %vm1202, %v2378, 0
        %2385 = vmatprep.subr.bf16.mxu0 0
        %2386 = vmatpush1.bf16.xpose.msra.mxu0 0
        %2387 = vmatprep.subr.bf16.mxu0 0
        %2388 = vmatpush1.bf16.xpose.msra.mxu0 0
        %2389 = vmatprep.subr.bf16.mxu0 0
        %2390 = vmatpush1.bf16.xpose.msra.mxu0 0
        %2391 = vmatprep.subr.bf16.mxu0 0
        %2392 = vmatpush1.bf16.xpose.msra.mxu0 0
        %2393 = vmatprep.subr.bf16.mxu0 0
        %2394 = vmatpush1.bf16.xpose.msra.mxu0 0
        %2395 = vmatprep.subr.bf16.mxu0 0
        %2396 = vmatpush1.bf16.xpose.msra.mxu0 0
        %2397 = vmatprep.subr.bf16.mxu0 0
        %2398 = vmatpush1.bf16.xpose.msra.mxu0 0
        %2399 = vmatprep.subr.bf16.mxu0 0
        %2400 = vmatpush1.bf16.xpose.msra.mxu0 %v2383
        %2401 = vmatprep.subr.bf16.mxu0 0
        %2402 = vmatpush2.bf16.xpose.msra.mxu0 0
        %2403 = vmatprep.subr.bf16.mxu0 0
        %2404 = vmatpush2.bf16.xpose.msra.mxu0 0
        %2405 = vmatprep.subr.bf16.mxu0 0
        %2406 = vmatpush2.bf16.xpose.msra.mxu0 0
        %2407 = vmatprep.subr.bf16.mxu0 0
        %2408 = vmatpush2.bf16.xpose.msra.mxu0 0
        %2409 = vmatprep.subr.bf16.mxu0 0
        %2410 = vmatpush2.bf16.xpose.msra.mxu0 0
        %2411 = vmatprep.subr.bf16.mxu0 0
        %2412 = vmatpush2.bf16.xpose.msra.mxu0 0
        %2413 = vmatprep.subr.bf16.mxu0 0
        %2414 = vmatpush2.bf16.xpose.msra.mxu0 0
        %2415 = vmatprep.subr.bf16.mxu0 0
        %2416 = vmatpush2.bf16.xpose.msra.mxu0 0
        %2417 = vmatprep.mubr.bf16.mxu0 0
        %2418 = vmatmul.mubr.bf16.gmra.mxu0 %v2380
        %v2419 = vpop.f32.mrf.mxu0
        %v2420 = vadd.f32 0.0, %v2419
        %v2421 = vpop.f32.mrf.mxu0
        %v2422 = vpop.f32.mrf.mxu0
        %v2423 = vpop.f32.mrf.mxu0
        %2424 = vdwg.mxu0
        %2426 = vrot.lane.b32.xlu0 %v1192, 96
        %v2427 = vpop.permute.xlu0 %2426
        %v2429 = vsel %vm1202, %v1192, 0
        %v2432 = vsel %vm1202, %v2427, 0
        %2434 = vmatprep.subr.bf16.mxu0 0
        %2435 = vmatpush1.bf16.xpose.msra.mxu0 0
        %2436 = vmatprep.subr.bf16.mxu0 0
        %2437 = vmatpush1.bf16.xpose.msra.mxu0 0
        %2438 = vmatprep.subr.bf16.mxu0 0
        %2439 = vmatpush1.bf16.xpose.msra.mxu0 0
        %2440 = vmatprep.subr.bf16.mxu0 0
        %2441 = vmatpush1.bf16.xpose.msra.mxu0 0
        %2442 = vmatprep.subr.bf16.mxu0 0
        %2443 = vmatpush1.bf16.xpose.msra.mxu0 0
        %2444 = vmatprep.subr.bf16.mxu0 0
        %2445 = vmatpush1.bf16.xpose.msra.mxu0 0
        %2446 = vmatprep.subr.bf16.mxu0 0
        %2447 = vmatpush1.bf16.xpose.msra.mxu0 0
        %2448 = vmatprep.subr.bf16.mxu0 0
        %2449 = vmatpush1.bf16.xpose.msra.mxu0 %v2432
        %2450 = vmatprep.subr.bf16.mxu0 0
        %2451 = vmatpush2.bf16.xpose.msra.mxu0 0
        %2452 = vmatprep.subr.bf16.mxu0 0
        %2453 = vmatpush2.bf16.xpose.msra.mxu0 0
        %2454 = vmatprep.subr.bf16.mxu0 0
        %2455 = vmatpush2.bf16.xpose.msra.mxu0 0
        %2456 = vmatprep.subr.bf16.mxu0 0
        %2457 = vmatpush2.bf16.xpose.msra.mxu0 0
        %2458 = vmatprep.subr.bf16.mxu0 0
        %2459 = vmatpush2.bf16.xpose.msra.mxu0 0
        %2460 = vmatprep.subr.bf16.mxu0 0
        %2461 = vmatpush2.bf16.xpose.msra.mxu0 0
        %2462 = vmatprep.subr.bf16.mxu0 0
        %2463 = vmatpush2.bf16.xpose.msra.mxu0 0
        %2464 = vmatprep.subr.bf16.mxu0 0
        %2465 = vmatpush2.bf16.xpose.msra.mxu0 0
        %2466 = vmatprep.mubr.bf16.mxu0 0
        %2467 = vmatmul.mubr.bf16.gmra.mxu0 %v2429
        %v2468 = vpop.f32.mrf.mxu0
        %v2469 = vadd.f32 0.0, %v2468
        %v2470 = vpop.f32.mrf.mxu0
        %v2471 = vpop.f32.mrf.mxu0
        %v2472 = vpop.f32.mrf.mxu0
        %2473 = vdwg.mxu0
        %2475 = vrot.lane.b32.xlu0 %v1193, 96
        %v2476 = vpop.permute.xlu0 %2475
        %v2478 = vsel %vm1202, %v1193, 0
        %v2481 = vsel %vm1202, %v2476, 0
        %2483 = vmatprep.subr.bf16.mxu0 0
        %2484 = vmatpush1.bf16.xpose.msra.mxu0 0
        %2485 = vmatprep.subr.bf16.mxu0 0
        %2486 = vmatpush1.bf16.xpose.msra.mxu0 0
        %2487 = vmatprep.subr.bf16.mxu0 0
        %2488 = vmatpush1.bf16.xpose.msra.mxu0 0
        %2489 = vmatprep.subr.bf16.mxu0 0
        %2490 = vmatpush1.bf16.xpose.msra.mxu0 0
        %2491 = vmatprep.subr.bf16.mxu0 0
        %2492 = vmatpush1.bf16.xpose.msra.mxu0 0
        %2493 = vmatprep.subr.bf16.mxu0 0
        %2494 = vmatpush1.bf16.xpose.msra.mxu0 0
        %2495 = vmatprep.subr.bf16.mxu0 0
        %2496 = vmatpush1.bf16.xpose.msra.mxu0 0
        %2497 = vmatprep.subr.bf16.mxu0 0
        %2498 = vmatpush1.bf16.xpose.msra.mxu0 %v2481
        %2499 = vmatprep.subr.bf16.mxu0 0
        %2500 = vmatpush2.bf16.xpose.msra.mxu0 0
        %2501 = vmatprep.subr.bf16.mxu0 0
        %2502 = vmatpush2.bf16.xpose.msra.mxu0 0
        %2503 = vmatprep.subr.bf16.mxu0 0
        %2504 = vmatpush2.bf16.xpose.msra.mxu0 0
        %2505 = vmatprep.subr.bf16.mxu0 0
        %2506 = vmatpush2.bf16.xpose.msra.mxu0 0
        %2507 = vmatprep.subr.bf16.mxu0 0
        %2508 = vmatpush2.bf16.xpose.msra.mxu0 0
        %2509 = vmatprep.subr.bf16.mxu0 0
        %2510 = vmatpush2.bf16.xpose.msra.mxu0 0
        %2511 = vmatprep.subr.bf16.mxu0 0
        %2512 = vmatpush2.bf16.xpose.msra.mxu0 0
        %2513 = vmatprep.subr.bf16.mxu0 0
        %2514 = vmatpush2.bf16.xpose.msra.mxu0 0
        %2515 = vmatprep.mubr.bf16.mxu0 0
        %2516 = vmatmul.mubr.bf16.gmra.mxu0 %v2478
        %v2517 = vpop.f32.mrf.mxu0
        %v2518 = vadd.f32 0.0, %v2517
        %v2519 = vpop.f32.mrf.mxu0
        %v2520 = vpop.f32.mrf.mxu0
        %v2521 = vpop.f32.mrf.mxu0
        %2522 = vdwg.mxu0
        %2524 = vrot.lane.b32.xlu0 %v1194, 96
        %v2525 = vpop.permute.xlu0 %2524
        %v2527 = vsel %vm1202, %v1194, 0
        %v2530 = vsel %vm1202, %v2525, 0
        %2532 = vmatprep.subr.bf16.mxu0 0
        %2533 = vmatpush1.bf16.xpose.msra.mxu0 0
        %2534 = vmatprep.subr.bf16.mxu0 0
        %2535 = vmatpush1.bf16.xpose.msra.mxu0 0
        %2536 = vmatprep.subr.bf16.mxu0 0
        %2537 = vmatpush1.bf16.xpose.msra.mxu0 0
        %2538 = vmatprep.subr.bf16.mxu0 0
        %2539 = vmatpush1.bf16.xpose.msra.mxu0 0
        %2540 = vmatprep.subr.bf16.mxu0 0
        %2541 = vmatpush1.bf16.xpose.msra.mxu0 0
        %2542 = vmatprep.subr.bf16.mxu0 0
        %2543 = vmatpush1.bf16.xpose.msra.mxu0 0
        %2544 = vmatprep.subr.bf16.mxu0 0
        %2545 = vmatpush1.bf16.xpose.msra.mxu0 0
        %2546 = vmatprep.subr.bf16.mxu0 0
        %2547 = vmatpush1.bf16.xpose.msra.mxu0 %v2530
        %2548 = vmatprep.subr.bf16.mxu0 0
        %2549 = vmatpush2.bf16.xpose.msra.mxu0 0
        %2550 = vmatprep.subr.bf16.mxu0 0
        %2551 = vmatpush2.bf16.xpose.msra.mxu0 0
        %2552 = vmatprep.subr.bf16.mxu0 0
        %2553 = vmatpush2.bf16.xpose.msra.mxu0 0
        %2554 = vmatprep.subr.bf16.mxu0 0
        %2555 = vmatpush2.bf16.xpose.msra.mxu0 0
        %2556 = vmatprep.subr.bf16.mxu0 0
        %2557 = vmatpush2.bf16.xpose.msra.mxu0 0
        %2558 = vmatprep.subr.bf16.mxu0 0
        %2559 = vmatpush2.bf16.xpose.msra.mxu0 0
        %2560 = vmatprep.subr.bf16.mxu0 0
        %2561 = vmatpush2.bf16.xpose.msra.mxu0 0
        %2562 = vmatprep.subr.bf16.mxu0 0
        %2563 = vmatpush2.bf16.xpose.msra.mxu0 0
        %2564 = vmatprep.mubr.bf16.mxu0 0
        %2565 = vmatmul.mubr.bf16.gmra.mxu0 %v2527
        %v2566 = vpop.f32.mrf.mxu0
        %v2567 = vadd.f32 0.0, %v2566
        %v2568 = vpop.f32.mrf.mxu0
        %v2569 = vpop.f32.mrf.mxu0
        %v2570 = vpop.f32.mrf.mxu0
        %2571 = vdwg.mxu0
        %2573 = vrot.lane.b32.xlu0 %v1195, 96
        %v2574 = vpop.permute.xlu0 %2573
        %v2576 = vsel %vm1202, %v1195, 0
        %v2579 = vsel %vm1202, %v2574, 0
        %2581 = vmatprep.subr.bf16.mxu0 0
        %2582 = vmatpush1.bf16.xpose.msra.mxu0 0
        %2583 = vmatprep.subr.bf16.mxu0 0
        %2584 = vmatpush1.bf16.xpose.msra.mxu0 0
        %2585 = vmatprep.subr.bf16.mxu0 0
        %2586 = vmatpush1.bf16.xpose.msra.mxu0 0
        %2587 = vmatprep.subr.bf16.mxu0 0
        %2588 = vmatpush1.bf16.xpose.msra.mxu0 0
        %2589 = vmatprep.subr.bf16.mxu0 0
        %2590 = vmatpush1.bf16.xpose.msra.mxu0 0
        %2591 = vmatprep.subr.bf16.mxu0 0
        %2592 = vmatpush1.bf16.xpose.msra.mxu0 0
        %2593 = vmatprep.subr.bf16.mxu0 0
        %2594 = vmatpush1.bf16.xpose.msra.mxu0 0
        %2595 = vmatprep.subr.bf16.mxu0 0
        %2596 = vmatpush1.bf16.xpose.msra.mxu0 %v2579
        %2597 = vmatprep.subr.bf16.mxu0 0
        %2598 = vmatpush2.bf16.xpose.msra.mxu0 0
        %2599 = vmatprep.subr.bf16.mxu0 0
        %2600 = vmatpush2.bf16.xpose.msra.mxu0 0
        %2601 = vmatprep.subr.bf16.mxu0 0
        %2602 = vmatpush2.bf16.xpose.msra.mxu0 0
        %2603 = vmatprep.subr.bf16.mxu0 0
        %2604 = vmatpush2.bf16.xpose.msra.mxu0 0
        %2605 = vmatprep.subr.bf16.mxu0 0
        %2606 = vmatpush2.bf16.xpose.msra.mxu0 0
        %2607 = vmatprep.subr.bf16.mxu0 0
        %2608 = vmatpush2.bf16.xpose.msra.mxu0 0
        %2609 = vmatprep.subr.bf16.mxu0 0
        %2610 = vmatpush2.bf16.xpose.msra.mxu0 0
        %2611 = vmatprep.subr.bf16.mxu0 0
        %2612 = vmatpush2.bf16.xpose.msra.mxu0 0
        %2613 = vmatprep.mubr.bf16.mxu0 0
        %2614 = vmatmul.mubr.bf16.gmra.mxu0 %v2576
        %v2615 = vpop.f32.mrf.mxu0
        %v2616 = vadd.f32 0.0, %v2615
        %v2617 = vpop.f32.mrf.mxu0
        %v2618 = vpop.f32.mrf.mxu0
        %v2619 = vpop.f32.mrf.mxu0
        %2620 = vdwg.mxu0
        %2622 = vrot.lane.b32.xlu0 %v1196, 96
        %v2623 = vpop.permute.xlu0 %2622
        %v2625 = vsel %vm1202, %v1196, 0
        %v2628 = vsel %vm1202, %v2623, 0
        %2630 = vmatprep.subr.bf16.mxu0 0
        %2631 = vmatpush1.bf16.xpose.msra.mxu0 0
        %2632 = vmatprep.subr.bf16.mxu0 0
        %2633 = vmatpush1.bf16.xpose.msra.mxu0 0
        %2634 = vmatprep.subr.bf16.mxu0 0
        %2635 = vmatpush1.bf16.xpose.msra.mxu0 0
        %2636 = vmatprep.subr.bf16.mxu0 0
        %2637 = vmatpush1.bf16.xpose.msra.mxu0 0
        %2638 = vmatprep.subr.bf16.mxu0 0
        %2639 = vmatpush1.bf16.xpose.msra.mxu0 0
        %2640 = vmatprep.subr.bf16.mxu0 0
        %2641 = vmatpush1.bf16.xpose.msra.mxu0 0
        %2642 = vmatprep.subr.bf16.mxu0 0
        %2643 = vmatpush1.bf16.xpose.msra.mxu0 0
        %2644 = vmatprep.subr.bf16.mxu0 0
        %2645 = vmatpush1.bf16.xpose.msra.mxu0 %v2628
        %2646 = vmatprep.subr.bf16.mxu0 0
        %2647 = vmatpush2.bf16.xpose.msra.mxu0 0
        %2648 = vmatprep.subr.bf16.mxu0 0
        %2649 = vmatpush2.bf16.xpose.msra.mxu0 0
        %2650 = vmatprep.subr.bf16.mxu0 0
        %2651 = vmatpush2.bf16.xpose.msra.mxu0 0
        %2652 = vmatprep.subr.bf16.mxu0 0
        %2653 = vmatpush2.bf16.xpose.msra.mxu0 0
        %2654 = vmatprep.subr.bf16.mxu0 0
        %2655 = vmatpush2.bf16.xpose.msra.mxu0 0
        %2656 = vmatprep.subr.bf16.mxu0 0
        %2657 = vmatpush2.bf16.xpose.msra.mxu0 0
        %2658 = vmatprep.subr.bf16.mxu0 0
        %2659 = vmatpush2.bf16.xpose.msra.mxu0 0
        %2660 = vmatprep.subr.bf16.mxu0 0
        %2661 = vmatpush2.bf16.xpose.msra.mxu0 0
        %2662 = vmatprep.mubr.bf16.mxu0 0
        %2663 = vmatmul.mubr.bf16.gmra.mxu0 %v2625
        %v2664 = vpop.f32.mrf.mxu0
        %v2665 = vadd.f32 0.0, %v2664
        %v2666 = vpop.f32.mrf.mxu0
        %v2667 = vpop.f32.mrf.mxu0
        %v2668 = vpop.f32.mrf.mxu0
        %2669 = vdwg.mxu0
        %2671 = vrot.lane.b32.xlu0 %v1197, 96
        %v2672 = vpop.permute.xlu0 %2671
        %v2674 = vsel %vm1202, %v1197, 0
        %v2677 = vsel %vm1202, %v2672, 0
        %2679 = vmatprep.subr.bf16.mxu0 0
        %2680 = vmatpush1.bf16.xpose.msra.mxu0 0
        %2681 = vmatprep.subr.bf16.mxu0 0
        %2682 = vmatpush1.bf16.xpose.msra.mxu0 0
        %2683 = vmatprep.subr.bf16.mxu0 0
        %2684 = vmatpush1.bf16.xpose.msra.mxu0 0
        %2685 = vmatprep.subr.bf16.mxu0 0
        %2686 = vmatpush1.bf16.xpose.msra.mxu0 0
        %2687 = vmatprep.subr.bf16.mxu0 0
        %2688 = vmatpush1.bf16.xpose.msra.mxu0 0
        %2689 = vmatprep.subr.bf16.mxu0 0
        %2690 = vmatpush1.bf16.xpose.msra.mxu0 0
        %2691 = vmatprep.subr.bf16.mxu0 0
        %2692 = vmatpush1.bf16.xpose.msra.mxu0 0
        %2693 = vmatprep.subr.bf16.mxu0 0
        %2694 = vmatpush1.bf16.xpose.msra.mxu0 %v2677
        %2695 = vmatprep.subr.bf16.mxu0 0
        %2696 = vmatpush2.bf16.xpose.msra.mxu0 0
        %2697 = vmatprep.subr.bf16.mxu0 0
        %2698 = vmatpush2.bf16.xpose.msra.mxu0 0
        %2699 = vmatprep.subr.bf16.mxu0 0
        %2700 = vmatpush2.bf16.xpose.msra.mxu0 0
        %2701 = vmatprep.subr.bf16.mxu0 0
        %2702 = vmatpush2.bf16.xpose.msra.mxu0 0
        %2703 = vmatprep.subr.bf16.mxu0 0
        %2704 = vmatpush2.bf16.xpose.msra.mxu0 0
        %2705 = vmatprep.subr.bf16.mxu0 0
        %2706 = vmatpush2.bf16.xpose.msra.mxu0 0
        %2707 = vmatprep.subr.bf16.mxu0 0
        %2708 = vmatpush2.bf16.xpose.msra.mxu0 0
        %2709 = vmatprep.subr.bf16.mxu0 0
        %2710 = vmatpush2.bf16.xpose.msra.mxu0 0
        %2711 = vmatprep.mubr.bf16.mxu0 0
        %2712 = vmatmul.mubr.bf16.gmra.mxu0 %v2674
        %v2713 = vpop.f32.mrf.mxu0
        %v2714 = vadd.f32 0.0, %v2713
        %v2715 = vpop.f32.mrf.mxu0
        %v2716 = vpop.f32.mrf.mxu0
        %v2717 = vpop.f32.mrf.mxu0
        %2718 = vdwg.mxu0
        %2720 = vrot.lane.b32.xlu0 %v1198, 96
        %v2721 = vpop.permute.xlu0 %2720
        %v2723 = vsel %vm1202, %v1198, 0
        %v2726 = vsel %vm1202, %v2721, 0
        %2728 = vmatprep.subr.bf16.mxu0 0
        %2729 = vmatpush1.bf16.xpose.msra.mxu0 0
        %2730 = vmatprep.subr.bf16.mxu0 0
        %2731 = vmatpush1.bf16.xpose.msra.mxu0 0
        %2732 = vmatprep.subr.bf16.mxu0 0
        %2733 = vmatpush1.bf16.xpose.msra.mxu0 0
        %2734 = vmatprep.subr.bf16.mxu0 0
        %2735 = vmatpush1.bf16.xpose.msra.mxu0 0
        %2736 = vmatprep.subr.bf16.mxu0 0
        %2737 = vmatpush1.bf16.xpose.msra.mxu0 0
        %2738 = vmatprep.subr.bf16.mxu0 0
        %2739 = vmatpush1.bf16.xpose.msra.mxu0 0
        %2740 = vmatprep.subr.bf16.mxu0 0
        %2741 = vmatpush1.bf16.xpose.msra.mxu0 0
        %2742 = vmatprep.subr.bf16.mxu0 0
        %2743 = vmatpush1.bf16.xpose.msra.mxu0 %v2726
        %2744 = vmatprep.subr.bf16.mxu0 0
        %2745 = vmatpush2.bf16.xpose.msra.mxu0 0
        %2746 = vmatprep.subr.bf16.mxu0 0
        %2747 = vmatpush2.bf16.xpose.msra.mxu0 0
        %2748 = vmatprep.subr.bf16.mxu0 0
        %2749 = vmatpush2.bf16.xpose.msra.mxu0 0
        %2750 = vmatprep.subr.bf16.mxu0 0
        %2751 = vmatpush2.bf16.xpose.msra.mxu0 0
        %2752 = vmatprep.subr.bf16.mxu0 0
        %2753 = vmatpush2.bf16.xpose.msra.mxu0 0
        %2754 = vmatprep.subr.bf16.mxu0 0
        %2755 = vmatpush2.bf16.xpose.msra.mxu0 0
        %2756 = vmatprep.subr.bf16.mxu0 0
        %2757 = vmatpush2.bf16.xpose.msra.mxu0 0
        %2758 = vmatprep.subr.bf16.mxu0 0
        %2759 = vmatpush2.bf16.xpose.msra.mxu0 0
        %2760 = vmatprep.mubr.bf16.mxu0 0
        %2761 = vmatmul.mubr.bf16.gmra.mxu0 %v2723
        %v2762 = vpop.f32.mrf.mxu0
        %v2763 = vadd.f32 0.0, %v2762
        %v2764 = vpop.f32.mrf.mxu0
        %v2765 = vpop.f32.mrf.mxu0
        %v2766 = vpop.f32.mrf.mxu0
        %2767 = vdwg.mxu0
        %v2768 = vmul.f32 %v1244, 0.35355338
        %v2769 = vmul.f32 %v1293, 0.35355338
        %v2770 = vmul.f32 %v1342, 0.35355338
        %v2771 = vmul.f32 %v1391, 0.35355338
        %v2772 = vmul.f32 %v1440, 0.35355338
        %v2773 = vmul.f32 %v1489, 0.35355338
        %v2774 = vmul.f32 %v1538, 0.35355338
        %v2775 = vmul.f32 %v1587, 0.35355338
        %v2776 = vmul.f32 %v1636, 0.35355338
        %v2777 = vmul.f32 %v1685, 0.35355338
        %v2778 = vmul.f32 %v1734, 0.35355338
        %v2779 = vmul.f32 %v1783, 0.35355338
        %v2780 = vmul.f32 %v1832, 0.35355338
        %v2781 = vmul.f32 %v1881, 0.35355338
        %v2782 = vmul.f32 %v1930, 0.35355338
        %v2783 = vmul.f32 %v1979, 0.35355338
        %v2784 = vmul.f32 %v2028, 0.35355338
        %v2785 = vmul.f32 %v2077, 0.35355338
        %v2786 = vmul.f32 %v2126, 0.35355338
        %v2787 = vmul.f32 %v2175, 0.35355338
        %v2788 = vmul.f32 %v2224, 0.35355338
        %v2789 = vmul.f32 %v2273, 0.35355338
        %v2790 = vmul.f32 %v2322, 0.35355338
        %v2791 = vmul.f32 %v2371, 0.35355338
        %v2792 = vmul.f32 %v2420, 0.35355338
        %v2793 = vmul.f32 %v2469, 0.35355338
        %v2794 = vmul.f32 %v2518, 0.35355338
        %v2795 = vmul.f32 %v2567, 0.35355338
        %v2796 = vmul.f32 %v2616, 0.35355338
        %v2797 = vmul.f32 %v2665, 0.35355338
        %v2798 = vmul.f32 %v2714, 0.35355338
        %v2799 = vmul.f32 %v2763, 0.35355338
        %v2800 = vadd.f32 %v2768, %v846
        %v2801 = vadd.f32 %v2769, %v846
        %v2802 = vadd.f32 %v2770, %v846
        %v2803 = vadd.f32 %v2771, %v846
        %v2804 = vadd.f32 %v2772, %v846
        %v2805 = vadd.f32 %v2773, %v846
        %v2806 = vadd.f32 %v2774, %v846
        %v2807 = vadd.f32 %v2775, %v846
        %v2808 = vadd.f32 %v2776, %v846
        %v2809 = vadd.f32 %v2777, %v846
        %v2810 = vadd.f32 %v2778, %v846
        %v2811 = vadd.f32 %v2779, %v846
        %v2812 = vadd.f32 %v2780, %v846
        %v2813 = vadd.f32 %v2781, %v846
        %v2814 = vadd.f32 %v2782, %v846
        %v2815 = vadd.f32 %v2783, %v846
        %v2816 = vadd.f32 %v2784, %v846
        %v2817 = vadd.f32 %v2785, %v846
        %v2818 = vadd.f32 %v2786, %v846
        %v2819 = vadd.f32 %v2787, %v846
        %v2820 = vadd.f32 %v2788, %v846
        %v2821 = vadd.f32 %v2789, %v846
        %v2822 = vadd.f32 %v2790, %v846
        %v2823 = vadd.f32 %v2791, %v846
        %v2824 = vadd.f32 %v2792, %v846
        %v2825 = vadd.f32 %v2793, %v846
        %v2826 = vadd.f32 %v2794, %v846
        %v2827 = vadd.f32 %v2795, %v846
        %v2828 = vadd.f32 %v2796, %v846
        %v2829 = vadd.f32 %v2797, %v846
        %v2830 = vadd.f32 %v2798, %v846
        %v2831 = vadd.f32 %v2799, %v846
        %v2832 = vsel %vm1202, %v2800, -inf
        %2833 = vmax.xlane.f32.xlu0 %v2832
        %v2834 = vpop.xlane.xlu0 %2833
        %v2835 = vsel %vm1202, %v2801, -inf
        %2836 = vmax.xlane.f32.xlu0 %v2835
        %v2837 = vpop.xlane.xlu0 %2836
        %v2838 = vsel %vm1202, %v2802, -inf
        %2839 = vmax.xlane.f32.xlu0 %v2838
        %v2840 = vpop.xlane.xlu0 %2839
        %v2841 = vsel %vm1202, %v2803, -inf
        %2842 = vmax.xlane.f32.xlu0 %v2841
        %v2843 = vpop.xlane.xlu0 %2842
        %v2844 = vsel %vm1202, %v2804, -inf
        %2845 = vmax.xlane.f32.xlu0 %v2844
        %v2846 = vpop.xlane.xlu0 %2845
        %v2847 = vsel %vm1202, %v2805, -inf
        %2848 = vmax.xlane.f32.xlu0 %v2847
        %v2849 = vpop.xlane.xlu0 %2848
        %v2850 = vsel %vm1202, %v2806, -inf
        %2851 = vmax.xlane.f32.xlu0 %v2850
        %v2852 = vpop.xlane.xlu0 %2851
        %v2853 = vsel %vm1202, %v2807, -inf
        %2854 = vmax.xlane.f32.xlu0 %v2853
        %v2855 = vpop.xlane.xlu0 %2854
        %v2856 = vsel %vm1202, %v2808, -inf
        %2857 = vmax.xlane.f32.xlu0 %v2856
        %v2858 = vpop.xlane.xlu0 %2857
        %v2859 = vsel %vm1202, %v2809, -inf
        %2860 = vmax.xlane.f32.xlu0 %v2859
        %v2861 = vpop.xlane.xlu0 %2860
        %v2862 = vsel %vm1202, %v2810, -inf
        %2863 = vmax.xlane.f32.xlu0 %v2862
        %v2864 = vpop.xlane.xlu0 %2863
        %v2865 = vsel %vm1202, %v2811, -inf
        %2866 = vmax.xlane.f32.xlu0 %v2865
        %v2867 = vpop.xlane.xlu0 %2866
        %v2868 = vsel %vm1202, %v2812, -inf
        %2869 = vmax.xlane.f32.xlu0 %v2868
        %v2870 = vpop.xlane.xlu0 %2869
        %v2871 = vsel %vm1202, %v2813, -inf
        %2872 = vmax.xlane.f32.xlu0 %v2871
        %v2873 = vpop.xlane.xlu0 %2872
        %v2874 = vsel %vm1202, %v2814, -inf
        %2875 = vmax.xlane.f32.xlu0 %v2874
        %v2876 = vpop.xlane.xlu0 %2875
        %v2877 = vsel %vm1202, %v2815, -inf
        %2878 = vmax.xlane.f32.xlu0 %v2877
        %v2879 = vpop.xlane.xlu0 %2878
        %v2880 = vsel %vm1202, %v2816, -inf
        %2881 = vmax.xlane.f32.xlu0 %v2880
        %v2882 = vpop.xlane.xlu0 %2881
        %v2883 = vsel %vm1202, %v2817, -inf
        %2884 = vmax.xlane.f32.xlu0 %v2883
        %v2885 = vpop.xlane.xlu0 %2884
        %v2886 = vsel %vm1202, %v2818, -inf
        %2887 = vmax.xlane.f32.xlu0 %v2886
        %v2888 = vpop.xlane.xlu0 %2887
        %v2889 = vsel %vm1202, %v2819, -inf
        %2890 = vmax.xlane.f32.xlu0 %v2889
        %v2891 = vpop.xlane.xlu0 %2890
        %v2892 = vsel %vm1202, %v2820, -inf
        %2893 = vmax.xlane.f32.xlu0 %v2892
        %v2894 = vpop.xlane.xlu0 %2893
        %v2895 = vsel %vm1202, %v2821, -inf
        %2896 = vmax.xlane.f32.xlu0 %v2895
        %v2897 = vpop.xlane.xlu0 %2896
        %v2898 = vsel %vm1202, %v2822, -inf
        %2899 = vmax.xlane.f32.xlu0 %v2898
        %v2900 = vpop.xlane.xlu0 %2899
        %v2901 = vsel %vm1202, %v2823, -inf
        %2902 = vmax.xlane.f32.xlu0 %v2901
        %v2903 = vpop.xlane.xlu0 %2902
        %v2904 = vsel %vm1202, %v2824, -inf
        %2905 = vmax.xlane.f32.xlu0 %v2904
        %v2906 = vpop.xlane.xlu0 %2905
        %v2907 = vsel %vm1202, %v2825, -inf
        %2908 = vmax.xlane.f32.xlu0 %v2907
        %v2909 = vpop.xlane.xlu0 %2908
        %v2910 = vsel %vm1202, %v2826, -inf
        %2911 = vmax.xlane.f32.xlu0 %v2910
        %v2912 = vpop.xlane.xlu0 %2911
        %v2913 = vsel %vm1202, %v2827, -inf
        %2914 = vmax.xlane.f32.xlu0 %v2913
        %v2915 = vpop.xlane.xlu0 %2914
        %v2916 = vsel %vm1202, %v2828, -inf
        %2917 = vmax.xlane.f32.xlu0 %v2916
        %v2918 = vpop.xlane.xlu0 %2917
        %v2919 = vsel %vm1202, %v2829, -inf
        %2920 = vmax.xlane.f32.xlu0 %v2919
        %v2921 = vpop.xlane.xlu0 %2920
        %v2922 = vsel %vm1202, %v2830, -inf
        %2923 = vmax.xlane.f32.xlu0 %v2922
        %v2924 = vpop.xlane.xlu0 %2923
        %v2925 = vsel %vm1202, %v2831, -inf
        %2926 = vmax.xlane.f32.xlu0 %v2925
        %v2927 = vpop.xlane.xlu0 %2926
        %v2928 = vsub.f32 %v2800, %v2834
        %v2929 = vsub.f32 %v2801, %v2837
        %v2930 = vsub.f32 %v2802, %v2840
        %v2931 = vsub.f32 %v2803, %v2843
        %v2932 = vsub.f32 %v2804, %v2846
        %v2933 = vsub.f32 %v2805, %v2849
        %v2934 = vsub.f32 %v2806, %v2852
        %v2935 = vsub.f32 %v2807, %v2855
        %v2936 = vsub.f32 %v2808, %v2858
        %v2937 = vsub.f32 %v2809, %v2861
        %v2938 = vsub.f32 %v2810, %v2864
        %v2939 = vsub.f32 %v2811, %v2867
        %v2940 = vsub.f32 %v2812, %v2870
        %v2941 = vsub.f32 %v2813, %v2873
        %v2942 = vsub.f32 %v2814, %v2876
        %v2943 = vsub.f32 %v2815, %v2879
        %v2944 = vsub.f32 %v2816, %v2882
        %v2945 = vsub.f32 %v2817, %v2885
        %v2946 = vsub.f32 %v2818, %v2888
        %v2947 = vsub.f32 %v2819, %v2891
        %v2948 = vsub.f32 %v2820, %v2894
        %v2949 = vsub.f32 %v2821, %v2897
        %v2950 = vsub.f32 %v2822, %v2900
        %v2951 = vsub.f32 %v2823, %v2903
        %v2952 = vsub.f32 %v2824, %v2906
        %v2953 = vsub.f32 %v2825, %v2909
        %v2954 = vsub.f32 %v2826, %v2912
        %v2955 = vsub.f32 %v2827, %v2915
        %v2956 = vsub.f32 %v2828, %v2918
        %v2957 = vsub.f32 %v2829, %v2921
        %v2958 = vsub.f32 %v2830, %v2924
        %v2959 = vsub.f32 %v2831, %v2927
        %v2960 = vmul.f32 %v2928, 1.442695
        %v2961 = vpow.pop %v2960
        %v2962 = vmul.f32 %v2929, 1.442695
        %v2963 = vpow.pop %v2962
        %v2964 = vmul.f32 %v2930, 1.442695
        %v2965 = vpow.pop %v2964
        %v2966 = vmul.f32 %v2931, 1.442695
        %v2967 = vpow.pop %v2966
        %v2968 = vmul.f32 %v2932, 1.442695
        %v2969 = vpow.pop %v2968
        %v2970 = vmul.f32 %v2933, 1.442695
        %v2971 = vpow.pop %v2970
        %v2972 = vmul.f32 %v2934, 1.442695
        %v2973 = vpow.pop %v2972
        %v2974 = vmul.f32 %v2935, 1.442695
        %v2975 = vpow.pop %v2974
        %v2976 = vmul.f32 %v2936, 1.442695
        %v2977 = vpow.pop %v2976
        %v2978 = vmul.f32 %v2937, 1.442695
        %v2979 = vpow.pop %v2978
        %v2980 = vmul.f32 %v2938, 1.442695
        %v2981 = vpow.pop %v2980
        %v2982 = vmul.f32 %v2939, 1.442695
        %v2983 = vpow.pop %v2982
        %v2984 = vmul.f32 %v2940, 1.442695
        %v2985 = vpow.pop %v2984
        %v2986 = vmul.f32 %v2941, 1.442695
        %v2987 = vpow.pop %v2986
        %v2988 = vmul.f32 %v2942, 1.442695
        %v2989 = vpow.pop %v2988
        %v2990 = vmul.f32 %v2943, 1.442695
        %v2991 = vpow.pop %v2990
        %v2992 = vmul.f32 %v2944, 1.442695
        %v2993 = vpow.pop %v2992
        %v2994 = vmul.f32 %v2945, 1.442695
        %v2995 = vpow.pop %v2994
        %v2996 = vmul.f32 %v2946, 1.442695
        %v2997 = vpow.pop %v2996
        %v2998 = vmul.f32 %v2947, 1.442695
        %v2999 = vpow.pop %v2998
        %v3000 = vmul.f32 %v2948, 1.442695
        %v3001 = vpow.pop %v3000
        %v3002 = vmul.f32 %v2949, 1.442695
        %v3003 = vpow.pop %v3002
        %v3004 = vmul.f32 %v2950, 1.442695
        %v3005 = vpow.pop %v3004
        %v3006 = vmul.f32 %v2951, 1.442695
        %v3007 = vpow.pop %v3006
        %v3008 = vmul.f32 %v2952, 1.442695
        %v3009 = vpow.pop %v3008
        %v3010 = vmul.f32 %v2953, 1.442695
        %v3011 = vpow.pop %v3010
        %v3012 = vmul.f32 %v2954, 1.442695
        %v3013 = vpow.pop %v3012
        %v3014 = vmul.f32 %v2955, 1.442695
        %v3015 = vpow.pop %v3014
        %v3016 = vmul.f32 %v2956, 1.442695
        %v3017 = vpow.pop %v3016
        %v3018 = vmul.f32 %v2957, 1.442695
        %v3019 = vpow.pop %v3018
        %v3020 = vmul.f32 %v2958, 1.442695
        %v3021 = vpow.pop %v3020
        %v3022 = vmul.f32 %v2959, 1.442695
        %v3023 = vpow.pop %v3022
        %v3024 = vsel %vm1202, %v2961, 0.0
        %3025 = vadd.xlane.f32.xlu0 %v3024
        %v3026 = vpop.xlane.xlu0 %3025
        %v3027 = vsel %vm1202, %v2963, 0.0
        %3028 = vadd.xlane.f32.xlu0 %v3027
        %v3029 = vpop.xlane.xlu0 %3028
        %v3030 = vsel %vm1202, %v2965, 0.0
        %3031 = vadd.xlane.f32.xlu0 %v3030
        %v3032 = vpop.xlane.xlu0 %3031
        %v3033 = vsel %vm1202, %v2967, 0.0
        %3034 = vadd.xlane.f32.xlu0 %v3033
        %v3035 = vpop.xlane.xlu0 %3034
        %v3036 = vsel %vm1202, %v2969, 0.0
        %3037 = vadd.xlane.f32.xlu0 %v3036
        %v3038 = vpop.xlane.xlu0 %3037
        %v3039 = vsel %vm1202, %v2971, 0.0
        %3040 = vadd.xlane.f32.xlu0 %v3039
        %v3041 = vpop.xlane.xlu0 %3040
        %v3042 = vsel %vm1202, %v2973, 0.0
        %3043 = vadd.xlane.f32.xlu0 %v3042
        %v3044 = vpop.xlane.xlu0 %3043
        %v3045 = vsel %vm1202, %v2975, 0.0
        %3046 = vadd.xlane.f32.xlu0 %v3045
        %v3047 = vpop.xlane.xlu0 %3046
        %v3048 = vsel %vm1202, %v2977, 0.0
        %3049 = vadd.xlane.f32.xlu0 %v3048
        %v3050 = vpop.xlane.xlu0 %3049
        %v3051 = vsel %vm1202, %v2979, 0.0
        %3052 = vadd.xlane.f32.xlu0 %v3051
        %v3053 = vpop.xlane.xlu0 %3052
        %v3054 = vsel %vm1202, %v2981, 0.0
        %3055 = vadd.xlane.f32.xlu0 %v3054
        %v3056 = vpop.xlane.xlu0 %3055
        %v3057 = vsel %vm1202, %v2983, 0.0
        %3058 = vadd.xlane.f32.xlu0 %v3057
        %v3059 = vpop.xlane.xlu0 %3058
        %v3060 = vsel %vm1202, %v2985, 0.0
        %3061 = vadd.xlane.f32.xlu0 %v3060
        %v3062 = vpop.xlane.xlu0 %3061
        %v3063 = vsel %vm1202, %v2987, 0.0
        %3064 = vadd.xlane.f32.xlu0 %v3063
        %v3065 = vpop.xlane.xlu0 %3064
        %v3066 = vsel %vm1202, %v2989, 0.0
        %3067 = vadd.xlane.f32.xlu0 %v3066
        %v3068 = vpop.xlane.xlu0 %3067
        %v3069 = vsel %vm1202, %v2991, 0.0
        %3070 = vadd.xlane.f32.xlu0 %v3069
        %v3071 = vpop.xlane.xlu0 %3070
        %v3072 = vsel %vm1202, %v2993, 0.0
        %3073 = vadd.xlane.f32.xlu0 %v3072
        %v3074 = vpop.xlane.xlu0 %3073
        %v3075 = vsel %vm1202, %v2995, 0.0
        %3076 = vadd.xlane.f32.xlu0 %v3075
        %v3077 = vpop.xlane.xlu0 %3076
        %v3078 = vsel %vm1202, %v2997, 0.0
        %3079 = vadd.xlane.f32.xlu0 %v3078
        %v3080 = vpop.xlane.xlu0 %3079
        %v3081 = vsel %vm1202, %v2999, 0.0
        %3082 = vadd.xlane.f32.xlu0 %v3081
        %v3083 = vpop.xlane.xlu0 %3082
        %v3084 = vsel %vm1202, %v3001, 0.0
        %3085 = vadd.xlane.f32.xlu0 %v3084
        %v3086 = vpop.xlane.xlu0 %3085
        %v3087 = vsel %vm1202, %v3003, 0.0
        %3088 = vadd.xlane.f32.xlu0 %v3087
        %v3089 = vpop.xlane.xlu0 %3088
        %v3090 = vsel %vm1202, %v3005, 0.0
        %3091 = vadd.xlane.f32.xlu0 %v3090
        %v3092 = vpop.xlane.xlu0 %3091
        %v3093 = vsel %vm1202, %v3007, 0.0
        %3094 = vadd.xlane.f32.xlu0 %v3093
        %v3095 = vpop.xlane.xlu0 %3094
        %v3096 = vsel %vm1202, %v3009, 0.0
        %3097 = vadd.xlane.f32.xlu0 %v3096
        %v3098 = vpop.xlane.xlu0 %3097
        %v3099 = vsel %vm1202, %v3011, 0.0
        %3100 = vadd.xlane.f32.xlu0 %v3099
        %v3101 = vpop.xlane.xlu0 %3100
        %v3102 = vsel %vm1202, %v3013, 0.0
        %3103 = vadd.xlane.f32.xlu0 %v3102
        %v3104 = vpop.xlane.xlu0 %3103
        %v3105 = vsel %vm1202, %v3015, 0.0
        %3106 = vadd.xlane.f32.xlu0 %v3105
        %v3107 = vpop.xlane.xlu0 %3106
        %v3108 = vsel %vm1202, %v3017, 0.0
        %3109 = vadd.xlane.f32.xlu0 %v3108
        %v3110 = vpop.xlane.xlu0 %3109
        %v3111 = vsel %vm1202, %v3019, 0.0
        %3112 = vadd.xlane.f32.xlu0 %v3111
        %v3113 = vpop.xlane.xlu0 %3112
        %v3114 = vsel %vm1202, %v3021, 0.0
        %3115 = vadd.xlane.f32.xlu0 %v3114
        %v3116 = vpop.xlane.xlu0 %3115
        %v3117 = vsel %vm1202, %v3023, 0.0
        %3118 = vadd.xlane.f32.xlu0 %v3117
        %v3119 = vpop.xlane.xlu0 %3118
        %v3120 = vrcp.pop %v3026
        %v3121 = vrcp.pop %v3029
        %v3122 = vrcp.pop %v3032
        %v3123 = vrcp.pop %v3035
        %v3124 = vrcp.pop %v3038
        %v3125 = vrcp.pop %v3041
        %v3126 = vrcp.pop %v3044
        %v3127 = vrcp.pop %v3047
        %v3128 = vrcp.pop %v3050
        %v3129 = vrcp.pop %v3053
        %v3130 = vrcp.pop %v3056
        %v3131 = vrcp.pop %v3059
        %v3132 = vrcp.pop %v3062
        %v3133 = vrcp.pop %v3065
        %v3134 = vrcp.pop %v3068
        %v3135 = vrcp.pop %v3071
        %v3136 = vrcp.pop %v3074
        %v3137 = vrcp.pop %v3077
        %v3138 = vrcp.pop %v3080
        %v3139 = vrcp.pop %v3083
        %v3140 = vrcp.pop %v3086
        %v3141 = vrcp.pop %v3089
        %v3142 = vrcp.pop %v3092
        %v3143 = vrcp.pop %v3095
        %v3144 = vrcp.pop %v3098
        %v3145 = vrcp.pop %v3101
        %v3146 = vrcp.pop %v3104
        %v3147 = vrcp.pop %v3107
        %v3148 = vrcp.pop %v3110
        %v3149 = vrcp.pop %v3113
        %v3150 = vrcp.pop %v3116
        %v3151 = vrcp.pop %v3119
        %v3152 = vmul.f32 %v2961, %v3120
        %v3153 = vmul.f32 %v2963, %v3121
        %v3154 = vmul.f32 %v2965, %v3122
        %v3155 = vmul.f32 %v2967, %v3123
        %v3156 = vmul.f32 %v2969, %v3124
        %v3157 = vmul.f32 %v2971, %v3125
        %v3158 = vmul.f32 %v2973, %v3126
        %v3159 = vmul.f32 %v2975, %v3127
        %v3160 = vmul.f32 %v2977, %v3128
        %v3161 = vmul.f32 %v2979, %v3129
        %v3162 = vmul.f32 %v2981, %v3130
        %v3163 = vmul.f32 %v2983, %v3131
        %v3164 = vmul.f32 %v2985, %v3132
        %v3165 = vmul.f32 %v2987, %v3133
        %v3166 = vmul.f32 %v2989, %v3134
        %v3167 = vmul.f32 %v2991, %v3135
        %v3168 = vmul.f32 %v2993, %v3136
        %v3169 = vmul.f32 %v2995, %v3137
        %v3170 = vmul.f32 %v2997, %v3138
        %v3171 = vmul.f32 %v2999, %v3139
        %v3172 = vmul.f32 %v3001, %v3140
        %v3173 = vmul.f32 %v3003, %v3141
        %v3174 = vmul.f32 %v3005, %v3142
        %v3175 = vmul.f32 %v3007, %v3143
        %v3176 = vmul.f32 %v3009, %v3144
        %v3177 = vmul.f32 %v3011, %v3145
        %v3178 = vmul.f32 %v3013, %v3146
        %v3179 = vmul.f32 %v3015, %v3147
        %v3180 = vmul.f32 %v3017, %v3148
        %v3181 = vmul.f32 %v3019, %v3149
        %v3182 = vmul.f32 %v3021, %v3150
        %v3183 = vmul.f32 %v3023, %v3151
        %v3184 = vpack.c.bf16 %v3152, %v3152
        %v3185 = vpack.c.bf16 %v3153, %v3153
        %v3186 = vpack.c.bf16 %v3154, %v3154
        %v3187 = vpack.c.bf16 %v3155, %v3155
        %v3188 = vpack.c.bf16 %v3156, %v3156
        %v3189 = vpack.c.bf16 %v3157, %v3157
        %v3190 = vpack.c.bf16 %v3158, %v3158
        %v3191 = vpack.c.bf16 %v3159, %v3159
        %v3192 = vpack.c.bf16 %v3160, %v3160
        %v3193 = vpack.c.bf16 %v3161, %v3161
        %v3194 = vpack.c.bf16 %v3162, %v3162
        %v3195 = vpack.c.bf16 %v3163, %v3163
        %v3196 = vpack.c.bf16 %v3164, %v3164
        %v3197 = vpack.c.bf16 %v3165, %v3165
        %v3198 = vpack.c.bf16 %v3166, %v3166
        %v3199 = vpack.c.bf16 %v3167, %v3167
        %v3200 = vpack.c.bf16 %v3168, %v3168
        %v3201 = vpack.c.bf16 %v3169, %v3169
        %v3202 = vpack.c.bf16 %v3170, %v3170
        %v3203 = vpack.c.bf16 %v3171, %v3171
        %v3204 = vpack.c.bf16 %v3172, %v3172
        %v3205 = vpack.c.bf16 %v3173, %v3173
        %v3206 = vpack.c.bf16 %v3174, %v3174
        %v3207 = vpack.c.bf16 %v3175, %v3175
        %v3208 = vpack.c.bf16 %v3176, %v3176
        %v3209 = vpack.c.bf16 %v3177, %v3177
        %v3210 = vpack.c.bf16 %v3178, %v3178
        %v3211 = vpack.c.bf16 %v3179, %v3179
        %v3212 = vpack.c.bf16 %v3180, %v3180
        %v3213 = vpack.c.bf16 %v3181, %v3181
        %v3214 = vpack.c.bf16 %v3182, %v3182
        %v3215 = vpack.c.bf16 %v3183, %v3183
        %3216 = vrot.lane.b32.xlu0 %v1167, 64
        %v3217 = vpop.permute.xlu0 %3216
        %v3219 = vsel %vm1202, %v3184, 0
        %vm3221 = vcmask 1043456
        %v3223 = vsel %vm3221, %v3217, 0
        %3225 = vmatprep.subr.bf16.mxu0 0
        %3226 = vmatpush1.bf16.msra.mxu0 0
        %3227 = vmatprep.subr.bf16.mxu0 0
        %3228 = vmatpush1.bf16.msra.mxu0 0
        %3229 = vmatprep.subr.bf16.mxu0 0
        %3230 = vmatpush1.bf16.msra.mxu0 0
        %3231 = vmatprep.subr.bf16.mxu0 0
        %3232 = vmatpush1.bf16.msra.mxu0 0
        %3233 = vmatprep.subr.bf16.mxu0 0
        %3234 = vmatpush1.bf16.msra.mxu0 0
        %3235 = vmatprep.subr.bf16.mxu0 0
        %3236 = vmatpush1.bf16.msra.mxu0 0
        %3237 = vmatprep.subr.bf16.mxu0 0
        %3238 = vmatpush1.bf16.msra.mxu0 0
        %3239 = vmatprep.subr.bf16.mxu0 0
        %3240 = vmatpush1.bf16.msra.mxu0 %v3223
        %3241 = vmatprep.subr.bf16.mxu0 0
        %3242 = vmatpush2.bf16.msra.mxu0 0
        %3243 = vmatprep.subr.bf16.mxu0 0
        %3244 = vmatpush2.bf16.msra.mxu0 0
        %3245 = vmatprep.subr.bf16.mxu0 0
        %3246 = vmatpush2.bf16.msra.mxu0 0
        %3247 = vmatprep.subr.bf16.mxu0 0
        %3248 = vmatpush2.bf16.msra.mxu0 0
        %3249 = vmatprep.subr.bf16.mxu0 0
        %3250 = vmatpush2.bf16.msra.mxu0 0
        %3251 = vmatprep.subr.bf16.mxu0 0
        %3252 = vmatpush2.bf16.msra.mxu0 0
        %3253 = vmatprep.subr.bf16.mxu0 0
        %3254 = vmatpush2.bf16.msra.mxu0 0
        %3255 = vmatprep.subr.bf16.mxu0 0
        %3256 = vmatpush2.bf16.msra.mxu0 0
        %3257 = vmatprep.mubr.bf16.mxu0 0
        %3258 = vmatmul.mubr.bf16.gmra.mxu0 %v3219
        %v3259 = vpop.f32.mrf.mxu0
        %v3260 = vadd.f32 0.0, %v3259
        %v3261 = vpop.f32.mrf.mxu0
        %v3262 = vpop.f32.mrf.mxu0
        %v3263 = vpop.f32.mrf.mxu0
        %3264 = vdwg.mxu0
        %3265 = vrot.lane.b32.xlu0 %v1168, 64
        %v3266 = vpop.permute.xlu0 %3265
        %v3268 = vsel %vm1202, %v3185, 0
        %v3271 = vsel %vm3221, %v3266, 0
        %3273 = vmatprep.subr.bf16.mxu0 0
        %3274 = vmatpush1.bf16.msra.mxu0 0
        %3275 = vmatprep.subr.bf16.mxu0 0
        %3276 = vmatpush1.bf16.msra.mxu0 0
        %3277 = vmatprep.subr.bf16.mxu0 0
        %3278 = vmatpush1.bf16.msra.mxu0 0
        %3279 = vmatprep.subr.bf16.mxu0 0
        %3280 = vmatpush1.bf16.msra.mxu0 0
        %3281 = vmatprep.subr.bf16.mxu0 0
        %3282 = vmatpush1.bf16.msra.mxu0 0
        %3283 = vmatprep.subr.bf16.mxu0 0
        %3284 = vmatpush1.bf16.msra.mxu0 0
        %3285 = vmatprep.subr.bf16.mxu0 0
        %3286 = vmatpush1.bf16.msra.mxu0 0
        %3287 = vmatprep.subr.bf16.mxu0 0
        %3288 = vmatpush1.bf16.msra.mxu0 %v3271
        %3289 = vmatprep.subr.bf16.mxu0 0
        %3290 = vmatpush2.bf16.msra.mxu0 0
        %3291 = vmatprep.subr.bf16.mxu0 0
        %3292 = vmatpush2.bf16.msra.mxu0 0
        %3293 = vmatprep.subr.bf16.mxu0 0
        %3294 = vmatpush2.bf16.msra.mxu0 0
        %3295 = vmatprep.subr.bf16.mxu0 0
        %3296 = vmatpush2.bf16.msra.mxu0 0
        %3297 = vmatprep.subr.bf16.mxu0 0
        %3298 = vmatpush2.bf16.msra.mxu0 0
        %3299 = vmatprep.subr.bf16.mxu0 0
        %3300 = vmatpush2.bf16.msra.mxu0 0
        %3301 = vmatprep.subr.bf16.mxu0 0
        %3302 = vmatpush2.bf16.msra.mxu0 0
        %3303 = vmatprep.subr.bf16.mxu0 0
        %3304 = vmatpush2.bf16.msra.mxu0 0
        %3305 = vmatprep.mubr.bf16.mxu0 0
        %3306 = vmatmul.mubr.bf16.gmra.mxu0 %v3268
        %v3307 = vpop.f32.mrf.mxu0
        %v3308 = vadd.f32 0.0, %v3307
        %v3309 = vpop.f32.mrf.mxu0
        %v3310 = vpop.f32.mrf.mxu0
        %v3311 = vpop.f32.mrf.mxu0
        %3312 = vdwg.mxu0
        %3313 = vrot.lane.b32.xlu0 %v1169, 64
        %v3314 = vpop.permute.xlu0 %3313
        %v3316 = vsel %vm1202, %v3186, 0
        %v3319 = vsel %vm3221, %v3314, 0
        %3321 = vmatprep.subr.bf16.mxu0 0
        %3322 = vmatpush1.bf16.msra.mxu0 0
        %3323 = vmatprep.subr.bf16.mxu0 0
        %3324 = vmatpush1.bf16.msra.mxu0 0
        %3325 = vmatprep.subr.bf16.mxu0 0
        %3326 = vmatpush1.bf16.msra.mxu0 0
        %3327 = vmatprep.subr.bf16.mxu0 0
        %3328 = vmatpush1.bf16.msra.mxu0 0
        %3329 = vmatprep.subr.bf16.mxu0 0
        %3330 = vmatpush1.bf16.msra.mxu0 0
        %3331 = vmatprep.subr.bf16.mxu0 0
        %3332 = vmatpush1.bf16.msra.mxu0 0
        %3333 = vmatprep.subr.bf16.mxu0 0
        %3334 = vmatpush1.bf16.msra.mxu0 0
        %3335 = vmatprep.subr.bf16.mxu0 0
        %3336 = vmatpush1.bf16.msra.mxu0 %v3319
        %3337 = vmatprep.subr.bf16.mxu0 0
        %3338 = vmatpush2.bf16.msra.mxu0 0
        %3339 = vmatprep.subr.bf16.mxu0 0
        %3340 = vmatpush2.bf16.msra.mxu0 0
        %3341 = vmatprep.subr.bf16.mxu0 0
        %3342 = vmatpush2.bf16.msra.mxu0 0
        %3343 = vmatprep.subr.bf16.mxu0 0
        %3344 = vmatpush2.bf16.msra.mxu0 0
        %3345 = vmatprep.subr.bf16.mxu0 0
        %3346 = vmatpush2.bf16.msra.mxu0 0
        %3347 = vmatprep.subr.bf16.mxu0 0
        %3348 = vmatpush2.bf16.msra.mxu0 0
        %3349 = vmatprep.subr.bf16.mxu0 0
        %3350 = vmatpush2.bf16.msra.mxu0 0
        %3351 = vmatprep.subr.bf16.mxu0 0
        %3352 = vmatpush2.bf16.msra.mxu0 0
        %3353 = vmatprep.mubr.bf16.mxu0 0
        %3354 = vmatmul.mubr.bf16.gmra.mxu0 %v3316
        %v3355 = vpop.f32.mrf.mxu0
        %v3356 = vadd.f32 0.0, %v3355
        %v3357 = vpop.f32.mrf.mxu0
        %v3358 = vpop.f32.mrf.mxu0
        %v3359 = vpop.f32.mrf.mxu0
        %3360 = vdwg.mxu0
        %3361 = vrot.lane.b32.xlu0 %v1170, 64
        %v3362 = vpop.permute.xlu0 %3361
        %v3364 = vsel %vm1202, %v3187, 0
        %v3367 = vsel %vm3221, %v3362, 0
        %3369 = vmatprep.subr.bf16.mxu0 0
        %3370 = vmatpush1.bf16.msra.mxu0 0
        %3371 = vmatprep.subr.bf16.mxu0 0
        %3372 = vmatpush1.bf16.msra.mxu0 0
        %3373 = vmatprep.subr.bf16.mxu0 0
        %3374 = vmatpush1.bf16.msra.mxu0 0
        %3375 = vmatprep.subr.bf16.mxu0 0
        %3376 = vmatpush1.bf16.msra.mxu0 0
        %3377 = vmatprep.subr.bf16.mxu0 0
        %3378 = vmatpush1.bf16.msra.mxu0 0
        %3379 = vmatprep.subr.bf16.mxu0 0
        %3380 = vmatpush1.bf16.msra.mxu0 0
        %3381 = vmatprep.subr.bf16.mxu0 0
        %3382 = vmatpush1.bf16.msra.mxu0 0
        %3383 = vmatprep.subr.bf16.mxu0 0
        %3384 = vmatpush1.bf16.msra.mxu0 %v3367
        %3385 = vmatprep.subr.bf16.mxu0 0
        %3386 = vmatpush2.bf16.msra.mxu0 0
        %3387 = vmatprep.subr.bf16.mxu0 0
        %3388 = vmatpush2.bf16.msra.mxu0 0
        %3389 = vmatprep.subr.bf16.mxu0 0
        %3390 = vmatpush2.bf16.msra.mxu0 0
        %3391 = vmatprep.subr.bf16.mxu0 0
        %3392 = vmatpush2.bf16.msra.mxu0 0
        %3393 = vmatprep.subr.bf16.mxu0 0
        %3394 = vmatpush2.bf16.msra.mxu0 0
        %3395 = vmatprep.subr.bf16.mxu0 0
        %3396 = vmatpush2.bf16.msra.mxu0 0
        %3397 = vmatprep.subr.bf16.mxu0 0
        %3398 = vmatpush2.bf16.msra.mxu0 0
        %3399 = vmatprep.subr.bf16.mxu0 0
        %3400 = vmatpush2.bf16.msra.mxu0 0
        %3401 = vmatprep.mubr.bf16.mxu0 0
        %3402 = vmatmul.mubr.bf16.gmra.mxu0 %v3364
        %v3403 = vpop.f32.mrf.mxu0
        %v3404 = vadd.f32 0.0, %v3403
        %v3405 = vpop.f32.mrf.mxu0
        %v3406 = vpop.f32.mrf.mxu0
        %v3407 = vpop.f32.mrf.mxu0
        %3408 = vdwg.mxu0
        %3409 = vrot.lane.b32.xlu0 %v1171, 64
        %v3410 = vpop.permute.xlu0 %3409
        %v3412 = vsel %vm1202, %v3188, 0
        %v3415 = vsel %vm3221, %v3410, 0
        %3417 = vmatprep.subr.bf16.mxu0 0
        %3418 = vmatpush1.bf16.msra.mxu0 0
        %3419 = vmatprep.subr.bf16.mxu0 0
        %3420 = vmatpush1.bf16.msra.mxu0 0
        %3421 = vmatprep.subr.bf16.mxu0 0
        %3422 = vmatpush1.bf16.msra.mxu0 0
        %3423 = vmatprep.subr.bf16.mxu0 0
        %3424 = vmatpush1.bf16.msra.mxu0 0
        %3425 = vmatprep.subr.bf16.mxu0 0
        %3426 = vmatpush1.bf16.msra.mxu0 0
        %3427 = vmatprep.subr.bf16.mxu0 0
        %3428 = vmatpush1.bf16.msra.mxu0 0
        %3429 = vmatprep.subr.bf16.mxu0 0
        %3430 = vmatpush1.bf16.msra.mxu0 0
        %3431 = vmatprep.subr.bf16.mxu0 0
        %3432 = vmatpush1.bf16.msra.mxu0 %v3415
        %3433 = vmatprep.subr.bf16.mxu0 0
        %3434 = vmatpush2.bf16.msra.mxu0 0
        %3435 = vmatprep.subr.bf16.mxu0 0
        %3436 = vmatpush2.bf16.msra.mxu0 0
        %3437 = vmatprep.subr.bf16.mxu0 0
        %3438 = vmatpush2.bf16.msra.mxu0 0
        %3439 = vmatprep.subr.bf16.mxu0 0
        %3440 = vmatpush2.bf16.msra.mxu0 0
        %3441 = vmatprep.subr.bf16.mxu0 0
        %3442 = vmatpush2.bf16.msra.mxu0 0
        %3443 = vmatprep.subr.bf16.mxu0 0
        %3444 = vmatpush2.bf16.msra.mxu0 0
        %3445 = vmatprep.subr.bf16.mxu0 0
        %3446 = vmatpush2.bf16.msra.mxu0 0
        %3447 = vmatprep.subr.bf16.mxu0 0
        %3448 = vmatpush2.bf16.msra.mxu0 0
        %3449 = vmatprep.mubr.bf16.mxu0 0
        %3450 = vmatmul.mubr.bf16.gmra.mxu0 %v3412
        %v3451 = vpop.f32.mrf.mxu0
        %v3452 = vadd.f32 0.0, %v3451
        %v3453 = vpop.f32.mrf.mxu0
        %v3454 = vpop.f32.mrf.mxu0
        %v3455 = vpop.f32.mrf.mxu0
        %3456 = vdwg.mxu0
        %3457 = vrot.lane.b32.xlu0 %v1172, 64
        %v3458 = vpop.permute.xlu0 %3457
        %v3460 = vsel %vm1202, %v3189, 0
        %v3463 = vsel %vm3221, %v3458, 0
        %3465 = vmatprep.subr.bf16.mxu0 0
        %3466 = vmatpush1.bf16.msra.mxu0 0
        %3467 = vmatprep.subr.bf16.mxu0 0
        %3468 = vmatpush1.bf16.msra.mxu0 0
        %3469 = vmatprep.subr.bf16.mxu0 0
        %3470 = vmatpush1.bf16.msra.mxu0 0
        %3471 = vmatprep.subr.bf16.mxu0 0
        %3472 = vmatpush1.bf16.msra.mxu0 0
        %3473 = vmatprep.subr.bf16.mxu0 0
        %3474 = vmatpush1.bf16.msra.mxu0 0
        %3475 = vmatprep.subr.bf16.mxu0 0
        %3476 = vmatpush1.bf16.msra.mxu0 0
        %3477 = vmatprep.subr.bf16.mxu0 0
        %3478 = vmatpush1.bf16.msra.mxu0 0
        %3479 = vmatprep.subr.bf16.mxu0 0
        %3480 = vmatpush1.bf16.msra.mxu0 %v3463
        %3481 = vmatprep.subr.bf16.mxu0 0
        %3482 = vmatpush2.bf16.msra.mxu0 0
        %3483 = vmatprep.subr.bf16.mxu0 0
        %3484 = vmatpush2.bf16.msra.mxu0 0
        %3485 = vmatprep.subr.bf16.mxu0 0
        %3486 = vmatpush2.bf16.msra.mxu0 0
        %3487 = vmatprep.subr.bf16.mxu0 0
        %3488 = vmatpush2.bf16.msra.mxu0 0
        %3489 = vmatprep.subr.bf16.mxu0 0
        %3490 = vmatpush2.bf16.msra.mxu0 0
        %3491 = vmatprep.subr.bf16.mxu0 0
        %3492 = vmatpush2.bf16.msra.mxu0 0
        %3493 = vmatprep.subr.bf16.mxu0 0
        %3494 = vmatpush2.bf16.msra.mxu0 0
        %3495 = vmatprep.subr.bf16.mxu0 0
        %3496 = vmatpush2.bf16.msra.mxu0 0
        %3497 = vmatprep.mubr.bf16.mxu0 0
        %3498 = vmatmul.mubr.bf16.gmra.mxu0 %v3460
        %v3499 = vpop.f32.mrf.mxu0
        %v3500 = vadd.f32 0.0, %v3499
        %v3501 = vpop.f32.mrf.mxu0
        %v3502 = vpop.f32.mrf.mxu0
        %v3503 = vpop.f32.mrf.mxu0
        %3504 = vdwg.mxu0
        %3505 = vrot.lane.b32.xlu0 %v1173, 64
        %v3506 = vpop.permute.xlu0 %3505
        %v3508 = vsel %vm1202, %v3190, 0
        %v3511 = vsel %vm3221, %v3506, 0
        %3513 = vmatprep.subr.bf16.mxu0 0
        %3514 = vmatpush1.bf16.msra.mxu0 0
        %3515 = vmatprep.subr.bf16.mxu0 0
        %3516 = vmatpush1.bf16.msra.mxu0 0
        %3517 = vmatprep.subr.bf16.mxu0 0
        %3518 = vmatpush1.bf16.msra.mxu0 0
        %3519 = vmatprep.subr.bf16.mxu0 0
        %3520 = vmatpush1.bf16.msra.mxu0 0
        %3521 = vmatprep.subr.bf16.mxu0 0
        %3522 = vmatpush1.bf16.msra.mxu0 0
        %3523 = vmatprep.subr.bf16.mxu0 0
        %3524 = vmatpush1.bf16.msra.mxu0 0
        %3525 = vmatprep.subr.bf16.mxu0 0
        %3526 = vmatpush1.bf16.msra.mxu0 0
        %3527 = vmatprep.subr.bf16.mxu0 0
        %3528 = vmatpush1.bf16.msra.mxu0 %v3511
        %3529 = vmatprep.subr.bf16.mxu0 0
        %3530 = vmatpush2.bf16.msra.mxu0 0
        %3531 = vmatprep.subr.bf16.mxu0 0
        %3532 = vmatpush2.bf16.msra.mxu0 0
        %3533 = vmatprep.subr.bf16.mxu0 0
        %3534 = vmatpush2.bf16.msra.mxu0 0
        %3535 = vmatprep.subr.bf16.mxu0 0
        %3536 = vmatpush2.bf16.msra.mxu0 0
        %3537 = vmatprep.subr.bf16.mxu0 0
        %3538 = vmatpush2.bf16.msra.mxu0 0
        %3539 = vmatprep.subr.bf16.mxu0 0
        %3540 = vmatpush2.bf16.msra.mxu0 0
        %3541 = vmatprep.subr.bf16.mxu0 0
        %3542 = vmatpush2.bf16.msra.mxu0 0
        %3543 = vmatprep.subr.bf16.mxu0 0
        %3544 = vmatpush2.bf16.msra.mxu0 0
        %3545 = vmatprep.mubr.bf16.mxu0 0
        %3546 = vmatmul.mubr.bf16.gmra.mxu0 %v3508
        %v3547 = vpop.f32.mrf.mxu0
        %v3548 = vadd.f32 0.0, %v3547
        %v3549 = vpop.f32.mrf.mxu0
        %v3550 = vpop.f32.mrf.mxu0
        %v3551 = vpop.f32.mrf.mxu0
        %3552 = vdwg.mxu0
        %3553 = vrot.lane.b32.xlu0 %v1174, 64
        %v3554 = vpop.permute.xlu0 %3553
        %v3556 = vsel %vm1202, %v3191, 0
        %v3559 = vsel %vm3221, %v3554, 0
        %3561 = vmatprep.subr.bf16.mxu0 0
        %3562 = vmatpush1.bf16.msra.mxu0 0
        %3563 = vmatprep.subr.bf16.mxu0 0
        %3564 = vmatpush1.bf16.msra.mxu0 0
        %3565 = vmatprep.subr.bf16.mxu0 0
        %3566 = vmatpush1.bf16.msra.mxu0 0
        %3567 = vmatprep.subr.bf16.mxu0 0
        %3568 = vmatpush1.bf16.msra.mxu0 0
        %3569 = vmatprep.subr.bf16.mxu0 0
        %3570 = vmatpush1.bf16.msra.mxu0 0
        %3571 = vmatprep.subr.bf16.mxu0 0
        %3572 = vmatpush1.bf16.msra.mxu0 0
        %3573 = vmatprep.subr.bf16.mxu0 0
        %3574 = vmatpush1.bf16.msra.mxu0 0
        %3575 = vmatprep.subr.bf16.mxu0 0
        %3576 = vmatpush1.bf16.msra.mxu0 %v3559
        %3577 = vmatprep.subr.bf16.mxu0 0
        %3578 = vmatpush2.bf16.msra.mxu0 0
        %3579 = vmatprep.subr.bf16.mxu0 0
        %3580 = vmatpush2.bf16.msra.mxu0 0
        %3581 = vmatprep.subr.bf16.mxu0 0
        %3582 = vmatpush2.bf16.msra.mxu0 0
        %3583 = vmatprep.subr.bf16.mxu0 0
        %3584 = vmatpush2.bf16.msra.mxu0 0
        %3585 = vmatprep.subr.bf16.mxu0 0
        %3586 = vmatpush2.bf16.msra.mxu0 0
        %3587 = vmatprep.subr.bf16.mxu0 0
        %3588 = vmatpush2.bf16.msra.mxu0 0
        %3589 = vmatprep.subr.bf16.mxu0 0
        %3590 = vmatpush2.bf16.msra.mxu0 0
        %3591 = vmatprep.subr.bf16.mxu0 0
        %3592 = vmatpush2.bf16.msra.mxu0 0
        %3593 = vmatprep.mubr.bf16.mxu0 0
        %3594 = vmatmul.mubr.bf16.gmra.mxu0 %v3556
        %v3595 = vpop.f32.mrf.mxu0
        %v3596 = vadd.f32 0.0, %v3595
        %v3597 = vpop.f32.mrf.mxu0
        %v3598 = vpop.f32.mrf.mxu0
        %v3599 = vpop.f32.mrf.mxu0
        %3600 = vdwg.mxu0
        %3601 = vrot.lane.b32.xlu0 %v1175, 64
        %v3602 = vpop.permute.xlu0 %3601
        %v3604 = vsel %vm1202, %v3192, 0
        %v3607 = vsel %vm3221, %v3602, 0
        %3609 = vmatprep.subr.bf16.mxu0 0
        %3610 = vmatpush1.bf16.msra.mxu0 0
        %3611 = vmatprep.subr.bf16.mxu0 0
        %3612 = vmatpush1.bf16.msra.mxu0 0
        %3613 = vmatprep.subr.bf16.mxu0 0
        %3614 = vmatpush1.bf16.msra.mxu0 0
        %3615 = vmatprep.subr.bf16.mxu0 0
        %3616 = vmatpush1.bf16.msra.mxu0 0
        %3617 = vmatprep.subr.bf16.mxu0 0
        %3618 = vmatpush1.bf16.msra.mxu0 0
        %3619 = vmatprep.subr.bf16.mxu0 0
        %3620 = vmatpush1.bf16.msra.mxu0 0
        %3621 = vmatprep.subr.bf16.mxu0 0
        %3622 = vmatpush1.bf16.msra.mxu0 0
        %3623 = vmatprep.subr.bf16.mxu0 0
        %3624 = vmatpush1.bf16.msra.mxu0 %v3607
        %3625 = vmatprep.subr.bf16.mxu0 0
        %3626 = vmatpush2.bf16.msra.mxu0 0
        %3627 = vmatprep.subr.bf16.mxu0 0
        %3628 = vmatpush2.bf16.msra.mxu0 0
        %3629 = vmatprep.subr.bf16.mxu0 0
        %3630 = vmatpush2.bf16.msra.mxu0 0
        %3631 = vmatprep.subr.bf16.mxu0 0
        %3632 = vmatpush2.bf16.msra.mxu0 0
        %3633 = vmatprep.subr.bf16.mxu0 0
        %3634 = vmatpush2.bf16.msra.mxu0 0
        %3635 = vmatprep.subr.bf16.mxu0 0
        %3636 = vmatpush2.bf16.msra.mxu0 0
        %3637 = vmatprep.subr.bf16.mxu0 0
        %3638 = vmatpush2.bf16.msra.mxu0 0
        %3639 = vmatprep.subr.bf16.mxu0 0
        %3640 = vmatpush2.bf16.msra.mxu0 0
        %3641 = vmatprep.mubr.bf16.mxu0 0
        %3642 = vmatmul.mubr.bf16.gmra.mxu0 %v3604
        %v3643 = vpop.f32.mrf.mxu0
        %v3644 = vadd.f32 0.0, %v3643
        %v3645 = vpop.f32.mrf.mxu0
        %v3646 = vpop.f32.mrf.mxu0
        %v3647 = vpop.f32.mrf.mxu0
        %3648 = vdwg.mxu0
        %3649 = vrot.lane.b32.xlu0 %v1176, 64
        %v3650 = vpop.permute.xlu0 %3649
        %v3652 = vsel %vm1202, %v3193, 0
        %v3655 = vsel %vm3221, %v3650, 0
        %3657 = vmatprep.subr.bf16.mxu0 0
        %3658 = vmatpush1.bf16.msra.mxu0 0
        %3659 = vmatprep.subr.bf16.mxu0 0
        %3660 = vmatpush1.bf16.msra.mxu0 0
        %3661 = vmatprep.subr.bf16.mxu0 0
        %3662 = vmatpush1.bf16.msra.mxu0 0
        %3663 = vmatprep.subr.bf16.mxu0 0
        %3664 = vmatpush1.bf16.msra.mxu0 0
        %3665 = vmatprep.subr.bf16.mxu0 0
        %3666 = vmatpush1.bf16.msra.mxu0 0
        %3667 = vmatprep.subr.bf16.mxu0 0
        %3668 = vmatpush1.bf16.msra.mxu0 0
        %3669 = vmatprep.subr.bf16.mxu0 0
        %3670 = vmatpush1.bf16.msra.mxu0 0
        %3671 = vmatprep.subr.bf16.mxu0 0
        %3672 = vmatpush1.bf16.msra.mxu0 %v3655
        %3673 = vmatprep.subr.bf16.mxu0 0
        %3674 = vmatpush2.bf16.msra.mxu0 0
        %3675 = vmatprep.subr.bf16.mxu0 0
        %3676 = vmatpush2.bf16.msra.mxu0 0
        %3677 = vmatprep.subr.bf16.mxu0 0
        %3678 = vmatpush2.bf16.msra.mxu0 0
        %3679 = vmatprep.subr.bf16.mxu0 0
        %3680 = vmatpush2.bf16.msra.mxu0 0
        %3681 = vmatprep.subr.bf16.mxu0 0
        %3682 = vmatpush2.bf16.msra.mxu0 0
        %3683 = vmatprep.subr.bf16.mxu0 0
        %3684 = vmatpush2.bf16.msra.mxu0 0
        %3685 = vmatprep.subr.bf16.mxu0 0
        %3686 = vmatpush2.bf16.msra.mxu0 0
        %3687 = vmatprep.subr.bf16.mxu0 0
        %3688 = vmatpush2.bf16.msra.mxu0 0
        %3689 = vmatprep.mubr.bf16.mxu0 0
        %3690 = vmatmul.mubr.bf16.gmra.mxu0 %v3652
        %v3691 = vpop.f32.mrf.mxu0
        %v3692 = vadd.f32 0.0, %v3691
        %v3693 = vpop.f32.mrf.mxu0
        %v3694 = vpop.f32.mrf.mxu0
        %v3695 = vpop.f32.mrf.mxu0
        %3696 = vdwg.mxu0
        %3697 = vrot.lane.b32.xlu0 %v1177, 64
        %v3698 = vpop.permute.xlu0 %3697
        %v3700 = vsel %vm1202, %v3194, 0
        %v3703 = vsel %vm3221, %v3698, 0
        %3705 = vmatprep.subr.bf16.mxu0 0
        %3706 = vmatpush1.bf16.msra.mxu0 0
        %3707 = vmatprep.subr.bf16.mxu0 0
        %3708 = vmatpush1.bf16.msra.mxu0 0
        %3709 = vmatprep.subr.bf16.mxu0 0
        %3710 = vmatpush1.bf16.msra.mxu0 0
        %3711 = vmatprep.subr.bf16.mxu0 0
        %3712 = vmatpush1.bf16.msra.mxu0 0
        %3713 = vmatprep.subr.bf16.mxu0 0
        %3714 = vmatpush1.bf16.msra.mxu0 0
        %3715 = vmatprep.subr.bf16.mxu0 0
        %3716 = vmatpush1.bf16.msra.mxu0 0
        %3717 = vmatprep.subr.bf16.mxu0 0
        %3718 = vmatpush1.bf16.msra.mxu0 0
        %3719 = vmatprep.subr.bf16.mxu0 0
        %3720 = vmatpush1.bf16.msra.mxu0 %v3703
        %3721 = vmatprep.subr.bf16.mxu0 0
        %3722 = vmatpush2.bf16.msra.mxu0 0
        %3723 = vmatprep.subr.bf16.mxu0 0
        %3724 = vmatpush2.bf16.msra.mxu0 0
        %3725 = vmatprep.subr.bf16.mxu0 0
        %3726 = vmatpush2.bf16.msra.mxu0 0
        %3727 = vmatprep.subr.bf16.mxu0 0
        %3728 = vmatpush2.bf16.msra.mxu0 0
        %3729 = vmatprep.subr.bf16.mxu0 0
        %3730 = vmatpush2.bf16.msra.mxu0 0
        %3731 = vmatprep.subr.bf16.mxu0 0
        %3732 = vmatpush2.bf16.msra.mxu0 0
        %3733 = vmatprep.subr.bf16.mxu0 0
        %3734 = vmatpush2.bf16.msra.mxu0 0
        %3735 = vmatprep.subr.bf16.mxu0 0
        %3736 = vmatpush2.bf16.msra.mxu0 0
        %3737 = vmatprep.mubr.bf16.mxu0 0
        %3738 = vmatmul.mubr.bf16.gmra.mxu0 %v3700
        %v3739 = vpop.f32.mrf.mxu0
        %v3740 = vadd.f32 0.0, %v3739
        %v3741 = vpop.f32.mrf.mxu0
        %v3742 = vpop.f32.mrf.mxu0
        %v3743 = vpop.f32.mrf.mxu0
        %3744 = vdwg.mxu0
        %3745 = vrot.lane.b32.xlu0 %v1178, 64
        %v3746 = vpop.permute.xlu0 %3745
        %v3748 = vsel %vm1202, %v3195, 0
        %v3751 = vsel %vm3221, %v3746, 0
        %3753 = vmatprep.subr.bf16.mxu0 0
        %3754 = vmatpush1.bf16.msra.mxu0 0
        %3755 = vmatprep.subr.bf16.mxu0 0
        %3756 = vmatpush1.bf16.msra.mxu0 0
        %3757 = vmatprep.subr.bf16.mxu0 0
        %3758 = vmatpush1.bf16.msra.mxu0 0
        %3759 = vmatprep.subr.bf16.mxu0 0
        %3760 = vmatpush1.bf16.msra.mxu0 0
        %3761 = vmatprep.subr.bf16.mxu0 0
        %3762 = vmatpush1.bf16.msra.mxu0 0
        %3763 = vmatprep.subr.bf16.mxu0 0
        %3764 = vmatpush1.bf16.msra.mxu0 0
        %3765 = vmatprep.subr.bf16.mxu0 0
        %3766 = vmatpush1.bf16.msra.mxu0 0
        %3767 = vmatprep.subr.bf16.mxu0 0
        %3768 = vmatpush1.bf16.msra.mxu0 %v3751
        %3769 = vmatprep.subr.bf16.mxu0 0
        %3770 = vmatpush2.bf16.msra.mxu0 0
        %3771 = vmatprep.subr.bf16.mxu0 0
        %3772 = vmatpush2.bf16.msra.mxu0 0
        %3773 = vmatprep.subr.bf16.mxu0 0
        %3774 = vmatpush2.bf16.msra.mxu0 0
        %3775 = vmatprep.subr.bf16.mxu0 0
        %3776 = vmatpush2.bf16.msra.mxu0 0
        %3777 = vmatprep.subr.bf16.mxu0 0
        %3778 = vmatpush2.bf16.msra.mxu0 0
        %3779 = vmatprep.subr.bf16.mxu0 0
        %3780 = vmatpush2.bf16.msra.mxu0 0
        %3781 = vmatprep.subr.bf16.mxu0 0
        %3782 = vmatpush2.bf16.msra.mxu0 0
        %3783 = vmatprep.subr.bf16.mxu0 0
        %3784 = vmatpush2.bf16.msra.mxu0 0
        %3785 = vmatprep.mubr.bf16.mxu0 0
        %3786 = vmatmul.mubr.bf16.gmra.mxu0 %v3748
        %v3787 = vpop.f32.mrf.mxu0
        %v3788 = vadd.f32 0.0, %v3787
        %v3789 = vpop.f32.mrf.mxu0
        %v3790 = vpop.f32.mrf.mxu0
        %v3791 = vpop.f32.mrf.mxu0
        %3792 = vdwg.mxu0
        %3793 = vrot.lane.b32.xlu0 %v1179, 64
        %v3794 = vpop.permute.xlu0 %3793
        %v3796 = vsel %vm1202, %v3196, 0
        %v3799 = vsel %vm3221, %v3794, 0
        %3801 = vmatprep.subr.bf16.mxu0 0
        %3802 = vmatpush1.bf16.msra.mxu0 0
        %3803 = vmatprep.subr.bf16.mxu0 0
        %3804 = vmatpush1.bf16.msra.mxu0 0
        %3805 = vmatprep.subr.bf16.mxu0 0
        %3806 = vmatpush1.bf16.msra.mxu0 0
        %3807 = vmatprep.subr.bf16.mxu0 0
        %3808 = vmatpush1.bf16.msra.mxu0 0
        %3809 = vmatprep.subr.bf16.mxu0 0
        %3810 = vmatpush1.bf16.msra.mxu0 0
        %3811 = vmatprep.subr.bf16.mxu0 0
        %3812 = vmatpush1.bf16.msra.mxu0 0
        %3813 = vmatprep.subr.bf16.mxu0 0
        %3814 = vmatpush1.bf16.msra.mxu0 0
        %3815 = vmatprep.subr.bf16.mxu0 0
        %3816 = vmatpush1.bf16.msra.mxu0 %v3799
        %3817 = vmatprep.subr.bf16.mxu0 0
        %3818 = vmatpush2.bf16.msra.mxu0 0
        %3819 = vmatprep.subr.bf16.mxu0 0
        %3820 = vmatpush2.bf16.msra.mxu0 0
        %3821 = vmatprep.subr.bf16.mxu0 0
        %3822 = vmatpush2.bf16.msra.mxu0 0
        %3823 = vmatprep.subr.bf16.mxu0 0
        %3824 = vmatpush2.bf16.msra.mxu0 0
        %3825 = vmatprep.subr.bf16.mxu0 0
        %3826 = vmatpush2.bf16.msra.mxu0 0
        %3827 = vmatprep.subr.bf16.mxu0 0
        %3828 = vmatpush2.bf16.msra.mxu0 0
        %3829 = vmatprep.subr.bf16.mxu0 0
        %3830 = vmatpush2.bf16.msra.mxu0 0
        %3831 = vmatprep.subr.bf16.mxu0 0
        %3832 = vmatpush2.bf16.msra.mxu0 0
        %3833 = vmatprep.mubr.bf16.mxu0 0
        %3834 = vmatmul.mubr.bf16.gmra.mxu0 %v3796
        %v3835 = vpop.f32.mrf.mxu0
        %v3836 = vadd.f32 0.0, %v3835
        %v3837 = vpop.f32.mrf.mxu0
        %v3838 = vpop.f32.mrf.mxu0
        %v3839 = vpop.f32.mrf.mxu0
        %3840 = vdwg.mxu0
        %3841 = vrot.lane.b32.xlu0 %v1180, 64
        %v3842 = vpop.permute.xlu0 %3841
        %v3844 = vsel %vm1202, %v3197, 0
        %v3847 = vsel %vm3221, %v3842, 0
        %3849 = vmatprep.subr.bf16.mxu0 0
        %3850 = vmatpush1.bf16.msra.mxu0 0
        %3851 = vmatprep.subr.bf16.mxu0 0
        %3852 = vmatpush1.bf16.msra.mxu0 0
        %3853 = vmatprep.subr.bf16.mxu0 0
        %3854 = vmatpush1.bf16.msra.mxu0 0
        %3855 = vmatprep.subr.bf16.mxu0 0
        %3856 = vmatpush1.bf16.msra.mxu0 0
        %3857 = vmatprep.subr.bf16.mxu0 0
        %3858 = vmatpush1.bf16.msra.mxu0 0
        %3859 = vmatprep.subr.bf16.mxu0 0
        %3860 = vmatpush1.bf16.msra.mxu0 0
        %3861 = vmatprep.subr.bf16.mxu0 0
        %3862 = vmatpush1.bf16.msra.mxu0 0
        %3863 = vmatprep.subr.bf16.mxu0 0
        %3864 = vmatpush1.bf16.msra.mxu0 %v3847
        %3865 = vmatprep.subr.bf16.mxu0 0
        %3866 = vmatpush2.bf16.msra.mxu0 0
        %3867 = vmatprep.subr.bf16.mxu0 0
        %3868 = vmatpush2.bf16.msra.mxu0 0
        %3869 = vmatprep.subr.bf16.mxu0 0
        %3870 = vmatpush2.bf16.msra.mxu0 0
        %3871 = vmatprep.subr.bf16.mxu0 0
        %3872 = vmatpush2.bf16.msra.mxu0 0
        %3873 = vmatprep.subr.bf16.mxu0 0
        %3874 = vmatpush2.bf16.msra.mxu0 0
        %3875 = vmatprep.subr.bf16.mxu0 0
        %3876 = vmatpush2.bf16.msra.mxu0 0
        %3877 = vmatprep.subr.bf16.mxu0 0
        %3878 = vmatpush2.bf16.msra.mxu0 0
        %3879 = vmatprep.subr.bf16.mxu0 0
        %3880 = vmatpush2.bf16.msra.mxu0 0
        %3881 = vmatprep.mubr.bf16.mxu0 0
        %3882 = vmatmul.mubr.bf16.gmra.mxu0 %v3844
        %v3883 = vpop.f32.mrf.mxu0
        %v3884 = vadd.f32 0.0, %v3883
        %v3885 = vpop.f32.mrf.mxu0
        %v3886 = vpop.f32.mrf.mxu0
        %v3887 = vpop.f32.mrf.mxu0
        %3888 = vdwg.mxu0
        %3889 = vrot.lane.b32.xlu0 %v1181, 64
        %v3890 = vpop.permute.xlu0 %3889
        %v3892 = vsel %vm1202, %v3198, 0
        %v3895 = vsel %vm3221, %v3890, 0
        %3897 = vmatprep.subr.bf16.mxu0 0
        %3898 = vmatpush1.bf16.msra.mxu0 0
        %3899 = vmatprep.subr.bf16.mxu0 0
        %3900 = vmatpush1.bf16.msra.mxu0 0
        %3901 = vmatprep.subr.bf16.mxu0 0
        %3902 = vmatpush1.bf16.msra.mxu0 0
        %3903 = vmatprep.subr.bf16.mxu0 0
        %3904 = vmatpush1.bf16.msra.mxu0 0
        %3905 = vmatprep.subr.bf16.mxu0 0
        %3906 = vmatpush1.bf16.msra.mxu0 0
        %3907 = vmatprep.subr.bf16.mxu0 0
        %3908 = vmatpush1.bf16.msra.mxu0 0
        %3909 = vmatprep.subr.bf16.mxu0 0
        %3910 = vmatpush1.bf16.msra.mxu0 0
        %3911 = vmatprep.subr.bf16.mxu0 0
        %3912 = vmatpush1.bf16.msra.mxu0 %v3895
        %3913 = vmatprep.subr.bf16.mxu0 0
        %3914 = vmatpush2.bf16.msra.mxu0 0
        %3915 = vmatprep.subr.bf16.mxu0 0
        %3916 = vmatpush2.bf16.msra.mxu0 0
        %3917 = vmatprep.subr.bf16.mxu0 0
        %3918 = vmatpush2.bf16.msra.mxu0 0
        %3919 = vmatprep.subr.bf16.mxu0 0
        %3920 = vmatpush2.bf16.msra.mxu0 0
        %3921 = vmatprep.subr.bf16.mxu0 0
        %3922 = vmatpush2.bf16.msra.mxu0 0
        %3923 = vmatprep.subr.bf16.mxu0 0
        %3924 = vmatpush2.bf16.msra.mxu0 0
        %3925 = vmatprep.subr.bf16.mxu0 0
        %3926 = vmatpush2.bf16.msra.mxu0 0
        %3927 = vmatprep.subr.bf16.mxu0 0
        %3928 = vmatpush2.bf16.msra.mxu0 0
        %3929 = vmatprep.mubr.bf16.mxu0 0
        %3930 = vmatmul.mubr.bf16.gmra.mxu0 %v3892
        %v3931 = vpop.f32.mrf.mxu0
        %v3932 = vadd.f32 0.0, %v3931
        %v3933 = vpop.f32.mrf.mxu0
        %v3934 = vpop.f32.mrf.mxu0
        %v3935 = vpop.f32.mrf.mxu0
        %3936 = vdwg.mxu0
        %3937 = vrot.lane.b32.xlu0 %v1182, 64
        %v3938 = vpop.permute.xlu0 %3937
        %v3940 = vsel %vm1202, %v3199, 0
        %v3943 = vsel %vm3221, %v3938, 0
        %3945 = vmatprep.subr.bf16.mxu0 0
        %3946 = vmatpush1.bf16.msra.mxu0 0
        %3947 = vmatprep.subr.bf16.mxu0 0
        %3948 = vmatpush1.bf16.msra.mxu0 0
        %3949 = vmatprep.subr.bf16.mxu0 0
        %3950 = vmatpush1.bf16.msra.mxu0 0
        %3951 = vmatprep.subr.bf16.mxu0 0
        %3952 = vmatpush1.bf16.msra.mxu0 0
        %3953 = vmatprep.subr.bf16.mxu0 0
        %3954 = vmatpush1.bf16.msra.mxu0 0
        %3955 = vmatprep.subr.bf16.mxu0 0
        %3956 = vmatpush1.bf16.msra.mxu0 0
        %3957 = vmatprep.subr.bf16.mxu0 0
        %3958 = vmatpush1.bf16.msra.mxu0 0
        %3959 = vmatprep.subr.bf16.mxu0 0
        %3960 = vmatpush1.bf16.msra.mxu0 %v3943
        %3961 = vmatprep.subr.bf16.mxu0 0
        %3962 = vmatpush2.bf16.msra.mxu0 0
        %3963 = vmatprep.subr.bf16.mxu0 0
        %3964 = vmatpush2.bf16.msra.mxu0 0
        %3965 = vmatprep.subr.bf16.mxu0 0
        %3966 = vmatpush2.bf16.msra.mxu0 0
        %3967 = vmatprep.subr.bf16.mxu0 0
        %3968 = vmatpush2.bf16.msra.mxu0 0
        %3969 = vmatprep.subr.bf16.mxu0 0
        %3970 = vmatpush2.bf16.msra.mxu0 0
        %3971 = vmatprep.subr.bf16.mxu0 0
        %3972 = vmatpush2.bf16.msra.mxu0 0
        %3973 = vmatprep.subr.bf16.mxu0 0
        %3974 = vmatpush2.bf16.msra.mxu0 0
        %3975 = vmatprep.subr.bf16.mxu0 0
        %3976 = vmatpush2.bf16.msra.mxu0 0
        %3977 = vmatprep.mubr.bf16.mxu0 0
        %3978 = vmatmul.mubr.bf16.gmra.mxu0 %v3940
        %v3979 = vpop.f32.mrf.mxu0
        %v3980 = vadd.f32 0.0, %v3979
        %v3981 = vpop.f32.mrf.mxu0
        %v3982 = vpop.f32.mrf.mxu0
        %v3983 = vpop.f32.mrf.mxu0
        %3984 = vdwg.mxu0
        %3985 = vrot.lane.b32.xlu0 %v1183, 64
        %v3986 = vpop.permute.xlu0 %3985
        %v3988 = vsel %vm1202, %v3200, 0
        %v3991 = vsel %vm3221, %v3986, 0
        %3993 = vmatprep.subr.bf16.mxu0 0
        %3994 = vmatpush1.bf16.msra.mxu0 0
        %3995 = vmatprep.subr.bf16.mxu0 0
        %3996 = vmatpush1.bf16.msra.mxu0 0
        %3997 = vmatprep.subr.bf16.mxu0 0
        %3998 = vmatpush1.bf16.msra.mxu0 0
        %3999 = vmatprep.subr.bf16.mxu0 0
        %4000 = vmatpush1.bf16.msra.mxu0 0
        %4001 = vmatprep.subr.bf16.mxu0 0
        %4002 = vmatpush1.bf16.msra.mxu0 0
        %4003 = vmatprep.subr.bf16.mxu0 0
        %4004 = vmatpush1.bf16.msra.mxu0 0
        %4005 = vmatprep.subr.bf16.mxu0 0
        %4006 = vmatpush1.bf16.msra.mxu0 0
        %4007 = vmatprep.subr.bf16.mxu0 0
        %4008 = vmatpush1.bf16.msra.mxu0 %v3991
        %4009 = vmatprep.subr.bf16.mxu0 0
        %4010 = vmatpush2.bf16.msra.mxu0 0
        %4011 = vmatprep.subr.bf16.mxu0 0
        %4012 = vmatpush2.bf16.msra.mxu0 0
        %4013 = vmatprep.subr.bf16.mxu0 0
        %4014 = vmatpush2.bf16.msra.mxu0 0
        %4015 = vmatprep.subr.bf16.mxu0 0
        %4016 = vmatpush2.bf16.msra.mxu0 0
        %4017 = vmatprep.subr.bf16.mxu0 0
        %4018 = vmatpush2.bf16.msra.mxu0 0
        %4019 = vmatprep.subr.bf16.mxu0 0
        %4020 = vmatpush2.bf16.msra.mxu0 0
        %4021 = vmatprep.subr.bf16.mxu0 0
        %4022 = vmatpush2.bf16.msra.mxu0 0
        %4023 = vmatprep.subr.bf16.mxu0 0
        %4024 = vmatpush2.bf16.msra.mxu0 0
        %4025 = vmatprep.mubr.bf16.mxu0 0
        %4026 = vmatmul.mubr.bf16.gmra.mxu0 %v3988
        %v4027 = vpop.f32.mrf.mxu0
        %v4028 = vadd.f32 0.0, %v4027
        %v4029 = vpop.f32.mrf.mxu0
        %v4030 = vpop.f32.mrf.mxu0
        %v4031 = vpop.f32.mrf.mxu0
        %4032 = vdwg.mxu0
        %4033 = vrot.lane.b32.xlu0 %v1184, 64
        %v4034 = vpop.permute.xlu0 %4033
        %v4036 = vsel %vm1202, %v3201, 0
        %v4039 = vsel %vm3221, %v4034, 0
        %4041 = vmatprep.subr.bf16.mxu0 0
        %4042 = vmatpush1.bf16.msra.mxu0 0
        %4043 = vmatprep.subr.bf16.mxu0 0
        %4044 = vmatpush1.bf16.msra.mxu0 0
        %4045 = vmatprep.subr.bf16.mxu0 0
        %4046 = vmatpush1.bf16.msra.mxu0 0
        %4047 = vmatprep.subr.bf16.mxu0 0
        %4048 = vmatpush1.bf16.msra.mxu0 0
        %4049 = vmatprep.subr.bf16.mxu0 0
        %4050 = vmatpush1.bf16.msra.mxu0 0
        %4051 = vmatprep.subr.bf16.mxu0 0
        %4052 = vmatpush1.bf16.msra.mxu0 0
        %4053 = vmatprep.subr.bf16.mxu0 0
        %4054 = vmatpush1.bf16.msra.mxu0 0
        %4055 = vmatprep.subr.bf16.mxu0 0
        %4056 = vmatpush1.bf16.msra.mxu0 %v4039
        %4057 = vmatprep.subr.bf16.mxu0 0
        %4058 = vmatpush2.bf16.msra.mxu0 0
        %4059 = vmatprep.subr.bf16.mxu0 0
        %4060 = vmatpush2.bf16.msra.mxu0 0
        %4061 = vmatprep.subr.bf16.mxu0 0
        %4062 = vmatpush2.bf16.msra.mxu0 0
        %4063 = vmatprep.subr.bf16.mxu0 0
        %4064 = vmatpush2.bf16.msra.mxu0 0
        %4065 = vmatprep.subr.bf16.mxu0 0
        %4066 = vmatpush2.bf16.msra.mxu0 0
        %4067 = vmatprep.subr.bf16.mxu0 0
        %4068 = vmatpush2.bf16.msra.mxu0 0
        %4069 = vmatprep.subr.bf16.mxu0 0
        %4070 = vmatpush2.bf16.msra.mxu0 0
        %4071 = vmatprep.subr.bf16.mxu0 0
        %4072 = vmatpush2.bf16.msra.mxu0 0
        %4073 = vmatprep.mubr.bf16.mxu0 0
        %4074 = vmatmul.mubr.bf16.gmra.mxu0 %v4036
        %v4075 = vpop.f32.mrf.mxu0
        %v4076 = vadd.f32 0.0, %v4075
        %v4077 = vpop.f32.mrf.mxu0
        %v4078 = vpop.f32.mrf.mxu0
        %v4079 = vpop.f32.mrf.mxu0
        %4080 = vdwg.mxu0
        %4081 = vrot.lane.b32.xlu0 %v1185, 64
        %v4082 = vpop.permute.xlu0 %4081
        %v4084 = vsel %vm1202, %v3202, 0
        %v4087 = vsel %vm3221, %v4082, 0
        %4089 = vmatprep.subr.bf16.mxu0 0
        %4090 = vmatpush1.bf16.msra.mxu0 0
        %4091 = vmatprep.subr.bf16.mxu0 0
        %4092 = vmatpush1.bf16.msra.mxu0 0
        %4093 = vmatprep.subr.bf16.mxu0 0
        %4094 = vmatpush1.bf16.msra.mxu0 0
        %4095 = vmatprep.subr.bf16.mxu0 0
        %4096 = vmatpush1.bf16.msra.mxu0 0
        %4097 = vmatprep.subr.bf16.mxu0 0
        %4098 = vmatpush1.bf16.msra.mxu0 0
        %4099 = vmatprep.subr.bf16.mxu0 0
        %4100 = vmatpush1.bf16.msra.mxu0 0
        %4101 = vmatprep.subr.bf16.mxu0 0
        %4102 = vmatpush1.bf16.msra.mxu0 0
        %4103 = vmatprep.subr.bf16.mxu0 0
        %4104 = vmatpush1.bf16.msra.mxu0 %v4087
        %4105 = vmatprep.subr.bf16.mxu0 0
        %4106 = vmatpush2.bf16.msra.mxu0 0
        %4107 = vmatprep.subr.bf16.mxu0 0
        %4108 = vmatpush2.bf16.msra.mxu0 0
        %4109 = vmatprep.subr.bf16.mxu0 0
        %4110 = vmatpush2.bf16.msra.mxu0 0
        %4111 = vmatprep.subr.bf16.mxu0 0
        %4112 = vmatpush2.bf16.msra.mxu0 0
        %4113 = vmatprep.subr.bf16.mxu0 0
        %4114 = vmatpush2.bf16.msra.mxu0 0
        %4115 = vmatprep.subr.bf16.mxu0 0
        %4116 = vmatpush2.bf16.msra.mxu0 0
        %4117 = vmatprep.subr.bf16.mxu0 0
        %4118 = vmatpush2.bf16.msra.mxu0 0
        %4119 = vmatprep.subr.bf16.mxu0 0
        %4120 = vmatpush2.bf16.msra.mxu0 0
        %4121 = vmatprep.mubr.bf16.mxu0 0
        %4122 = vmatmul.mubr.bf16.gmra.mxu0 %v4084
        %v4123 = vpop.f32.mrf.mxu0
        %v4124 = vadd.f32 0.0, %v4123
        %v4125 = vpop.f32.mrf.mxu0
        %v4126 = vpop.f32.mrf.mxu0
        %v4127 = vpop.f32.mrf.mxu0
        %4128 = vdwg.mxu0
        %4129 = vrot.lane.b32.xlu0 %v1186, 64
        %v4130 = vpop.permute.xlu0 %4129
        %v4132 = vsel %vm1202, %v3203, 0
        %v4135 = vsel %vm3221, %v4130, 0
        %4137 = vmatprep.subr.bf16.mxu0 0
        %4138 = vmatpush1.bf16.msra.mxu0 0
        %4139 = vmatprep.subr.bf16.mxu0 0
        %4140 = vmatpush1.bf16.msra.mxu0 0
        %4141 = vmatprep.subr.bf16.mxu0 0
        %4142 = vmatpush1.bf16.msra.mxu0 0
        %4143 = vmatprep.subr.bf16.mxu0 0
        %4144 = vmatpush1.bf16.msra.mxu0 0
        %4145 = vmatprep.subr.bf16.mxu0 0
        %4146 = vmatpush1.bf16.msra.mxu0 0
        %4147 = vmatprep.subr.bf16.mxu0 0
        %4148 = vmatpush1.bf16.msra.mxu0 0
        %4149 = vmatprep.subr.bf16.mxu0 0
        %4150 = vmatpush1.bf16.msra.mxu0 0
        %4151 = vmatprep.subr.bf16.mxu0 0
        %4152 = vmatpush1.bf16.msra.mxu0 %v4135
        %4153 = vmatprep.subr.bf16.mxu0 0
        %4154 = vmatpush2.bf16.msra.mxu0 0
        %4155 = vmatprep.subr.bf16.mxu0 0
        %4156 = vmatpush2.bf16.msra.mxu0 0
        %4157 = vmatprep.subr.bf16.mxu0 0
        %4158 = vmatpush2.bf16.msra.mxu0 0
        %4159 = vmatprep.subr.bf16.mxu0 0
        %4160 = vmatpush2.bf16.msra.mxu0 0
        %4161 = vmatprep.subr.bf16.mxu0 0
        %4162 = vmatpush2.bf16.msra.mxu0 0
        %4163 = vmatprep.subr.bf16.mxu0 0
        %4164 = vmatpush2.bf16.msra.mxu0 0
        %4165 = vmatprep.subr.bf16.mxu0 0
        %4166 = vmatpush2.bf16.msra.mxu0 0
        %4167 = vmatprep.subr.bf16.mxu0 0
        %4168 = vmatpush2.bf16.msra.mxu0 0
        %4169 = vmatprep.mubr.bf16.mxu0 0
        %4170 = vmatmul.mubr.bf16.gmra.mxu0 %v4132
        %v4171 = vpop.f32.mrf.mxu0
        %v4172 = vadd.f32 0.0, %v4171
        %v4173 = vpop.f32.mrf.mxu0
        %v4174 = vpop.f32.mrf.mxu0
        %v4175 = vpop.f32.mrf.mxu0
        %4176 = vdwg.mxu0
        %4177 = vrot.lane.b32.xlu0 %v1187, 64
        %v4178 = vpop.permute.xlu0 %4177
        %v4180 = vsel %vm1202, %v3204, 0
        %v4183 = vsel %vm3221, %v4178, 0
        %4185 = vmatprep.subr.bf16.mxu0 0
        %4186 = vmatpush1.bf16.msra.mxu0 0
        %4187 = vmatprep.subr.bf16.mxu0 0
        %4188 = vmatpush1.bf16.msra.mxu0 0
        %4189 = vmatprep.subr.bf16.mxu0 0
        %4190 = vmatpush1.bf16.msra.mxu0 0
        %4191 = vmatprep.subr.bf16.mxu0 0
        %4192 = vmatpush1.bf16.msra.mxu0 0
        %4193 = vmatprep.subr.bf16.mxu0 0
        %4194 = vmatpush1.bf16.msra.mxu0 0
        %4195 = vmatprep.subr.bf16.mxu0 0
        %4196 = vmatpush1.bf16.msra.mxu0 0
        %4197 = vmatprep.subr.bf16.mxu0 0
        %4198 = vmatpush1.bf16.msra.mxu0 0
        %4199 = vmatprep.subr.bf16.mxu0 0
        %4200 = vmatpush1.bf16.msra.mxu0 %v4183
        %4201 = vmatprep.subr.bf16.mxu0 0
        %4202 = vmatpush2.bf16.msra.mxu0 0
        %4203 = vmatprep.subr.bf16.mxu0 0
        %4204 = vmatpush2.bf16.msra.mxu0 0
        %4205 = vmatprep.subr.bf16.mxu0 0
        %4206 = vmatpush2.bf16.msra.mxu0 0
        %4207 = vmatprep.subr.bf16.mxu0 0
        %4208 = vmatpush2.bf16.msra.mxu0 0
        %4209 = vmatprep.subr.bf16.mxu0 0
        %4210 = vmatpush2.bf16.msra.mxu0 0
        %4211 = vmatprep.subr.bf16.mxu0 0
        %4212 = vmatpush2.bf16.msra.mxu0 0
        %4213 = vmatprep.subr.bf16.mxu0 0
        %4214 = vmatpush2.bf16.msra.mxu0 0
        %4215 = vmatprep.subr.bf16.mxu0 0
        %4216 = vmatpush2.bf16.msra.mxu0 0
        %4217 = vmatprep.mubr.bf16.mxu0 0
        %4218 = vmatmul.mubr.bf16.gmra.mxu0 %v4180
        %v4219 = vpop.f32.mrf.mxu0
        %v4220 = vadd.f32 0.0, %v4219
        %v4221 = vpop.f32.mrf.mxu0
        %v4222 = vpop.f32.mrf.mxu0
        %v4223 = vpop.f32.mrf.mxu0
        %4224 = vdwg.mxu0
        %4225 = vrot.lane.b32.xlu0 %v1188, 64
        %v4226 = vpop.permute.xlu0 %4225
        %v4228 = vsel %vm1202, %v3205, 0
        %v4231 = vsel %vm3221, %v4226, 0
        %4233 = vmatprep.subr.bf16.mxu0 0
        %4234 = vmatpush1.bf16.msra.mxu0 0
        %4235 = vmatprep.subr.bf16.mxu0 0
        %4236 = vmatpush1.bf16.msra.mxu0 0
        %4237 = vmatprep.subr.bf16.mxu0 0
        %4238 = vmatpush1.bf16.msra.mxu0 0
        %4239 = vmatprep.subr.bf16.mxu0 0
        %4240 = vmatpush1.bf16.msra.mxu0 0
        %4241 = vmatprep.subr.bf16.mxu0 0
        %4242 = vmatpush1.bf16.msra.mxu0 0
        %4243 = vmatprep.subr.bf16.mxu0 0
        %4244 = vmatpush1.bf16.msra.mxu0 0
        %4245 = vmatprep.subr.bf16.mxu0 0
        %4246 = vmatpush1.bf16.msra.mxu0 0
        %4247 = vmatprep.subr.bf16.mxu0 0
        %4248 = vmatpush1.bf16.msra.mxu0 %v4231
        %4249 = vmatprep.subr.bf16.mxu0 0
        %4250 = vmatpush2.bf16.msra.mxu0 0
        %4251 = vmatprep.subr.bf16.mxu0 0
        %4252 = vmatpush2.bf16.msra.mxu0 0
        %4253 = vmatprep.subr.bf16.mxu0 0
        %4254 = vmatpush2.bf16.msra.mxu0 0
        %4255 = vmatprep.subr.bf16.mxu0 0
        %4256 = vmatpush2.bf16.msra.mxu0 0
        %4257 = vmatprep.subr.bf16.mxu0 0
        %4258 = vmatpush2.bf16.msra.mxu0 0
        %4259 = vmatprep.subr.bf16.mxu0 0
        %4260 = vmatpush2.bf16.msra.mxu0 0
        %4261 = vmatprep.subr.bf16.mxu0 0
        %4262 = vmatpush2.bf16.msra.mxu0 0
        %4263 = vmatprep.subr.bf16.mxu0 0
        %4264 = vmatpush2.bf16.msra.mxu0 0
        %4265 = vmatprep.mubr.bf16.mxu0 0
        %4266 = vmatmul.mubr.bf16.gmra.mxu0 %v4228
        %v4267 = vpop.f32.mrf.mxu0
        %v4268 = vadd.f32 0.0, %v4267
        %v4269 = vpop.f32.mrf.mxu0
        %v4270 = vpop.f32.mrf.mxu0
        %v4271 = vpop.f32.mrf.mxu0
        %4272 = vdwg.mxu0
        %4273 = vrot.lane.b32.xlu0 %v1189, 64
        %v4274 = vpop.permute.xlu0 %4273
        %v4276 = vsel %vm1202, %v3206, 0
        %v4279 = vsel %vm3221, %v4274, 0
        %4281 = vmatprep.subr.bf16.mxu0 0
        %4282 = vmatpush1.bf16.msra.mxu0 0
        %4283 = vmatprep.subr.bf16.mxu0 0
        %4284 = vmatpush1.bf16.msra.mxu0 0
        %4285 = vmatprep.subr.bf16.mxu0 0
        %4286 = vmatpush1.bf16.msra.mxu0 0
        %4287 = vmatprep.subr.bf16.mxu0 0
        %4288 = vmatpush1.bf16.msra.mxu0 0
        %4289 = vmatprep.subr.bf16.mxu0 0
        %4290 = vmatpush1.bf16.msra.mxu0 0
        %4291 = vmatprep.subr.bf16.mxu0 0
        %4292 = vmatpush1.bf16.msra.mxu0 0
        %4293 = vmatprep.subr.bf16.mxu0 0
        %4294 = vmatpush1.bf16.msra.mxu0 0
        %4295 = vmatprep.subr.bf16.mxu0 0
        %4296 = vmatpush1.bf16.msra.mxu0 %v4279
        %4297 = vmatprep.subr.bf16.mxu0 0
        %4298 = vmatpush2.bf16.msra.mxu0 0
        %4299 = vmatprep.subr.bf16.mxu0 0
        %4300 = vmatpush2.bf16.msra.mxu0 0
        %4301 = vmatprep.subr.bf16.mxu0 0
        %4302 = vmatpush2.bf16.msra.mxu0 0
        %4303 = vmatprep.subr.bf16.mxu0 0
        %4304 = vmatpush2.bf16.msra.mxu0 0
        %4305 = vmatprep.subr.bf16.mxu0 0
        %4306 = vmatpush2.bf16.msra.mxu0 0
        %4307 = vmatprep.subr.bf16.mxu0 0
        %4308 = vmatpush2.bf16.msra.mxu0 0
        %4309 = vmatprep.subr.bf16.mxu0 0
        %4310 = vmatpush2.bf16.msra.mxu0 0
        %4311 = vmatprep.subr.bf16.mxu0 0
        %4312 = vmatpush2.bf16.msra.mxu0 0
        %4313 = vmatprep.mubr.bf16.mxu0 0
        %4314 = vmatmul.mubr.bf16.gmra.mxu0 %v4276
        %v4315 = vpop.f32.mrf.mxu0
        %v4316 = vadd.f32 0.0, %v4315
        %v4317 = vpop.f32.mrf.mxu0
        %v4318 = vpop.f32.mrf.mxu0
        %v4319 = vpop.f32.mrf.mxu0
        %4320 = vdwg.mxu0
        %4321 = vrot.lane.b32.xlu0 %v1190, 64
        %v4322 = vpop.permute.xlu0 %4321
        %v4324 = vsel %vm1202, %v3207, 0
        %v4327 = vsel %vm3221, %v4322, 0
        %4329 = vmatprep.subr.bf16.mxu0 0
        %4330 = vmatpush1.bf16.msra.mxu0 0
        %4331 = vmatprep.subr.bf16.mxu0 0
        %4332 = vmatpush1.bf16.msra.mxu0 0
        %4333 = vmatprep.subr.bf16.mxu0 0
        %4334 = vmatpush1.bf16.msra.mxu0 0
        %4335 = vmatprep.subr.bf16.mxu0 0
        %4336 = vmatpush1.bf16.msra.mxu0 0
        %4337 = vmatprep.subr.bf16.mxu0 0
        %4338 = vmatpush1.bf16.msra.mxu0 0
        %4339 = vmatprep.subr.bf16.mxu0 0
        %4340 = vmatpush1.bf16.msra.mxu0 0
        %4341 = vmatprep.subr.bf16.mxu0 0
        %4342 = vmatpush1.bf16.msra.mxu0 0
        %4343 = vmatprep.subr.bf16.mxu0 0
        %4344 = vmatpush1.bf16.msra.mxu0 %v4327
        %4345 = vmatprep.subr.bf16.mxu0 0
        %4346 = vmatpush2.bf16.msra.mxu0 0
        %4347 = vmatprep.subr.bf16.mxu0 0
        %4348 = vmatpush2.bf16.msra.mxu0 0
        %4349 = vmatprep.subr.bf16.mxu0 0
        %4350 = vmatpush2.bf16.msra.mxu0 0
        %4351 = vmatprep.subr.bf16.mxu0 0
        %4352 = vmatpush2.bf16.msra.mxu0 0
        %4353 = vmatprep.subr.bf16.mxu0 0
        %4354 = vmatpush2.bf16.msra.mxu0 0
        %4355 = vmatprep.subr.bf16.mxu0 0
        %4356 = vmatpush2.bf16.msra.mxu0 0
        %4357 = vmatprep.subr.bf16.mxu0 0
        %4358 = vmatpush2.bf16.msra.mxu0 0
        %4359 = vmatprep.subr.bf16.mxu0 0
        %4360 = vmatpush2.bf16.msra.mxu0 0
        %4361 = vmatprep.mubr.bf16.mxu0 0
        %4362 = vmatmul.mubr.bf16.gmra.mxu0 %v4324
        %v4363 = vpop.f32.mrf.mxu0
        %v4364 = vadd.f32 0.0, %v4363
        %v4365 = vpop.f32.mrf.mxu0
        %v4366 = vpop.f32.mrf.mxu0
        %v4367 = vpop.f32.mrf.mxu0
        %4368 = vdwg.mxu0
        %4369 = vrot.lane.b32.xlu0 %v1191, 64
        %v4370 = vpop.permute.xlu0 %4369
        %v4372 = vsel %vm1202, %v3208, 0
        %v4375 = vsel %vm3221, %v4370, 0
        %4377 = vmatprep.subr.bf16.mxu0 0
        %4378 = vmatpush1.bf16.msra.mxu0 0
        %4379 = vmatprep.subr.bf16.mxu0 0
        %4380 = vmatpush1.bf16.msra.mxu0 0
        %4381 = vmatprep.subr.bf16.mxu0 0
        %4382 = vmatpush1.bf16.msra.mxu0 0
        %4383 = vmatprep.subr.bf16.mxu0 0
        %4384 = vmatpush1.bf16.msra.mxu0 0
        %4385 = vmatprep.subr.bf16.mxu0 0
        %4386 = vmatpush1.bf16.msra.mxu0 0
        %4387 = vmatprep.subr.bf16.mxu0 0
        %4388 = vmatpush1.bf16.msra.mxu0 0
        %4389 = vmatprep.subr.bf16.mxu0 0
        %4390 = vmatpush1.bf16.msra.mxu0 0
        %4391 = vmatprep.subr.bf16.mxu0 0
        %4392 = vmatpush1.bf16.msra.mxu0 %v4375
        %4393 = vmatprep.subr.bf16.mxu0 0
        %4394 = vmatpush2.bf16.msra.mxu0 0
        %4395 = vmatprep.subr.bf16.mxu0 0
        %4396 = vmatpush2.bf16.msra.mxu0 0
        %4397 = vmatprep.subr.bf16.mxu0 0
        %4398 = vmatpush2.bf16.msra.mxu0 0
        %4399 = vmatprep.subr.bf16.mxu0 0
        %4400 = vmatpush2.bf16.msra.mxu0 0
        %4401 = vmatprep.subr.bf16.mxu0 0
        %4402 = vmatpush2.bf16.msra.mxu0 0
        %4403 = vmatprep.subr.bf16.mxu0 0
        %4404 = vmatpush2.bf16.msra.mxu0 0
        %4405 = vmatprep.subr.bf16.mxu0 0
        %4406 = vmatpush2.bf16.msra.mxu0 0
        %4407 = vmatprep.subr.bf16.mxu0 0
        %4408 = vmatpush2.bf16.msra.mxu0 0
        %4409 = vmatprep.mubr.bf16.mxu0 0
        %4410 = vmatmul.mubr.bf16.gmra.mxu0 %v4372
        %v4411 = vpop.f32.mrf.mxu0
        %v4412 = vadd.f32 0.0, %v4411
        %v4413 = vpop.f32.mrf.mxu0
        %v4414 = vpop.f32.mrf.mxu0
        %v4415 = vpop.f32.mrf.mxu0
        %4416 = vdwg.mxu0
        %4417 = vrot.lane.b32.xlu0 %v1192, 64
        %v4418 = vpop.permute.xlu0 %4417
        %v4420 = vsel %vm1202, %v3209, 0
        %v4423 = vsel %vm3221, %v4418, 0
        %4425 = vmatprep.subr.bf16.mxu0 0
        %4426 = vmatpush1.bf16.msra.mxu0 0
        %4427 = vmatprep.subr.bf16.mxu0 0
        %4428 = vmatpush1.bf16.msra.mxu0 0
        %4429 = vmatprep.subr.bf16.mxu0 0
        %4430 = vmatpush1.bf16.msra.mxu0 0
        %4431 = vmatprep.subr.bf16.mxu0 0
        %4432 = vmatpush1.bf16.msra.mxu0 0
        %4433 = vmatprep.subr.bf16.mxu0 0
        %4434 = vmatpush1.bf16.msra.mxu0 0
        %4435 = vmatprep.subr.bf16.mxu0 0
        %4436 = vmatpush1.bf16.msra.mxu0 0
        %4437 = vmatprep.subr.bf16.mxu0 0
        %4438 = vmatpush1.bf16.msra.mxu0 0
        %4439 = vmatprep.subr.bf16.mxu0 0
        %4440 = vmatpush1.bf16.msra.mxu0 %v4423
        %4441 = vmatprep.subr.bf16.mxu0 0
        %4442 = vmatpush2.bf16.msra.mxu0 0
        %4443 = vmatprep.subr.bf16.mxu0 0
        %4444 = vmatpush2.bf16.msra.mxu0 0
        %4445 = vmatprep.subr.bf16.mxu0 0
        %4446 = vmatpush2.bf16.msra.mxu0 0
        %4447 = vmatprep.subr.bf16.mxu0 0
        %4448 = vmatpush2.bf16.msra.mxu0 0
        %4449 = vmatprep.subr.bf16.mxu0 0
        %4450 = vmatpush2.bf16.msra.mxu0 0
        %4451 = vmatprep.subr.bf16.mxu0 0
        %4452 = vmatpush2.bf16.msra.mxu0 0
        %4453 = vmatprep.subr.bf16.mxu0 0
        %4454 = vmatpush2.bf16.msra.mxu0 0
        %4455 = vmatprep.subr.bf16.mxu0 0
        %4456 = vmatpush2.bf16.msra.mxu0 0
        %4457 = vmatprep.mubr.bf16.mxu0 0
        %4458 = vmatmul.mubr.bf16.gmra.mxu0 %v4420
        %v4459 = vpop.f32.mrf.mxu0
        %v4460 = vadd.f32 0.0, %v4459
        %v4461 = vpop.f32.mrf.mxu0
        %v4462 = vpop.f32.mrf.mxu0
        %v4463 = vpop.f32.mrf.mxu0
        %4464 = vdwg.mxu0
        %4465 = vrot.lane.b32.xlu0 %v1193, 64
        %v4466 = vpop.permute.xlu0 %4465
        %v4468 = vsel %vm1202, %v3210, 0
        %v4471 = vsel %vm3221, %v4466, 0
        %4473 = vmatprep.subr.bf16.mxu0 0
        %4474 = vmatpush1.bf16.msra.mxu0 0
        %4475 = vmatprep.subr.bf16.mxu0 0
        %4476 = vmatpush1.bf16.msra.mxu0 0
        %4477 = vmatprep.subr.bf16.mxu0 0
        %4478 = vmatpush1.bf16.msra.mxu0 0
        %4479 = vmatprep.subr.bf16.mxu0 0
        %4480 = vmatpush1.bf16.msra.mxu0 0
        %4481 = vmatprep.subr.bf16.mxu0 0
        %4482 = vmatpush1.bf16.msra.mxu0 0
        %4483 = vmatprep.subr.bf16.mxu0 0
        %4484 = vmatpush1.bf16.msra.mxu0 0
        %4485 = vmatprep.subr.bf16.mxu0 0
        %4486 = vmatpush1.bf16.msra.mxu0 0
        %4487 = vmatprep.subr.bf16.mxu0 0
        %4488 = vmatpush1.bf16.msra.mxu0 %v4471
        %4489 = vmatprep.subr.bf16.mxu0 0
        %4490 = vmatpush2.bf16.msra.mxu0 0
        %4491 = vmatprep.subr.bf16.mxu0 0
        %4492 = vmatpush2.bf16.msra.mxu0 0
        %4493 = vmatprep.subr.bf16.mxu0 0
        %4494 = vmatpush2.bf16.msra.mxu0 0
        %4495 = vmatprep.subr.bf16.mxu0 0
        %4496 = vmatpush2.bf16.msra.mxu0 0
        %4497 = vmatprep.subr.bf16.mxu0 0
        %4498 = vmatpush2.bf16.msra.mxu0 0
        %4499 = vmatprep.subr.bf16.mxu0 0
        %4500 = vmatpush2.bf16.msra.mxu0 0
        %4501 = vmatprep.subr.bf16.mxu0 0
        %4502 = vmatpush2.bf16.msra.mxu0 0
        %4503 = vmatprep.subr.bf16.mxu0 0
        %4504 = vmatpush2.bf16.msra.mxu0 0
        %4505 = vmatprep.mubr.bf16.mxu0 0
        %4506 = vmatmul.mubr.bf16.gmra.mxu0 %v4468
        %v4507 = vpop.f32.mrf.mxu0
        %v4508 = vadd.f32 0.0, %v4507
        %v4509 = vpop.f32.mrf.mxu0
        %v4510 = vpop.f32.mrf.mxu0
        %v4511 = vpop.f32.mrf.mxu0
        %4512 = vdwg.mxu0
        %4513 = vrot.lane.b32.xlu0 %v1194, 64
        %v4514 = vpop.permute.xlu0 %4513
        %v4516 = vsel %vm1202, %v3211, 0
        %v4519 = vsel %vm3221, %v4514, 0
        %4521 = vmatprep.subr.bf16.mxu0 0
        %4522 = vmatpush1.bf16.msra.mxu0 0
        %4523 = vmatprep.subr.bf16.mxu0 0
        %4524 = vmatpush1.bf16.msra.mxu0 0
        %4525 = vmatprep.subr.bf16.mxu0 0
        %4526 = vmatpush1.bf16.msra.mxu0 0
        %4527 = vmatprep.subr.bf16.mxu0 0
        %4528 = vmatpush1.bf16.msra.mxu0 0
        %4529 = vmatprep.subr.bf16.mxu0 0
        %4530 = vmatpush1.bf16.msra.mxu0 0
        %4531 = vmatprep.subr.bf16.mxu0 0
        %4532 = vmatpush1.bf16.msra.mxu0 0
        %4533 = vmatprep.subr.bf16.mxu0 0
        %4534 = vmatpush1.bf16.msra.mxu0 0
        %4535 = vmatprep.subr.bf16.mxu0 0
        %4536 = vmatpush1.bf16.msra.mxu0 %v4519
        %4537 = vmatprep.subr.bf16.mxu0 0
        %4538 = vmatpush2.bf16.msra.mxu0 0
        %4539 = vmatprep.subr.bf16.mxu0 0
        %4540 = vmatpush2.bf16.msra.mxu0 0
        %4541 = vmatprep.subr.bf16.mxu0 0
        %4542 = vmatpush2.bf16.msra.mxu0 0
        %4543 = vmatprep.subr.bf16.mxu0 0
        %4544 = vmatpush2.bf16.msra.mxu0 0
        %4545 = vmatprep.subr.bf16.mxu0 0
        %4546 = vmatpush2.bf16.msra.mxu0 0
        %4547 = vmatprep.subr.bf16.mxu0 0
        %4548 = vmatpush2.bf16.msra.mxu0 0
        %4549 = vmatprep.subr.bf16.mxu0 0
        %4550 = vmatpush2.bf16.msra.mxu0 0
        %4551 = vmatprep.subr.bf16.mxu0 0
        %4552 = vmatpush2.bf16.msra.mxu0 0
        %4553 = vmatprep.mubr.bf16.mxu0 0
        %4554 = vmatmul.mubr.bf16.gmra.mxu0 %v4516
        %v4555 = vpop.f32.mrf.mxu0
        %v4556 = vadd.f32 0.0, %v4555
        %v4557 = vpop.f32.mrf.mxu0
        %v4558 = vpop.f32.mrf.mxu0
        %v4559 = vpop.f32.mrf.mxu0
        %4560 = vdwg.mxu0
        %4561 = vrot.lane.b32.xlu0 %v1195, 64
        %v4562 = vpop.permute.xlu0 %4561
        %v4564 = vsel %vm1202, %v3212, 0
        %v4567 = vsel %vm3221, %v4562, 0
        %4569 = vmatprep.subr.bf16.mxu0 0
        %4570 = vmatpush1.bf16.msra.mxu0 0
        %4571 = vmatprep.subr.bf16.mxu0 0
        %4572 = vmatpush1.bf16.msra.mxu0 0
        %4573 = vmatprep.subr.bf16.mxu0 0
        %4574 = vmatpush1.bf16.msra.mxu0 0
        %4575 = vmatprep.subr.bf16.mxu0 0
        %4576 = vmatpush1.bf16.msra.mxu0 0
        %4577 = vmatprep.subr.bf16.mxu0 0
        %4578 = vmatpush1.bf16.msra.mxu0 0
        %4579 = vmatprep.subr.bf16.mxu0 0
        %4580 = vmatpush1.bf16.msra.mxu0 0
        %4581 = vmatprep.subr.bf16.mxu0 0
        %4582 = vmatpush1.bf16.msra.mxu0 0
        %4583 = vmatprep.subr.bf16.mxu0 0
        %4584 = vmatpush1.bf16.msra.mxu0 %v4567
        %4585 = vmatprep.subr.bf16.mxu0 0
        %4586 = vmatpush2.bf16.msra.mxu0 0
        %4587 = vmatprep.subr.bf16.mxu0 0
        %4588 = vmatpush2.bf16.msra.mxu0 0
        %4589 = vmatprep.subr.bf16.mxu0 0
        %4590 = vmatpush2.bf16.msra.mxu0 0
        %4591 = vmatprep.subr.bf16.mxu0 0
        %4592 = vmatpush2.bf16.msra.mxu0 0
        %4593 = vmatprep.subr.bf16.mxu0 0
        %4594 = vmatpush2.bf16.msra.mxu0 0
        %4595 = vmatprep.subr.bf16.mxu0 0
        %4596 = vmatpush2.bf16.msra.mxu0 0
        %4597 = vmatprep.subr.bf16.mxu0 0
        %4598 = vmatpush2.bf16.msra.mxu0 0
        %4599 = vmatprep.subr.bf16.mxu0 0
        %4600 = vmatpush2.bf16.msra.mxu0 0
        %4601 = vmatprep.mubr.bf16.mxu0 0
        %4602 = vmatmul.mubr.bf16.gmra.mxu0 %v4564
        %v4603 = vpop.f32.mrf.mxu0
        %v4604 = vadd.f32 0.0, %v4603
        %v4605 = vpop.f32.mrf.mxu0
        %v4606 = vpop.f32.mrf.mxu0
        %v4607 = vpop.f32.mrf.mxu0
        %4608 = vdwg.mxu0
        %4609 = vrot.lane.b32.xlu0 %v1196, 64
        %v4610 = vpop.permute.xlu0 %4609
        %v4612 = vsel %vm1202, %v3213, 0
        %v4615 = vsel %vm3221, %v4610, 0
        %4617 = vmatprep.subr.bf16.mxu0 0
        %4618 = vmatpush1.bf16.msra.mxu0 0
        %4619 = vmatprep.subr.bf16.mxu0 0
        %4620 = vmatpush1.bf16.msra.mxu0 0
        %4621 = vmatprep.subr.bf16.mxu0 0
        %4622 = vmatpush1.bf16.msra.mxu0 0
        %4623 = vmatprep.subr.bf16.mxu0 0
        %4624 = vmatpush1.bf16.msra.mxu0 0
        %4625 = vmatprep.subr.bf16.mxu0 0
        %4626 = vmatpush1.bf16.msra.mxu0 0
        %4627 = vmatprep.subr.bf16.mxu0 0
        %4628 = vmatpush1.bf16.msra.mxu0 0
        %4629 = vmatprep.subr.bf16.mxu0 0
        %4630 = vmatpush1.bf16.msra.mxu0 0
        %4631 = vmatprep.subr.bf16.mxu0 0
        %4632 = vmatpush1.bf16.msra.mxu0 %v4615
        %4633 = vmatprep.subr.bf16.mxu0 0
        %4634 = vmatpush2.bf16.msra.mxu0 0
        %4635 = vmatprep.subr.bf16.mxu0 0
        %4636 = vmatpush2.bf16.msra.mxu0 0
        %4637 = vmatprep.subr.bf16.mxu0 0
        %4638 = vmatpush2.bf16.msra.mxu0 0
        %4639 = vmatprep.subr.bf16.mxu0 0
        %4640 = vmatpush2.bf16.msra.mxu0 0
        %4641 = vmatprep.subr.bf16.mxu0 0
        %4642 = vmatpush2.bf16.msra.mxu0 0
        %4643 = vmatprep.subr.bf16.mxu0 0
        %4644 = vmatpush2.bf16.msra.mxu0 0
        %4645 = vmatprep.subr.bf16.mxu0 0
        %4646 = vmatpush2.bf16.msra.mxu0 0
        %4647 = vmatprep.subr.bf16.mxu0 0
        %4648 = vmatpush2.bf16.msra.mxu0 0
        %4649 = vmatprep.mubr.bf16.mxu0 0
        %4650 = vmatmul.mubr.bf16.gmra.mxu0 %v4612
        %v4651 = vpop.f32.mrf.mxu0
        %v4652 = vadd.f32 0.0, %v4651
        %v4653 = vpop.f32.mrf.mxu0
        %v4654 = vpop.f32.mrf.mxu0
        %v4655 = vpop.f32.mrf.mxu0
        %4656 = vdwg.mxu0
        %4657 = vrot.lane.b32.xlu0 %v1197, 64
        %v4658 = vpop.permute.xlu0 %4657
        %v4660 = vsel %vm1202, %v3214, 0
        %v4663 = vsel %vm3221, %v4658, 0
        %4665 = vmatprep.subr.bf16.mxu0 0
        %4666 = vmatpush1.bf16.msra.mxu0 0
        %4667 = vmatprep.subr.bf16.mxu0 0
        %4668 = vmatpush1.bf16.msra.mxu0 0
        %4669 = vmatprep.subr.bf16.mxu0 0
        %4670 = vmatpush1.bf16.msra.mxu0 0
        %4671 = vmatprep.subr.bf16.mxu0 0
        %4672 = vmatpush1.bf16.msra.mxu0 0
        %4673 = vmatprep.subr.bf16.mxu0 0
        %4674 = vmatpush1.bf16.msra.mxu0 0
        %4675 = vmatprep.subr.bf16.mxu0 0
        %4676 = vmatpush1.bf16.msra.mxu0 0
        %4677 = vmatprep.subr.bf16.mxu0 0
        %4678 = vmatpush1.bf16.msra.mxu0 0
        %4679 = vmatprep.subr.bf16.mxu0 0
        %4680 = vmatpush1.bf16.msra.mxu0 %v4663
        %4681 = vmatprep.subr.bf16.mxu0 0
        %4682 = vmatpush2.bf16.msra.mxu0 0
        %4683 = vmatprep.subr.bf16.mxu0 0
        %4684 = vmatpush2.bf16.msra.mxu0 0
        %4685 = vmatprep.subr.bf16.mxu0 0
        %4686 = vmatpush2.bf16.msra.mxu0 0
        %4687 = vmatprep.subr.bf16.mxu0 0
        %4688 = vmatpush2.bf16.msra.mxu0 0
        %4689 = vmatprep.subr.bf16.mxu0 0
        %4690 = vmatpush2.bf16.msra.mxu0 0
        %4691 = vmatprep.subr.bf16.mxu0 0
        %4692 = vmatpush2.bf16.msra.mxu0 0
        %4693 = vmatprep.subr.bf16.mxu0 0
        %4694 = vmatpush2.bf16.msra.mxu0 0
        %4695 = vmatprep.subr.bf16.mxu0 0
        %4696 = vmatpush2.bf16.msra.mxu0 0
        %4697 = vmatprep.mubr.bf16.mxu0 0
        %4698 = vmatmul.mubr.bf16.gmra.mxu0 %v4660
        %v4699 = vpop.f32.mrf.mxu0
        %v4700 = vadd.f32 0.0, %v4699
        %v4701 = vpop.f32.mrf.mxu0
        %v4702 = vpop.f32.mrf.mxu0
        %v4703 = vpop.f32.mrf.mxu0
        %4704 = vdwg.mxu0
        %4705 = vrot.lane.b32.xlu0 %v1198, 64
        %v4706 = vpop.permute.xlu0 %4705
        %v4708 = vsel %vm1202, %v3215, 0
        %v4711 = vsel %vm3221, %v4706, 0
        %4713 = vmatprep.subr.bf16.mxu0 0
        %4714 = vmatpush1.bf16.msra.mxu0 0
        %4715 = vmatprep.subr.bf16.mxu0 0
        %4716 = vmatpush1.bf16.msra.mxu0 0
        %4717 = vmatprep.subr.bf16.mxu0 0
        %4718 = vmatpush1.bf16.msra.mxu0 0
        %4719 = vmatprep.subr.bf16.mxu0 0
        %4720 = vmatpush1.bf16.msra.mxu0 0
        %4721 = vmatprep.subr.bf16.mxu0 0
        %4722 = vmatpush1.bf16.msra.mxu0 0
        %4723 = vmatprep.subr.bf16.mxu0 0
        %4724 = vmatpush1.bf16.msra.mxu0 0
        %4725 = vmatprep.subr.bf16.mxu0 0
        %4726 = vmatpush1.bf16.msra.mxu0 0
        %4727 = vmatprep.subr.bf16.mxu0 0
        %4728 = vmatpush1.bf16.msra.mxu0 %v4711
        %4729 = vmatprep.subr.bf16.mxu0 0
        %4730 = vmatpush2.bf16.msra.mxu0 0
        %4731 = vmatprep.subr.bf16.mxu0 0
        %4732 = vmatpush2.bf16.msra.mxu0 0
        %4733 = vmatprep.subr.bf16.mxu0 0
        %4734 = vmatpush2.bf16.msra.mxu0 0
        %4735 = vmatprep.subr.bf16.mxu0 0
        %4736 = vmatpush2.bf16.msra.mxu0 0
        %4737 = vmatprep.subr.bf16.mxu0 0
        %4738 = vmatpush2.bf16.msra.mxu0 0
        %4739 = vmatprep.subr.bf16.mxu0 0
        %4740 = vmatpush2.bf16.msra.mxu0 0
        %4741 = vmatprep.subr.bf16.mxu0 0
        %4742 = vmatpush2.bf16.msra.mxu0 0
        %4743 = vmatprep.subr.bf16.mxu0 0
        %4744 = vmatpush2.bf16.msra.mxu0 0
        %4745 = vmatprep.mubr.bf16.mxu0 0
        %4746 = vmatmul.mubr.bf16.gmra.mxu0 %v4708
        %v4747 = vpop.f32.mrf.mxu0
        %v4748 = vadd.f32 0.0, %v4747
        %v4749 = vpop.f32.mrf.mxu0
        %v4750 = vpop.f32.mrf.mxu0
        %v4751 = vpop.f32.mrf.mxu0
        %4752 = vdwg.mxu0
        %4761 = vrot.lane.b32.xlu0 %v3644, 8
        %v4762 = vpop.permute.xlu0 %4761
        %4763 = vrot.lane.b32.xlu0 %v3692, 8
        %v4764 = vpop.permute.xlu0 %4763
        %4765 = vrot.lane.b32.xlu0 %v3740, 8
        %v4766 = vpop.permute.xlu0 %4765
        %4767 = vrot.lane.b32.xlu0 %v3788, 8
        %v4768 = vpop.permute.xlu0 %4767
        %4769 = vrot.lane.b32.xlu0 %v3836, 8
        %v4770 = vpop.permute.xlu0 %4769
        %4771 = vrot.lane.b32.xlu0 %v3884, 8
        %v4772 = vpop.permute.xlu0 %4771
        %4773 = vrot.lane.b32.xlu0 %v3932, 8
        %v4774 = vpop.permute.xlu0 %4773
        %4775 = vrot.lane.b32.xlu0 %v3980, 8
        %v4776 = vpop.permute.xlu0 %4775
        %4793 = vrot.lane.b32.xlu0 %v4028, 16
        %v4794 = vpop.permute.xlu0 %4793
        %4795 = vrot.lane.b32.xlu0 %v4076, 16
        %v4796 = vpop.permute.xlu0 %4795
        %4797 = vrot.lane.b32.xlu0 %v4124, 16
        %v4798 = vpop.permute.xlu0 %4797
        %4799 = vrot.lane.b32.xlu0 %v4172, 16
        %v4800 = vpop.permute.xlu0 %4799
        %4801 = vrot.lane.b32.xlu0 %v4220, 16
        %v4802 = vpop.permute.xlu0 %4801
        %4803 = vrot.lane.b32.xlu0 %v4268, 16
        %v4804 = vpop.permute.xlu0 %4803
        %4805 = vrot.lane.b32.xlu0 %v4316, 16
        %v4806 = vpop.permute.xlu0 %4805
        %4807 = vrot.lane.b32.xlu0 %v4364, 16
        %v4808 = vpop.permute.xlu0 %4807
        %4825 = vrot.lane.b32.xlu0 %v4412, 24
        %v4826 = vpop.permute.xlu0 %4825
        %4827 = vrot.lane.b32.xlu0 %v4460, 24
        %v4828 = vpop.permute.xlu0 %4827
        %4829 = vrot.lane.b32.xlu0 %v4508, 24
        %v4830 = vpop.permute.xlu0 %4829
        %4831 = vrot.lane.b32.xlu0 %v4556, 24
        %v4832 = vpop.permute.xlu0 %4831
        %4833 = vrot.lane.b32.xlu0 %v4604, 24
        %v4834 = vpop.permute.xlu0 %4833
        %4835 = vrot.lane.b32.xlu0 %v4652, 24
        %v4836 = vpop.permute.xlu0 %4835
        %4837 = vrot.lane.b32.xlu0 %v4700, 24
        %v4838 = vpop.permute.xlu0 %4837
        %4839 = vrot.lane.b32.xlu0 %v4748, 24
        %v4840 = vpop.permute.xlu0 %4839
        %v4849 = vsel %vm1202, %v3260, %v4762
        %v4850 = vsel %vm1202, %v3308, %v4764
        %v4851 = vsel %vm1202, %v3356, %v4766
        %v4852 = vsel %vm1202, %v3404, %v4768
        %v4853 = vsel %vm1202, %v3452, %v4770
        %v4854 = vsel %vm1202, %v3500, %v4772
        %v4855 = vsel %vm1202, %v3548, %v4774
        %v4856 = vsel %vm1202, %v3596, %v4776
        %vm4857 = vcmask 130048
        %v4858 = vsel %vm4857, %v4849, %v4794
        %v4859 = vsel %vm4857, %v4850, %v4796
        %v4860 = vsel %vm4857, %v4851, %v4798
        %v4861 = vsel %vm4857, %v4852, %v4800
        %v4862 = vsel %vm4857, %v4853, %v4802
        %v4863 = vsel %vm4857, %v4854, %v4804
        %v4864 = vsel %vm4857, %v4855, %v4806
        %v4865 = vsel %vm4857, %v4856, %v4808
        %vm4866 = vcmask 195584
        %v4867 = vsel %vm4866, %v4858, %v4826
        %v4868 = vsel %vm4866, %v4859, %v4828
        %v4869 = vsel %vm4866, %v4860, %v4830
        %v4870 = vsel %vm4866, %v4861, %v4832
        %v4871 = vsel %vm4866, %v4862, %v4834
        %v4872 = vsel %vm4866, %v4863, %v4836
        %v4873 = vsel %vm4866, %v4864, %v4838
        %v4874 = vsel %vm4866, %v4865, %v4840
        %v4875 = vpack.c.bf16 %v4868, %v4867
        %v4876 = vpack.c.bf16 %v4870, %v4869
        %v4877 = vpack.c.bf16 %v4872, %v4871
        %v4878 = vpack.c.bf16 %v4874, %v4873
        %v4879 = vld [vmem:[%s799] sm:$0xf]
        %v4880 = vld [vmem:[%s799 + $0x4] sm:$0xf]
        %v4881 = vld [vmem:[%s799 + $0x8] sm:$0xf]
        %v4882 = vld [vmem:[%s799 + $0xc] sm:$0xf]
        %v4883 = vld [vmem:[%s676] sm:$0x1]
        %v4885 = vlaneseq
        %v4886 = vshrl.u32 %v4885, 7
        %v4887 = vsub.s32 0, %v4886
        %v4888 = vrot.slane %v4883, %v4887
        %v4894 = vunpack.c.l.b16 %v4879
        %v4895 = vunpack.c.l.b16 %v4880
        %v4896 = vunpack.c.l.b16 %v4881
        %v4897 = vunpack.c.l.b16 %v4882
        %v4898 = vpack.c.b16 %v4895, %v4894
        %v4899 = vpack.c.b16 %v4897, %v4896
        %v4903 = vsel %vm849, %v4875, 0
        %v4906 = vsel %vm849, %v4876, 0
        %v4909 = vsel %vm849, %v4877, 0
        %v4912 = vsel %vm849, %v4878, 0
        %4914 = vmatprep.subr.bf16.mxu0 0
        %4915 = vmatpush1.bf16.msra.mxu0 0
        %4916 = vmatprep.subr.bf16.mxu0 0
        %4917 = vmatpush1.bf16.msra.mxu0 0
        %4918 = vmatprep.subr.bf16.mxu0 0
        %4919 = vmatpush1.bf16.msra.mxu0 0
        %4920 = vmatprep.subr.bf16.mxu0 0
        %4921 = vmatpush1.bf16.msra.mxu0 0
        %4922 = vmatprep.subr.bf16.mxu0 0
        %4923 = vmatpush1.bf16.msra.mxu0 0
        %4924 = vmatprep.subr.bf16.mxu0 0
        %4925 = vmatpush1.bf16.msra.mxu0 0
        %4926 = vmatprep.subr.bf16.mxu0 0
        %4927 = vmatpush1.bf16.msra.mxu0 %v4899
        %4928 = vmatprep.subr.bf16.mxu0 0
        %4929 = vmatpush1.bf16.msra.mxu0 %v4898
        %4930 = vmatprep.subr.bf16.mxu0 0
        %4931 = vmatpush2.bf16.msra.mxu0 0
        %4932 = vmatprep.subr.bf16.mxu0 0
        %4933 = vmatpush2.bf16.msra.mxu0 0
        %4934 = vmatprep.subr.bf16.mxu0 0
        %4935 = vmatpush2.bf16.msra.mxu0 0
        %4936 = vmatprep.subr.bf16.mxu0 0
        %4937 = vmatpush2.bf16.msra.mxu0 0
        %4938 = vmatprep.subr.bf16.mxu0 0
        %4939 = vmatpush2.bf16.msra.mxu0 0
        %4940 = vmatprep.subr.bf16.mxu0 0
        %4941 = vmatpush2.bf16.msra.mxu0 0
        %4942 = vmatprep.subr.bf16.mxu0 0
        %4943 = vmatpush2.bf16.msra.mxu0 0
        %4944 = vmatprep.subr.bf16.mxu0 0
        %4945 = vmatpush2.bf16.msra.mxu0 0
        %4946 = vmatprep.mubr.bf16.mxu0 0
        %4947 = vmatmul.mubr.bf16.gmra.mxu0 %v4903
        %v4948 = vpop.f32.mrf.mxu0
        %v4949 = vadd.f32 %v4888, %v4948
        %v4950 = vpop.f32.mrf.mxu0
        %v4951 = vpop.f32.mrf.mxu0
        %v4952 = vadd.f32 %v4888, %v4951
        %v4953 = vpop.f32.mrf.mxu0
        %4954 = vmatprep.mubr.bf16.mxu0 0
        %4955 = vmatmul.mubr.bf16.gmra.mxu0 %v4906
        %v4956 = vpop.f32.mrf.mxu0
        %v4957 = vadd.f32 %v4888, %v4956
        %v4958 = vpop.f32.mrf.mxu0
        %v4959 = vpop.f32.mrf.mxu0
        %v4960 = vadd.f32 %v4888, %v4959
        %v4961 = vpop.f32.mrf.mxu0
        %4962 = vmatprep.mubr.bf16.mxu0 0
        %4963 = vmatmul.mubr.bf16.gmra.mxu0 %v4909
        %v4964 = vpop.f32.mrf.mxu0
        %v4965 = vadd.f32 %v4888, %v4964
        %v4966 = vpop.f32.mrf.mxu0
        %v4967 = vpop.f32.mrf.mxu0
        %v4968 = vadd.f32 %v4888, %v4967
        %v4969 = vpop.f32.mrf.mxu0
        %4970 = vmatprep.mubr.bf16.mxu0 0
        %4971 = vmatmul.mubr.bf16.gmra.mxu0 %v4912
        %v4972 = vpop.f32.mrf.mxu0
        %v4973 = vadd.f32 %v4888, %v4972
        %v4974 = vpop.f32.mrf.mxu0
        %v4975 = vpop.f32.mrf.mxu0
        %v4976 = vadd.f32 %v4888, %v4975
        %v4977 = vpop.f32.mrf.mxu0
        %4978 = vdwg.mxu0
        %v4979 = vadd.f32 %v833, %v4949
        %v4980 = vadd.f32 %v834, %v4952
        %v4981 = vadd.f32 %v835, %v4957
        %v4982 = vadd.f32 %v836, %v4960
        %v4983 = vadd.f32 %v837, %v4965
        %v4984 = vadd.f32 %v838, %v4968
        %v4985 = vadd.f32 %v839, %v4973
        %v4986 = vadd.f32 %v840, %v4976
        %v4987 = vld [vmem:[%s684] sm:$0x1]
        %v4988 = vld [vmem:[%s692] sm:$0x1]
        %v4989 = vsel %vm849, %v4979, 0.0
        %4990 = vadd.xlane.f32.xlu0 %v4989
        %v4991 = vpop.xlane.xlu0 %4990
        %v4992 = vsel %vm849, %v4980, 0.0
        %4993 = vadd.xlane.f32.xlu0 %v4992
        %v4994 = vpop.xlane.xlu0 %4993
        %v4995 = vsel %vm849, %v4981, 0.0
        %4996 = vadd.xlane.f32.xlu0 %v4995
        %v4997 = vpop.xlane.xlu0 %4996
        %v4998 = vsel %vm849, %v4982, 0.0
        %4999 = vadd.xlane.f32.xlu0 %v4998
        %v5000 = vpop.xlane.xlu0 %4999
        %v5001 = vsel %vm849, %v4983, 0.0
        %5002 = vadd.xlane.f32.xlu0 %v5001
        %v5003 = vpop.xlane.xlu0 %5002
        %v5004 = vsel %vm849, %v4984, 0.0
        %5005 = vadd.xlane.f32.xlu0 %v5004
        %v5006 = vpop.xlane.xlu0 %5005
        %v5007 = vsel %vm849, %v4985, 0.0
        %5008 = vadd.xlane.f32.xlu0 %v5007
        %v5009 = vpop.xlane.xlu0 %5008
        %v5010 = vsel %vm849, %v4986, 0.0
        %5011 = vadd.xlane.f32.xlu0 %v5010
        %v5012 = vpop.xlane.xlu0 %5011
        %v5013 = vmul.f32 %v4991, %v874
        %v5014 = vmul.f32 %v4994, %v874
        %v5015 = vmul.f32 %v4997, %v874
        %v5016 = vmul.f32 %v5000, %v874
        %v5017 = vmul.f32 %v5003, %v874
        %v5018 = vmul.f32 %v5006, %v874
        %v5019 = vmul.f32 %v5009, %v874
        %v5020 = vmul.f32 %v5012, %v874
        %v5021 = vsub.f32 %v4979, %v5013
        %v5022 = vsub.f32 %v4980, %v5014
        %v5023 = vsub.f32 %v4981, %v5015
        %v5024 = vsub.f32 %v4982, %v5016
        %v5025 = vsub.f32 %v4983, %v5017
        %v5026 = vsub.f32 %v4984, %v5018
        %v5027 = vsub.f32 %v4985, %v5019
        %v5028 = vsub.f32 %v4986, %v5020
        %v5029 = vmul.f32 %v5021, %v5021
        %v5030 = vmul.f32 %v5022, %v5022
        %v5031 = vmul.f32 %v5023, %v5023
        %v5032 = vmul.f32 %v5024, %v5024
        %v5033 = vmul.f32 %v5025, %v5025
        %v5034 = vmul.f32 %v5026, %v5026
        %v5035 = vmul.f32 %v5027, %v5027
        %v5036 = vmul.f32 %v5028, %v5028
        %v5037 = vsel %vm849, %v5029, 0.0
        %5038 = vadd.xlane.f32.xlu0 %v5037
        %v5039 = vpop.xlane.xlu0 %5038
        %v5040 = vsel %vm849, %v5030, 0.0
        %5041 = vadd.xlane.f32.xlu0 %v5040
        %v5042 = vpop.xlane.xlu0 %5041
        %v5043 = vsel %vm849, %v5031, 0.0
        %5044 = vadd.xlane.f32.xlu0 %v5043
        %v5045 = vpop.xlane.xlu0 %5044
        %v5046 = vsel %vm849, %v5032, 0.0
        %5047 = vadd.xlane.f32.xlu0 %v5046
        %v5048 = vpop.xlane.xlu0 %5047
        %v5049 = vsel %vm849, %v5033, 0.0
        %5050 = vadd.xlane.f32.xlu0 %v5049
        %v5051 = vpop.xlane.xlu0 %5050
        %v5052 = vsel %vm849, %v5034, 0.0
        %5053 = vadd.xlane.f32.xlu0 %v5052
        %v5054 = vpop.xlane.xlu0 %5053
        %v5055 = vsel %vm849, %v5035, 0.0
        %5056 = vadd.xlane.f32.xlu0 %v5055
        %v5057 = vpop.xlane.xlu0 %5056
        %v5058 = vsel %vm849, %v5036, 0.0
        %5059 = vadd.xlane.f32.xlu0 %v5058
        %v5060 = vpop.xlane.xlu0 %5059
        %v5061 = vmul.f32 %v5039, %v874
        %v5062 = vmul.f32 %v5042, %v874
        %v5063 = vmul.f32 %v5045, %v874
        %v5064 = vmul.f32 %v5048, %v874
        %v5065 = vmul.f32 %v5051, %v874
        %v5066 = vmul.f32 %v5054, %v874
        %v5067 = vmul.f32 %v5057, %v874
        %v5068 = vmul.f32 %v5060, %v874
        %v5069 = vadd.f32 %v5061, 1e-05
        %v5070 = vadd.f32 %v5062, 1e-05
        %v5071 = vadd.f32 %v5063, 1e-05
        %v5072 = vadd.f32 %v5064, 1e-05
        %v5073 = vadd.f32 %v5065, 1e-05
        %v5074 = vadd.f32 %v5066, 1e-05
        %v5075 = vadd.f32 %v5067, 1e-05
        %v5076 = vadd.f32 %v5068, 1e-05
        %v5077 = vrsqrt.pop %v5069
        %v5078 = vrsqrt.pop %v5070
        %v5079 = vrsqrt.pop %v5071
        %v5080 = vrsqrt.pop %v5072
        %v5081 = vrsqrt.pop %v5073
        %v5082 = vrsqrt.pop %v5074
        %v5083 = vrsqrt.pop %v5075
        %v5084 = vrsqrt.pop %v5076
        %v5085 = vmul.f32 %v5021, %v5077
        %v5086 = vmul.f32 %v5022, %v5078
        %v5087 = vmul.f32 %v5023, %v5079
        %v5088 = vmul.f32 %v5024, %v5080
        %v5089 = vmul.f32 %v5025, %v5081
        %v5090 = vmul.f32 %v5026, %v5082
        %v5091 = vmul.f32 %v5027, %v5083
        %v5092 = vmul.f32 %v5028, %v5084
        %v5094 = vlaneseq
        %v5095 = vshrl.u32 %v5094, 7
        %v5096 = vsub.s32 0, %v5095
        %v5097 = vrot.slane %v4987, %v5096
        %v5099 = vmul.f32 %v5085, %v5097
        %v5100 = vmul.f32 %v5086, %v5097
        %v5101 = vmul.f32 %v5087, %v5097
        %v5102 = vmul.f32 %v5088, %v5097
        %v5103 = vmul.f32 %v5089, %v5097
        %v5104 = vmul.f32 %v5090, %v5097
        %v5105 = vmul.f32 %v5091, %v5097
        %v5106 = vmul.f32 %v5092, %v5097
        %v5108 = vlaneseq
        %v5109 = vshrl.u32 %v5108, 7
        %v5110 = vsub.s32 0, %v5109
        %v5111 = vrot.slane %v4988, %v5110
        %v5113 = vadd.f32 %v5099, %v5111
        %v5114 = vadd.f32 %v5100, %v5111
        %v5115 = vadd.f32 %v5101, %v5111
        %v5116 = vadd.f32 %v5102, %v5111
        %v5117 = vadd.f32 %v5103, %v5111
        %v5118 = vadd.f32 %v5104, %v5111
        %v5119 = vadd.f32 %v5105, %v5111
        %v5120 = vadd.f32 %v5106, %v5111
        %v5121 = vpack.c.bf16 %v5114, %v5113
        %v5122 = vpack.c.bf16 %v5116, %v5115
        %v5123 = vpack.c.bf16 %v5118, %v5117
        %v5124 = vpack.c.bf16 %v5120, %v5119
        %v5125 = vld [vmem:[%s701] sm:$0xf]
        %v5126 = vld [vmem:[%s701 + $0x4] sm:$0xf]
        %v5127 = vld [vmem:[%s701 + $0x8] sm:$0xf]
        %v5128 = vld [vmem:[%s701 + $0xc] sm:$0xf]
        %v5129 = vld [vmem:[%s802] sm:$0x1]
        %v5131 = vlaneseq
        %v5132 = vshrl.u32 %v5131, 7
        %v5133 = vsub.s32 0, %v5132
        %v5134 = vrot.slane %v5129, %v5133
        %v5140 = vunpack.c.l.b16 %v5125
        %v5141 = vunpack.c.l.b16 %v5126
        %v5142 = vunpack.c.l.b16 %v5127
        %v5143 = vunpack.c.l.b16 %v5128
        %v5144 = vpack.c.b16 %v5141, %v5140
        %v5145 = vpack.c.b16 %v5143, %v5142
        %v5149 = vsel %vm849, %v5121, 0
        %v5152 = vsel %vm849, %v5122, 0
        %v5155 = vsel %vm849, %v5123, 0
        %v5158 = vsel %vm849, %v5124, 0
        %5160 = vmatprep.subr.bf16.mxu0 0
        %5161 = vmatpush1.bf16.msra.mxu0 0
        %5162 = vmatprep.subr.bf16.mxu0 0
        %5163 = vmatpush1.bf16.msra.mxu0 0
        %5164 = vmatprep.subr.bf16.mxu0 0
        %5165 = vmatpush1.bf16.msra.mxu0 0
        %5166 = vmatprep.subr.bf16.mxu0 0
        %5167 = vmatpush1.bf16.msra.mxu0 0
        %5168 = vmatprep.subr.bf16.mxu0 0
        %5169 = vmatpush1.bf16.msra.mxu0 0
        %5170 = vmatprep.subr.bf16.mxu0 0
        %5171 = vmatpush1.bf16.msra.mxu0 0
        %5172 = vmatprep.subr.bf16.mxu0 0
        %5173 = vmatpush1.bf16.msra.mxu0 %v5145
        %5174 = vmatprep.subr.bf16.mxu0 0
        %5175 = vmatpush1.bf16.msra.mxu0 %v5144
        %5176 = vmatprep.subr.bf16.mxu0 0
        %5177 = vmatpush2.bf16.msra.mxu0 0
        %5178 = vmatprep.subr.bf16.mxu0 0
        %5179 = vmatpush2.bf16.msra.mxu0 0
        %5180 = vmatprep.subr.bf16.mxu0 0
        %5181 = vmatpush2.bf16.msra.mxu0 0
        %5182 = vmatprep.subr.bf16.mxu0 0
        %5183 = vmatpush2.bf16.msra.mxu0 0
        %5184 = vmatprep.subr.bf16.mxu0 0
        %5185 = vmatpush2.bf16.msra.mxu0 0
        %5186 = vmatprep.subr.bf16.mxu0 0
        %5187 = vmatpush2.bf16.msra.mxu0 0
        %5188 = vmatprep.subr.bf16.mxu0 0
        %5189 = vmatpush2.bf16.msra.mxu0 0
        %5190 = vmatprep.subr.bf16.mxu0 0
        %5191 = vmatpush2.bf16.msra.mxu0 0
        %5192 = vmatprep.mubr.bf16.mxu0 0
        %5193 = vmatmul.mubr.bf16.gmra.mxu0 %v5149
        %v5194 = vpop.f32.mrf.mxu0
        %v5195 = vadd.f32 %v5134, %v5194
        %v5196 = vpop.f32.mrf.mxu0
        %v5197 = vpop.f32.mrf.mxu0
        %v5198 = vadd.f32 %v5134, %v5197
        %v5199 = vpop.f32.mrf.mxu0
        %5200 = vmatprep.mubr.bf16.mxu0 0
        %5201 = vmatmul.mubr.bf16.gmra.mxu0 %v5152
        %v5202 = vpop.f32.mrf.mxu0
        %v5203 = vadd.f32 %v5134, %v5202
        %v5204 = vpop.f32.mrf.mxu0
        %v5205 = vpop.f32.mrf.mxu0
        %v5206 = vadd.f32 %v5134, %v5205
        %v5207 = vpop.f32.mrf.mxu0
        %5208 = vmatprep.mubr.bf16.mxu0 0
        %5209 = vmatmul.mubr.bf16.gmra.mxu0 %v5155
        %v5210 = vpop.f32.mrf.mxu0
        %v5211 = vadd.f32 %v5134, %v5210
        %v5212 = vpop.f32.mrf.mxu0
        %v5213 = vpop.f32.mrf.mxu0
        %v5214 = vadd.f32 %v5134, %v5213
        %v5215 = vpop.f32.mrf.mxu0
        %5216 = vmatprep.mubr.bf16.mxu0 0
        %5217 = vmatmul.mubr.bf16.gmra.mxu0 %v5158
        %v5218 = vpop.f32.mrf.mxu0
        %v5219 = vadd.f32 %v5134, %v5218
        %v5220 = vpop.f32.mrf.mxu0
        %v5221 = vpop.f32.mrf.mxu0
        %v5222 = vadd.f32 %v5134, %v5221
        %v5223 = vpop.f32.mrf.mxu0
        %5224 = vdwg.mxu0
        %v5225 = vmul.f32 %v5195, 1.702
        %v5226 = vmul.f32 %v5198, 1.702
        %v5227 = vmul.f32 %v5203, 1.702
        %v5228 = vmul.f32 %v5206, 1.702
        %v5229 = vmul.f32 %v5211, 1.702
        %v5230 = vmul.f32 %v5214, 1.702
        %v5231 = vmul.f32 %v5219, 1.702
        %v5232 = vmul.f32 %v5222, 1.702
        %v5233 = vxor.u32 %v5225, 2147483648
        %v5234 = vxor.u32 %v5226, 2147483648
        %v5235 = vxor.u32 %v5227, 2147483648
        %v5236 = vxor.u32 %v5228, 2147483648
        %v5237 = vxor.u32 %v5229, 2147483648
        %v5238 = vxor.u32 %v5230, 2147483648
        %v5239 = vxor.u32 %v5231, 2147483648
        %v5240 = vxor.u32 %v5232, 2147483648
        %v5241 = vmul.f32 %v5233, 1.442695
        %v5242 = vpow.pop %v5241
        %v5243 = vmul.f32 %v5234, 1.442695
        %v5244 = vpow.pop %v5243
        %v5245 = vmul.f32 %v5235, 1.442695
        %v5246 = vpow.pop %v5245
        %v5247 = vmul.f32 %v5236, 1.442695
        %v5248 = vpow.pop %v5247
        %v5249 = vmul.f32 %v5237, 1.442695
        %v5250 = vpow.pop %v5249
        %v5251 = vmul.f32 %v5238, 1.442695
        %v5252 = vpow.pop %v5251
        %v5253 = vmul.f32 %v5239, 1.442695
        %v5254 = vpow.pop %v5253
        %v5255 = vmul.f32 %v5240, 1.442695
        %v5256 = vpow.pop %v5255
        %v5257 = vadd.f32 %v5242, 1.0
        %v5258 = vadd.f32 %v5244, 1.0
        %v5259 = vadd.f32 %v5246, 1.0
        %v5260 = vadd.f32 %v5248, 1.0
        %v5261 = vadd.f32 %v5250, 1.0
        %v5262 = vadd.f32 %v5252, 1.0
        %v5263 = vadd.f32 %v5254, 1.0
        %v5264 = vadd.f32 %v5256, 1.0
        %v5265 = vrcp.pop %v5257
        %v5266 = vmul.f32 1.0, %v5265
        %v5267 = vrcp.pop %v5258
        %v5268 = vmul.f32 1.0, %v5267
        %v5269 = vrcp.pop %v5259
        %v5270 = vmul.f32 1.0, %v5269
        %v5271 = vrcp.pop %v5260
        %v5272 = vmul.f32 1.0, %v5271
        %v5273 = vrcp.pop %v5261
        %v5274 = vmul.f32 1.0, %v5273
        %v5275 = vrcp.pop %v5262
        %v5276 = vmul.f32 1.0, %v5275
        %v5277 = vrcp.pop %v5263
        %v5278 = vmul.f32 1.0, %v5277
        %v5279 = vrcp.pop %v5264
        %v5280 = vmul.f32 1.0, %v5279
        %v5281 = vmul.f32 %v5195, %v5266
        %v5282 = vmul.f32 %v5198, %v5268
        %v5283 = vmul.f32 %v5203, %v5270
        %v5284 = vmul.f32 %v5206, %v5272
        %v5285 = vmul.f32 %v5211, %v5274
        %v5286 = vmul.f32 %v5214, %v5276
        %v5287 = vmul.f32 %v5219, %v5278
        %v5288 = vmul.f32 %v5222, %v5280
        %v5289 = vpack.c.bf16 %v5282, %v5281
        %v5290 = vpack.c.bf16 %v5284, %v5283
        %v5291 = vpack.c.bf16 %v5286, %v5285
        %v5292 = vpack.c.bf16 %v5288, %v5287
        %v5293 = vld [vmem:[%s807] sm:$0xf]
        %v5294 = vld [vmem:[%s807 + $0x4] sm:$0xf]
        %v5295 = vld [vmem:[%s807 + $0x8] sm:$0xf]
        %v5296 = vld [vmem:[%s807 + $0xc] sm:$0xf]
        %v5297 = vld [vmem:[%s807 + $0x10] sm:$0xf]
        %v5298 = vld [vmem:[%s807 + $0x14] sm:$0xf]
        %v5299 = vld [vmem:[%s807 + $0x18] sm:$0xf]
        %v5300 = vld [vmem:[%s807 + $0x1c] sm:$0xf]
        %v5301 = vld [vmem:[%s810] sm:$0x1]
        %v5303 = vlaneseq
        %v5304 = vshrl.u32 %v5303, 7
        %v5305 = vsub.s32 0, %v5304
        %v5306 = vrot.slane %v5301, %v5305
        %v5316 = vunpack.c.l.b16 %v5293
        %v5317 = vunpack.c.l.b16 %v5294
        %v5318 = vunpack.c.l.b16 %v5295
        %v5319 = vunpack.c.l.b16 %v5296
        %v5320 = vunpack.c.l.b16 %v5297
        %v5321 = vunpack.c.l.b16 %v5298
        %v5322 = vunpack.c.l.b16 %v5299
        %v5323 = vunpack.c.l.b16 %v5300
        %v5324 = vpack.c.b16 %v5317, %v5316
        %v5325 = vpack.c.b16 %v5319, %v5318
        %v5326 = vpack.c.b16 %v5321, %v5320
        %v5327 = vpack.c.b16 %v5323, %v5322
        %vm5332 = vcmask 523264
        %v5334 = vsel %vm5332, %v5289, 0
        %v5337 = vsel %vm5332, %v5290, 0
        %v5340 = vsel %vm5332, %v5291, 0
        %v5343 = vsel %vm5332, %v5292, 0
        %5345 = vmatprep.subr.bf16.mxu0 0
        %5346 = vmatpush1.bf16.msra.mxu0 0
        %5347 = vmatprep.subr.bf16.mxu0 0
        %5348 = vmatpush1.bf16.msra.mxu0 0
        %5349 = vmatprep.subr.bf16.mxu0 0
        %5350 = vmatpush1.bf16.msra.mxu0 0
        %5351 = vmatprep.subr.bf16.mxu0 0
        %5352 = vmatpush1.bf16.msra.mxu0 0
        %5353 = vmatprep.subr.bf16.mxu0 0
        %5354 = vmatpush1.bf16.msra.mxu0 %v5327
        %5355 = vmatprep.subr.bf16.mxu0 0
        %5356 = vmatpush1.bf16.msra.mxu0 %v5326
        %5357 = vmatprep.subr.bf16.mxu0 0
        %5358 = vmatpush1.bf16.msra.mxu0 %v5325
        %5359 = vmatprep.subr.bf16.mxu0 0
        %5360 = vmatpush1.bf16.msra.mxu0 %v5324
        %5361 = vmatprep.subr.bf16.mxu0 0
        %5362 = vmatpush2.bf16.msra.mxu0 0
        %5363 = vmatprep.subr.bf16.mxu0 0
        %5364 = vmatpush2.bf16.msra.mxu0 0
        %5365 = vmatprep.subr.bf16.mxu0 0
        %5366 = vmatpush2.bf16.msra.mxu0 0
        %5367 = vmatprep.subr.bf16.mxu0 0
        %5368 = vmatpush2.bf16.msra.mxu0 0
        %5369 = vmatprep.subr.bf16.mxu0 0
        %5370 = vmatpush2.bf16.msra.mxu0 0
        %5371 = vmatprep.subr.bf16.mxu0 0
        %5372 = vmatpush2.bf16.msra.mxu0 0
        %5373 = vmatprep.subr.bf16.mxu0 0
        %5374 = vmatpush2.bf16.msra.mxu0 0
        %5375 = vmatprep.subr.bf16.mxu0 0
        %5376 = vmatpush2.bf16.msra.mxu0 0
        %5377 = vmatprep.mubr.bf16.mxu0 0
        %5378 = vmatmul.mubr.bf16.gmra.mxu0 %v5334
        %v5379 = vpop.f32.mrf.mxu0
        %v5380 = vadd.f32 %v5306, %v5379
        %v5381 = vpop.f32.mrf.mxu0
        %v5382 = vpop.f32.mrf.mxu0
        %v5383 = vadd.f32 %v5306, %v5382
        %v5384 = vpop.f32.mrf.mxu0
        %5385 = vmatprep.mubr.bf16.mxu0 0
        %5386 = vmatmul.mubr.bf16.gmra.mxu0 %v5337
        %v5387 = vpop.f32.mrf.mxu0
        %v5388 = vadd.f32 %v5306, %v5387
        %v5389 = vpop.f32.mrf.mxu0
        %v5390 = vpop.f32.mrf.mxu0
        %v5391 = vadd.f32 %v5306, %v5390
        %v5392 = vpop.f32.mrf.mxu0
        %5393 = vmatprep.mubr.bf16.mxu0 0
        %5394 = vmatmul.mubr.bf16.gmra.mxu0 %v5340
        %v5395 = vpop.f32.mrf.mxu0
        %v5396 = vadd.f32 %v5306, %v5395
        %v5397 = vpop.f32.mrf.mxu0
        %v5398 = vpop.f32.mrf.mxu0
        %v5399 = vadd.f32 %v5306, %v5398
        %v5400 = vpop.f32.mrf.mxu0
        %5401 = vmatprep.mubr.bf16.mxu0 0
        %5402 = vmatmul.mubr.bf16.gmra.mxu0 %v5343
        %v5403 = vpop.f32.mrf.mxu0
        %v5404 = vadd.f32 %v5306, %v5403
        %v5405 = vpop.f32.mrf.mxu0
        %v5406 = vpop.f32.mrf.mxu0
        %v5407 = vadd.f32 %v5306, %v5406
        %v5408 = vpop.f32.mrf.mxu0
        %5409 = vdwg.mxu0
        %v5410 = vadd.f32 %v4979, %v5380
        %v5411 = vadd.f32 %v4980, %v5383
        %v5412 = vadd.f32 %v4981, %v5388
        %v5413 = vadd.f32 %v4982, %v5391
        %v5414 = vadd.f32 %v4983, %v5396
        %v5415 = vadd.f32 %v4984, %v5399
        %v5416 = vadd.f32 %v4985, %v5404
        %v5417 = vadd.f32 %v4986, %v5407
        %5418 = vst.msk [vmem:[#allocation2] sm:$0xff] %vm849, %v5410
        %5419 = vst.msk [vmem:[#allocation2 + $0x8] sm:$0xff] %vm849, %v5411
        %5420 = vst.msk [vmem:[#allocation2 + $0x10] sm:$0xff] %vm849, %v5412
        %5421 = vst.msk [vmem:[#allocation2 + $0x18] sm:$0xff] %vm849, %v5413
        %5422 = vst.msk [vmem:[#allocation2 + $0x20] sm:$0xff] %vm849, %v5414
        %5423 = vst.msk [vmem:[#allocation2 + $0x28] sm:$0xff] %vm849, %v5415
        %5424 = vst.msk [vmem:[#allocation2 + $0x30] sm:$0xff] %vm849, %v5416
        %5425 = vst.msk [vmem:[#allocation2 + $0x38] sm:$0xff] %vm849, %v5417
        %p5426 = scmp.eq.s32.totalorder %s40, 1
        // Predicated region
        $region117: #{tpu_custom_call.1} parent=83 // pred_check
          %p5427 = pneg %p5426
        $region118: #{tpu_custom_call.1} parent=83 // pred_check_branch
          %5429 = sbr.rel (%p5427) target = $region120
        $region119: #{tpu_custom_call.1} parent=83 // pred_region
          %v5430 = vld [vmem:[%s13] sm:$0x1]
          %v5431 = vld [vmem:[%s14] sm:$0x1]
          %v5432 = vsel %vm849, %v5410, 0.0
          %5433 = vadd.xlane.f32.xlu0 %v5432
          %v5434 = vpop.xlane.xlu0 %5433
          %v5435 = vmul.f32 %v5434, %v874
          %v5436 = vsub.f32 %v5410, %v5435
          %v5437 = vmul.f32 %v5436, %v5436
          %v5438 = vsel %vm849, %v5437, 0.0
          %5439 = vadd.xlane.f32.xlu0 %v5438
          %v5440 = vpop.xlane.xlu0 %5439
          %v5441 = vmul.f32 %v5440, %v874
          %v5442 = vadd.f32 %v5441, 1e-05
          %v5443 = vrsqrt.pop %v5442
          %v5444 = vmul.f32 %v5436, %v5443
          %v5446 = vlaneseq
          %v5447 = vshrl.u32 %v5446, 7
          %v5448 = vsub.s32 0, %v5447
          %v5449 = vrot.slane %v5430, %v5448
          %v5451 = vmul.f32 %v5444, %v5449
          %v5453 = vlaneseq
          %v5454 = vshrl.u32 %v5453, 7
          %v5455 = vsub.s32 0, %v5454
          %v5456 = vrot.slane %v5431, %v5455
          %v5458 = vadd.f32 %v5451, %v5456
          %v5459 = vpack.c.bf16 %v5458, %v5458
          %v5460 = vld [vmem:[%s15] sm:$0xf]
          %v5461 = vld [vmem:[%s15 + $0x4] sm:$0xf]
          %v5462 = vld [vmem:[%s15 + $0x8] sm:$0xf]
          %v5463 = vld [vmem:[%s15 + $0xc] sm:$0xf]
          %v5468 = vunpack.c.l.b16 %v5460
          %v5469 = vunpack.c.l.b16 %v5461
          %v5470 = vunpack.c.l.b16 %v5462
          %v5471 = vunpack.c.l.b16 %v5463
          %v5472 = vpack.c.b16 %v5469, %v5468
          %v5473 = vpack.c.b16 %v5471, %v5470
          %v5477 = vsel %vm849, %v5459, 0
          %5479 = vmatprep.subr.bf16.mxu0 0
          %5480 = vmatpush1.bf16.msra.mxu0 0
          %5481 = vmatprep.subr.bf16.mxu0 0
          %5482 = vmatpush1.bf16.msra.mxu0 0
          %5483 = vmatprep.subr.bf16.mxu0 0
          %5484 = vmatpush1.bf16.msra.mxu0 0
          %5485 = vmatprep.subr.bf16.mxu0 0
          %5486 = vmatpush1.bf16.msra.mxu0 0
          %5487 = vmatprep.subr.bf16.mxu0 0
          %5488 = vmatpush1.bf16.msra.mxu0 0
          %5489 = vmatprep.subr.bf16.mxu0 0
          %5490 = vmatpush1.bf16.msra.mxu0 0
          %5491 = vmatprep.subr.bf16.mxu0 0
          %5492 = vmatpush1.bf16.msra.mxu0 %v5473
          %5493 = vmatprep.subr.bf16.mxu0 0
          %5494 = vmatpush1.bf16.msra.mxu0 %v5472
          %5495 = vmatprep.subr.bf16.mxu0 0
          %5496 = vmatpush2.bf16.msra.mxu0 0
          %5497 = vmatprep.subr.bf16.mxu0 0
          %5498 = vmatpush2.bf16.msra.mxu0 0
          %5499 = vmatprep.subr.bf16.mxu0 0
          %5500 = vmatpush2.bf16.msra.mxu0 0
          %5501 = vmatprep.subr.bf16.mxu0 0
          %5502 = vmatpush2.bf16.msra.mxu0 0
          %5503 = vmatprep.subr.bf16.mxu0 0
          %5504 = vmatpush2.bf16.msra.mxu0 0
          %5505 = vmatprep.subr.bf16.mxu0 0
          %5506 = vmatpush2.bf16.msra.mxu0 0
          %5507 = vmatprep.subr.bf16.mxu0 0
          %5508 = vmatpush2.bf16.msra.mxu0 0
          %5509 = vmatprep.subr.bf16.mxu0 0
          %5510 = vmatpush2.bf16.msra.mxu0 0
          %5511 = vmatprep.mubr.bf16.mxu0 0
          %5512 = vmatmul.mubr.bf16.gmra.mxu0 %v5477
          %v5513 = vpop.f32.mrf.mxu0
          %v5514 = vadd.f32 0.0, %v5513
          %v5515 = vpop.f32.mrf.mxu0
          %v5516 = vpop.f32.mrf.mxu0
          %v5517 = vpop.f32.mrf.mxu0
          %5518 = vdwg.mxu0
          %5519 = vst.msk [vmem:[#allocation15] sm:$0xff] %vm4857, %v5514
        $region120: #{tpu_custom_call.1} parent=83 // pred_fallthru
          _
        // Predicated region
        $region121: #{tpu_custom_call.1} parent=83 // pred_check
          %p5520 = pneg %p449
        $region122: #{tpu_custom_call.1} parent=83 // pred_check_branch
          %5522 = sbr.rel (%p5520) target = $region124
        $region123: #{tpu_custom_call.1} parent=83 // pred_region
          %s5524 = ssub.s32 128, 128
          %5525 = vsyncadd [#allocation5], %s5524
          %s5527 = sshll.u32 [#allocation15], 4
          %s5528 = int_to_ptr.vmem [resolvable:$true] %s5527
          %5530 = dma.vmem_to_hbm [thread:$0]  %s5528, 128, %s16, [#allocation5]
        $region124: #{tpu_custom_call.1} parent=83 // pred_fallthru
          _
        // Predicated region
        $region125: #{tpu_custom_call.1} parent=83 // pred_check
          %p5531 = pneg %p449
        $region126: #{tpu_custom_call.1} parent=83 // pred_check_branch
          %5533 = sbr.rel (%p5531) target = $region128
        $region127: #{tpu_custom_call.1} parent=83 // pred_region
          %5534 = dma.done [#allocation5], 128
        $region128: #{tpu_custom_call.1} parent=83 // pred_fallthru
          _
      $region84: #{tpu_custom_call.1} parent=5 // pred_fallthru
        _
      %p5535 = scmp.le.s32.totalorder 2, %s35
      // Predicated region
      $region129: #{tpu_custom_call.1} parent=5 // pred_check
        %p5536 = pneg %p5535
      $region130: #{tpu_custom_call.1} parent=5 // pred_check_branch
        %5538 = sbr.rel (%p5536) target = $region132
      $region131: #{tpu_custom_call.1} parent=5 // pred_region
        %s5539 = ssub.s32 %s35, 2
      $region132: #{tpu_custom_call.1} parent=5 // pred_fallthru
        _
    $region6: #{tpu_custom_call.1} parent=1 // loop_footer
      %s39 = sadd.s32 1, %s35
    $region7: #{tpu_custom_call.1} parent=1 // loop_footer_branch
      %34 = sbr.rel target = $region3
    $region8: #{tpu_custom_call.1} parent=1 // loop_exit
      _
    %5540 = vsyncpa [#allocation4], 1
    %s5541 = scalar_lea.sflag [#allocation4], 1
    %5542 = vsyncpa %s5541, 1
    %5543 = vsyncpa [#allocation7], 1
    %s5544 = scalar_lea.sflag [#allocation7], 1
    %5545 = vsyncpa %s5544, 1
    %5546 = vsyncpa [#allocation10], 1
    %s5547 = scalar_lea.sflag [#allocation10], 1
    %5548 = vsyncpa %s5547, 1
    %5549 = vsyncpa [#allocation13], 1
    %s5550 = scalar_lea.sflag [#allocation13], 1
    %5551 = vsyncpa %s5550, 1
    %5552 = vsyncpa [#allocation5], 1
    %s5553 = scalar_lea.sflag [#allocation5], 1
    %5554 = vsyncpa %s5553, 1

</llo_original>
